<compile_context>
chip_gen: v5e
topology: v5e:2x2
jax: 0.10.0
libtpu: 0.0.40
codegen_flags: <defaults>
</compile_context>

<pallas_src>
import functools

import jax
import jax.numpy as jnp
from jax.experimental import pallas as pl
from jax.experimental.pallas import tpu as pltpu


LANE = 128          # lane width of every packed param block / activation
OUT_PAD = 128       # decoder output padded 3 -> 128 columns (lane-dense vst)
X_LANES = 16        # node-feature input padded 4 -> 16 lanes
_ALIGN = 16         # bf16 packs 2 rows / sublane -> keep blocks 16-row aligned

# (name, real_rows, slice_rows).  slice_rows = lane width of the activation
# that multiplies the block (16 for the padded input, 128 for hidden layers).
# 128-row slices may over-read into following blocks: those rows are always
# multiplied by exactly-zero activation columns, so the over-read is exact.
_W_SPECS = (
    ("enc_w0", 4, 16),
    ("enc_w1", 50, 128), ("enc_w2", 50, 128), ("enc_w3", 50, 128),
    ("edge_w0a", 20, 128), ("edge_w0b", 20, 128), ("edge_w1", 50, 128),
    ("node_w0a", 20, 128), ("node_w0b", 20, 128), ("node_w1", 50, 128),
    ("dec_w0", 20, 128), ("dec_w1", 50, 128), ("dec_w2", 50, 128),
    ("dec_w3", 50, 128),
)
_B_NAMES = ("enc_b0", "enc_b1", "enc_b2", "enc_b3",
            "edge_b0", "edge_b1", "node_b0", "node_b1",
            "dec_b0", "dec_b1", "dec_b2", "dec_b3")


def _align(n, a):
    return ((n + a - 1) // a) * a


def _build_layout():
    w_layout, off, max_end = {}, 0, 0
    for name, rows, slice_rows in _W_SPECS:
        w_layout[name] = (off, slice_rows)
        max_end = max(max_end, off + slice_rows)
        off += _align(rows, _ALIGN)
    bias_off = off                                  # 16-row aligned by construction
    b_layout = {name: i for i, name in enumerate(_B_NAMES)}
    bias_rows = _align(len(_B_NAMES), _ALIGN)
    off += bias_rows
    total = _align(max(off, max_end), _ALIGN)
    return w_layout, b_layout, bias_off, bias_rows, total


W_LAYOUT, B_LAYOUT, BIAS_OFF, BIAS_ROWS, PARAM_ROWS = _build_layout()   # 752 rows


def _relu(a):
    return jnp.maximum(a, 0.0)


def _bdot(a, b):
    # bf16 x bf16 -> f32 accumulate (native MXU path; casts are no-ops for bf16).
    return jnp.dot(a.astype(jnp.bfloat16), b.astype(jnp.bfloat16),
                   preferred_element_type=jnp.float32)


def pose_graph_kernel(x_ref, src_ref, dst_ref, dstr_ref, p_ref, out_ref):
    """One block-diagonal batch of graphs: encoder -> GN layer -> decoder.

    x_ref   : [Nb, 16]          f32  node features (cols 4.. zero padding)
    src_ref : [Eb, 1]           i32  block-local edge source node ids
    dst_ref : [Eb, 1]           i32  block-local edge target node ids
    dstr_ref: [1, Eb]           i32  same targets, row-oriented (scatter operand)
    p_ref   : [PARAM_ROWS, 128] bf16 packed parameters (static layout)
    out_ref : [Nb, 128]         f32  lane-dense output (cols 0..2 meaningful)
    """
    n_blk = x_ref.shape[0]
    e_blk = src_ref.shape[0]

    def w(name):
        off, rows = W_LAYOUT[name]
        return p_ref[off:off + rows, :]                 # full-lane bf16 slice

    bias_all = p_ref[BIAS_OFF:BIAS_OFF + BIAS_ROWS, :].astype(jnp.float32)

    def b(name):
        k = B_LAYOUT[name]
        return bias_all[k:k + 1, :]                     # [1, 128] f32

    x = x_ref[...]                                      # [Nb, 16]

    # ---- node encoder: 4 -> 50 -> 50 -> 50 -> 20 ----
    h = _relu(_bdot(x, w("enc_w0")) + b("enc_b0"))
    h = _relu(_bdot(h, w("enc_w1")) + b("enc_b1"))
    h = _relu(_bdot(h, w("enc_w2")) + b("enc_b2"))
    enc = _bdot(h, w("enc_w3")) + b("enc_b3")           # [Nb, 128] (20 real cols)

    # ---- in-kernel one-hot gather / scatter operands (exact 0/1 in bf16) ----
    src = src_ref[...]                                  # [Eb, 1]
    dst = dst_ref[...]                                  # [Eb, 1]
    dst_row = dstr_ref[...]                             # [1, Eb]
    iota_en = jax.lax.broadcasted_iota(jnp.int32, (e_blk, n_blk), 1)
    gs = jnp.where(iota_en == src, 1.0, 0.0).astype(jnp.bfloat16)      # [Eb, Nb]
    gd = jnp.where(iota_en == dst, 1.0, 0.0).astype(jnp.bfloat16)      # [Eb, Nb]
    iota_ne = jax.lax.broadcasted_iota(jnp.int32, (n_blk, e_blk), 0)
    sc = jnp.where(iota_ne == dst_row, 1.0, 0.0).astype(jnp.bfloat16)  # [Nb, Eb]

    x_src = _bdot(gs, enc)                              # [Eb, 128]
    x_dst = _bdot(gd, enc)                              # [Eb, 128]

    # ---- edge model on [x_src || x_dst]: split-weight accumulation ----
    m = _relu(_bdot(x_src, w("edge_w0a")) + _bdot(x_dst, w("edge_w0b"))
              + b("edge_b0"))                           # [Eb, 128] (50 real)
    messages = _bdot(m, w("edge_w1")) + b("edge_b1")    # [Eb, 128] (20 real)

    # ---- scatter-add onto target nodes: plain [Nb,Eb] x [Eb,128] dot ----
    agg = _bdot(sc, messages)                           # [Nb, 128]

    # ---- node model on [x || agg]: split-weight accumulation ----
    r = _relu(_bdot(enc, w("node_w0a")) + _bdot(agg, w("node_w0b"))
              + b("node_b0"))                           # [Nb, 128]
    residual = _bdot(r, w("node_w1")) + b("node_b1")    # [Nb, 128] (20 real)

    pred = enc + residual                               # residual update

    # ---- node decoder: 20 -> 50 -> 50 -> 50 -> 3 (lane-padded to 128) ----
    d = _relu(_bdot(pred, w("dec_w0")) + b("dec_b0"))
    d = _relu(_bdot(d, w("dec_w1")) + b("dec_b1"))
    d = _relu(_bdot(d, w("dec_w2")) + b("dec_b2"))
    out_ref[...] = _bdot(d, w("dec_w3")) + b("dec_b3")  # unmasked 128-lane store


# ----------------------------- parameters ------------------------------------

def make_params(key):
    """Returns (param dict with logical f32 shapes, packed [752,128] bf16 buffer)."""
    pd = {}

    def linear(key, din, dout):
        key, kw, kb = jax.random.split(key, 3)
        wgt = jax.random.normal(kw, (din, dout), jnp.float32) / jnp.sqrt(float(din))
        bias = jax.random.normal(kb, (1, dout), jnp.float32) * 0.01
        # Weights live in bf16 inside the kernel; round once here so the pure
        # JAX reference uses numerically identical parameters.
        wgt = wgt.astype(jnp.bfloat16).astype(jnp.float32)
        bias = bias.astype(jnp.bfloat16).astype(jnp.float32)
        return key, wgt, bias

    def add_mlp(key, prefix, dims):
        for i, (din, dout) in enumerate(zip(dims[:-1], dims[1:])):
            key, wgt, bias = linear(key, din, dout)
            pd[f"{prefix}_w{i}"] = wgt
            pd[f"{prefix}_b{i}"] = bias
        return key

    key = add_mlp(key, "enc", [4, 50, 50, 50, 20])
    key = add_mlp(key, "edge", [40, 50, 20])
    key = add_mlp(key, "node", [40, 50, 20])
    key = add_mlp(key, "dec", [20, 50, 50, 50, 3])

    packed = jnp.zeros((PARAM_ROWS, LANE), jnp.bfloat16)

    def put(buf, name, arr):
        off, _ = W_LAYOUT[name]
        return buf.at[off:off + arr.shape[0], :arr.shape[1]].set(
            arr.astype(jnp.bfloat16))

    for name in ("enc_w0", "enc_w1", "enc_w2", "enc_w3",
                 "edge_w1", "node_w1",
                 "dec_w0", "dec_w1", "dec_w2", "dec_w3"):
        packed = put(packed, name, pd[name])
    packed = put(packed, "edge_w0a", pd["edge_w0"][:20])
    packed = put(packed, "edge_w0b", pd["edge_w0"][20:])
    packed = put(packed, "node_w0a", pd["node_w0"][:20])
    packed = put(packed, "node_w0b", pd["node_w0"][20:])
    for name, row in B_LAYOUT.items():
        arr = pd[name]
        packed = packed.at[BIAS_OFF + row:BIAS_OFF + row + 1,
                           :arr.shape[1]].set(arr.astype(jnp.bfloat16))
    return pd, packed


# ------------------------------- wrapper --------------------------------------

@functools.partial(jax.jit, static_argnames=("num_blocks",))
def pose_graph_prediction_net(x, edge_index, packed_params, num_blocks=2):
    """x: [N,4] f32 node features, edge_index: [2,E] int32, packed bf16 params.

    Graphs must be batched block-diagonally: the edges in rows
    [b*E/num_blocks, (b+1)*E/num_blocks) may only reference nodes in rows
    [b*N/num_blocks, (b+1)*N/num_blocks).  num_blocks >= 2 shards the blocks
    across TensorCores on v7x via the "parallel" grid axis.
    """
    n, e = x.shape[0], edge_index.shape[1]
    nb = num_blocks
    if n % nb or e % nb or (n // nb) % 8 or (e // nb) % 8:
        raise ValueError("N and E must split into 8-aligned per-block sizes")
    n_blk, e_blk = n // nb, e // nb

    x_pad = jnp.pad(x, ((0, 0), (0, X_LANES - x.shape[1])))            # [N, 16]
    # Block-local edge indices (O(E) int math only -- no O(E*N) one-hots here).
    blk_node_off = (jnp.arange(e, dtype=jnp.int32) // e_blk) * n_blk
    src_l = edge_index[0].astype(jnp.int32) - blk_node_off
    dst_l = edge_index[1].astype(jnp.int32) - blk_node_off
    src_col = src_l.reshape(nb, e_blk, 1)
    dst_col = dst_l.reshape(nb, e_blk, 1)
    dst_row = dst_l.reshape(nb, 1, e_blk)

    out = pl.pallas_call(
        pose_graph_kernel,
        out_shape=jax.ShapeDtypeStruct((n, OUT_PAD), jnp.float32),
        grid=(nb,),
        in_specs=[
            pl.BlockSpec((n_blk, X_LANES), lambda i: (i, 0)),
            pl.BlockSpec((None, e_blk, 1), lambda i: (i, 0, 0)),
            pl.BlockSpec((None, e_blk, 1), lambda i: (i, 0, 0)),
            pl.BlockSpec((None, 1, e_blk), lambda i: (i, 0, 0)),
            pl.BlockSpec((PARAM_ROWS, LANE), lambda i: (0, 0)),
        ],
        out_specs=pl.BlockSpec((n_blk, OUT_PAD), lambda i: (i, 0)),
        compiler_params=pltpu.CompilerParams(
            dimension_semantics=("parallel",)),
    )(x_pad, src_col, dst_col, dst_row, packed_params)
    return out[:, :3]


# ---------------------------- plain-JAX reference -----------------------------

def reference_forward(x, edge_index, pd):
    def mlp(h, prefix, nlayers):
        for i in range(nlayers):
            h = h @ pd[f"{prefix}_w{i}"] + pd[f"{prefix}_b{i}"]
            if i < nlayers - 1:
                h = jnp.maximum(h, 0.0)
        return h

    enc = mlp(x, "enc", 4)
    src, dst = edge_index[0], edge_index[1]
    x_src, x_dst = enc[src], enc[dst]
    m = jnp.maximum(jnp.concatenate([x_src, x_dst], -1) @ pd["edge_w0"]
                    + pd["edge_b0"], 0.0)
    msg = m @ pd["edge_w1"] + pd["edge_b1"]
    agg = jnp.zeros((x.shape[0], msg.shape[1]), jnp.float32).at[dst].add(msg)
    r = jnp.maximum(jnp.concatenate([enc, agg], -1) @ pd["node_w0"]
                    + pd["node_b0"], 0.0)
    pred = enc + (r @ pd["node_w1"] + pd["node_b1"])
    return mlp(pred, "dec", 4)


# ---------------------------------- demo ---------------------------------------

if __name__ == "__main__":
    key = jax.random.PRNGKey(0)
    key, kx = jax.random.split(key)

    # 16 skeleton graphs of 16 joints, batched block-diagonally; 2 blocks of
    # 8 graphs each -> per-block N=128 rows (full sublane occupancy), E=240.
    num_graphs, joints, num_blocks = 16, 16, 2
    num_nodes = num_graphs * joints
    x = jax.random.normal(kx, (num_nodes, 4), jnp.float32)

    src_chain = jnp.concatenate([jnp.arange(joints - 1), jnp.arange(1, joints)])
    dst_chain = jnp.concatenate([jnp.arange(1, joints), jnp.arange(joints - 1)])
    offsets = (jnp.arange(num_graphs) * joints)[:, None]
    src = (src_chain[None, :] + offsets).reshape(-1)
    dst = (dst_chain[None, :] + offsets).reshape(-1)
    edge_index = jnp.stack([src, dst]).astype(jnp.int32)            # [2, 480]

    param_dict, packed_params = make_params(jax.random.PRNGKey(0))

    out = pose_graph_prediction_net(x, edge_index, packed_params,
                                    num_blocks=num_blocks)
    jax.block_until_ready(out)
    assert out.shape == (num_nodes, 3)
    assert bool(jnp.all(jnp.isfinite(out)))

    with jax.default_matmul_precision("highest"):
        ref = reference_forward(x, edge_index, param_dict)
    max_diff = float(jnp.max(jnp.abs(out - ref)))
    assert bool(jnp.allclose(out, ref, rtol=2e-2, atol=2e-2)), \
        f"max abs diff {max_diff}"

    print("KERNEL_OK")
</pallas_src>

<mosaic_0001>
module attributes {stable_mosaic.version = 11 : i64} {
  func.func @pose_graph_kernel(%arg0: i32, %arg1: memref<128x16xf32, #tpu.memory_space<vmem>>, %arg2: memref<1x240x1xi32, #tpu.memory_space<vmem>>, %arg3: memref<1x240x1xi32, #tpu.memory_space<vmem>>, %arg4: memref<1x1x240xi32, #tpu.memory_space<vmem>>, %arg5: memref<752x128xbf16, #tpu.memory_space<vmem>>, %arg6: memref<128x128xf32, #tpu.memory_space<vmem>>) attributes {dimension_semantics = [#tpu.dimension_semantics<parallel>], iteration_bounds = array<i64: 2>, scalar_prefetch = 0 : i64, scratch_operands = 0 : i64, tpu.core_type = #tpu.core_type<tc>, window_params = [{transform_indices = @transform_0, window_bounds = array<i64: 128, 16>}, {transform_indices = @transform_1, window_bounds = array<i64: 1, 240, 1>}, {transform_indices = @transform_2, window_bounds = array<i64: 1, 240, 1>}, {transform_indices = @transform_3, window_bounds = array<i64: 1, 1, 240>}, {pipeline_mode = #tpu.pipeline_mode<synchronous>, transform_indices = @transform_4, window_bounds = array<i64: 752, 128>}, {transform_indices = @transform_5, window_bounds = array<i64: 128, 128>}]} {
    %c688 = arith.constant 688 : index
    %c0 = arith.constant 0 : index
    %0 = vector.load %arg5[%c688, %c0] : memref<752x128xbf16, #tpu.memory_space<vmem>>, vector<16x128xbf16>
    %1 = arith.extf %0 : vector<16x128xbf16> to vector<16x128xf32>
    %c0_0 = arith.constant 0 : index
    %c0_1 = arith.constant 0 : index
    %2 = vector.load %arg1[%c0_0, %c0_1] : memref<128x16xf32, #tpu.memory_space<vmem>>, vector<128x16xf32>
    %c0_2 = arith.constant 0 : index
    %c0_3 = arith.constant 0 : index
    %3 = vector.load %arg5[%c0_2, %c0_3] : memref<752x128xbf16, #tpu.memory_space<vmem>>, vector<16x128xbf16>
    %4 = arith.truncf %2 : vector<128x16xf32> to vector<128x16xbf16>
    %cst = arith.constant dense<0.000000e+00> : vector<128x128xf32>
    %5 = tpu.matmul %4, %3, %cst {dimension_numbers = #tpu.dot_dimension_numbers<[1], [0], [0], [1], [0, 0, 1, 1], [], []>} : vector<128x16xbf16>, vector<16x128xbf16>, vector<128x128xf32> -> vector<128x128xf32>
    %6 = vector.extract_strided_slice %1 {offsets = [0, 0], sizes = [1, 128], strides = [1, 1]} : vector<16x128xf32> to vector<1x128xf32>
    %7 = vector.broadcast %6 : vector<1x128xf32> to vector<128x128xf32>
    %8 = arith.addf %5, %7 : vector<128x128xf32>
    %cst_4 = arith.constant 0.000000e+00 : f32
    %9 = vector.broadcast %cst_4 : f32 to vector<128x128xf32>
    %10 = arith.maximumf %8, %9 : vector<128x128xf32>
    %c16 = arith.constant 16 : index
    %c0_5 = arith.constant 0 : index
    %11 = vector.load %arg5[%c16, %c0_5] : memref<752x128xbf16, #tpu.memory_space<vmem>>, vector<128x128xbf16>
    %12 = arith.truncf %10 : vector<128x128xf32> to vector<128x128xbf16>
    %cst_6 = arith.constant dense<0.000000e+00> : vector<128x128xf32>
    %13 = tpu.matmul %12, %11, %cst_6 {dimension_numbers = #tpu.dot_dimension_numbers<[1], [0], [0], [1], [0, 0, 1, 1], [], []>} : vector<128x128xbf16>, vector<128x128xbf16>, vector<128x128xf32> -> vector<128x128xf32>
    %14 = vector.extract_strided_slice %1 {offsets = [1, 0], sizes = [1, 128], strides = [1, 1]} : vector<16x128xf32> to vector<1x128xf32>
    %15 = vector.broadcast %14 : vector<1x128xf32> to vector<128x128xf32>
    %16 = arith.addf %13, %15 : vector<128x128xf32>
    %cst_7 = arith.constant 0.000000e+00 : f32
    %17 = vector.broadcast %cst_7 : f32 to vector<128x128xf32>
    %18 = arith.maximumf %16, %17 : vector<128x128xf32>
    %c80 = arith.constant 80 : index
    %c0_8 = arith.constant 0 : index
    %19 = vector.load %arg5[%c80, %c0_8] : memref<752x128xbf16, #tpu.memory_space<vmem>>, vector<128x128xbf16>
    %20 = arith.truncf %18 : vector<128x128xf32> to vector<128x128xbf16>
    %cst_9 = arith.constant dense<0.000000e+00> : vector<128x128xf32>
    %21 = tpu.matmul %20, %19, %cst_9 {dimension_numbers = #tpu.dot_dimension_numbers<[1], [0], [0], [1], [0, 0, 1, 1], [], []>} : vector<128x128xbf16>, vector<128x128xbf16>, vector<128x128xf32> -> vector<128x128xf32>
    %22 = vector.extract_strided_slice %1 {offsets = [2, 0], sizes = [1, 128], strides = [1, 1]} : vector<16x128xf32> to vector<1x128xf32>
    %23 = vector.broadcast %22 : vector<1x128xf32> to vector<128x128xf32>
    %24 = arith.addf %21, %23 : vector<128x128xf32>
    %cst_10 = arith.constant 0.000000e+00 : f32
    %25 = vector.broadcast %cst_10 : f32 to vector<128x128xf32>
    %26 = arith.maximumf %24, %25 : vector<128x128xf32>
    %c144 = arith.constant 144 : index
    %c0_11 = arith.constant 0 : index
    %27 = vector.load %arg5[%c144, %c0_11] : memref<752x128xbf16, #tpu.memory_space<vmem>>, vector<128x128xbf16>
    %28 = arith.truncf %26 : vector<128x128xf32> to vector<128x128xbf16>
    %cst_12 = arith.constant dense<0.000000e+00> : vector<128x128xf32>
    %29 = tpu.matmul %28, %27, %cst_12 {dimension_numbers = #tpu.dot_dimension_numbers<[1], [0], [0], [1], [0, 0, 1, 1], [], []>} : vector<128x128xbf16>, vector<128x128xbf16>, vector<128x128xf32> -> vector<128x128xf32>
    %30 = vector.extract_strided_slice %1 {offsets = [3, 0], sizes = [1, 128], strides = [1, 1]} : vector<16x128xf32> to vector<1x128xf32>
    %31 = vector.broadcast %30 : vector<1x128xf32> to vector<128x128xf32>
    %32 = arith.addf %29, %31 : vector<128x128xf32>
    %c0_13 = arith.constant 0 : index
    %c0_14 = arith.constant 0 : index
    %c0_15 = arith.constant 0 : index
    %33 = vector.load %arg2[%c0_13, %c0_14, %c0_15] : memref<1x240x1xi32, #tpu.memory_space<vmem>>, vector<1x240x1xi32>
    %34 = vector.shape_cast %33 : vector<1x240x1xi32> to vector<240x1xi32>
    %c0_16 = arith.constant 0 : index
    %c0_17 = arith.constant 0 : index
    %c0_18 = arith.constant 0 : index
    %35 = vector.load %arg3[%c0_16, %c0_17, %c0_18] : memref<1x240x1xi32, #tpu.memory_space<vmem>>, vector<1x240x1xi32>
    %36 = vector.shape_cast %35 : vector<1x240x1xi32> to vector<240x1xi32>
    %c0_19 = arith.constant 0 : index
    %c0_20 = arith.constant 0 : index
    %c0_21 = arith.constant 0 : index
    %37 = vector.load %arg4[%c0_19, %c0_20, %c0_21] : memref<1x1x240xi32, #tpu.memory_space<vmem>>, vector<1x1x240xi32>
    %38 = vector.shape_cast %37 : vector<1x1x240xi32> to vector<1x240xi32>
    %39 = tpu.iota {dimensions = array<i32: 1>} : vector<240x128xi32>
    %40 = vector.broadcast %34 : vector<240x1xi32> to vector<240x128xi32>
    %41 = arith.cmpi eq, %39, %40 : vector<240x128xi32>
    %cst_22 = arith.constant 1.000000e+00 : f32
    %cst_23 = arith.constant 0.000000e+00 : f32
    %42 = vector.broadcast %cst_22 : f32 to vector<240x128xf32>
    %43 = vector.broadcast %cst_23 : f32 to vector<240x128xf32>
    %44 = arith.select %41, %42, %43 : vector<240x128xi1>, vector<240x128xf32>
    %45 = arith.truncf %44 : vector<240x128xf32> to vector<240x128xbf16>
    %46 = vector.broadcast %36 : vector<240x1xi32> to vector<240x128xi32>
    %47 = arith.cmpi eq, %39, %46 : vector<240x128xi32>
    %cst_24 = arith.constant 1.000000e+00 : f32
    %cst_25 = arith.constant 0.000000e+00 : f32
    %48 = vector.broadcast %cst_24 : f32 to vector<240x128xf32>
    %49 = vector.broadcast %cst_25 : f32 to vector<240x128xf32>
    %50 = arith.select %47, %48, %49 : vector<240x128xi1>, vector<240x128xf32>
    %51 = arith.truncf %50 : vector<240x128xf32> to vector<240x128xbf16>
    %52 = tpu.iota {dimensions = array<i32: 0>} : vector<128x240xi32>
    %53 = vector.broadcast %38 : vector<1x240xi32> to vector<128x240xi32>
    %54 = arith.cmpi eq, %52, %53 : vector<128x240xi32>
    %cst_26 = arith.constant 1.000000e+00 : f32
    %cst_27 = arith.constant 0.000000e+00 : f32
    %55 = vector.broadcast %cst_26 : f32 to vector<128x240xf32>
    %56 = vector.broadcast %cst_27 : f32 to vector<128x240xf32>
    %57 = arith.select %54, %55, %56 : vector<128x240xi1>, vector<128x240xf32>
    %58 = arith.truncf %57 : vector<128x240xf32> to vector<128x240xbf16>
    %59 = arith.truncf %32 : vector<128x128xf32> to vector<128x128xbf16>
    %cst_28 = arith.constant dense<0.000000e+00> : vector<240x128xf32>
    %60 = tpu.matmul %45, %59, %cst_28 {dimension_numbers = #tpu.dot_dimension_numbers<[1], [0], [0], [1], [0, 0, 1, 1], [], []>} : vector<240x128xbf16>, vector<128x128xbf16>, vector<240x128xf32> -> vector<240x128xf32>
    %61 = arith.truncf %32 : vector<128x128xf32> to vector<128x128xbf16>
    %cst_29 = arith.constant dense<0.000000e+00> : vector<240x128xf32>
    %62 = tpu.matmul %51, %61, %cst_29 {dimension_numbers = #tpu.dot_dimension_numbers<[1], [0], [0], [1], [0, 0, 1, 1], [], []>} : vector<240x128xbf16>, vector<128x128xbf16>, vector<240x128xf32> -> vector<240x128xf32>
    %c208 = arith.constant 208 : index
    %c0_30 = arith.constant 0 : index
    %63 = vector.load %arg5[%c208, %c0_30] : memref<752x128xbf16, #tpu.memory_space<vmem>>, vector<128x128xbf16>
    %64 = arith.truncf %60 : vector<240x128xf32> to vector<240x128xbf16>
    %cst_31 = arith.constant dense<0.000000e+00> : vector<240x128xf32>
    %65 = tpu.matmul %64, %63, %cst_31 {dimension_numbers = #tpu.dot_dimension_numbers<[1], [0], [0], [1], [0, 0, 1, 1], [], []>} : vector<240x128xbf16>, vector<128x128xbf16>, vector<240x128xf32> -> vector<240x128xf32>
    %c240 = arith.constant 240 : index
    %c0_32 = arith.constant 0 : index
    %66 = vector.load %arg5[%c240, %c0_32] : memref<752x128xbf16, #tpu.memory_space<vmem>>, vector<128x128xbf16>
    %67 = arith.truncf %62 : vector<240x128xf32> to vector<240x128xbf16>
    %cst_33 = arith.constant dense<0.000000e+00> : vector<240x128xf32>
    %68 = tpu.matmul %67, %66, %cst_33 {dimension_numbers = #tpu.dot_dimension_numbers<[1], [0], [0], [1], [0, 0, 1, 1], [], []>} : vector<240x128xbf16>, vector<128x128xbf16>, vector<240x128xf32> -> vector<240x128xf32>
    %69 = arith.addf %65, %68 : vector<240x128xf32>
    %70 = vector.extract_strided_slice %1 {offsets = [4, 0], sizes = [1, 128], strides = [1, 1]} : vector<16x128xf32> to vector<1x128xf32>
    %71 = vector.broadcast %70 : vector<1x128xf32> to vector<240x128xf32>
    %72 = arith.addf %69, %71 : vector<240x128xf32>
    %cst_34 = arith.constant 0.000000e+00 : f32
    %73 = vector.broadcast %cst_34 : f32 to vector<240x128xf32>
    %74 = arith.maximumf %72, %73 : vector<240x128xf32>
    %c272 = arith.constant 272 : index
    %c0_35 = arith.constant 0 : index
    %75 = vector.load %arg5[%c272, %c0_35] : memref<752x128xbf16, #tpu.memory_space<vmem>>, vector<128x128xbf16>
    %76 = arith.truncf %74 : vector<240x128xf32> to vector<240x128xbf16>
    %cst_36 = arith.constant dense<0.000000e+00> : vector<240x128xf32>
    %77 = tpu.matmul %76, %75, %cst_36 {dimension_numbers = #tpu.dot_dimension_numbers<[1], [0], [0], [1], [0, 0, 1, 1], [], []>} : vector<240x128xbf16>, vector<128x128xbf16>, vector<240x128xf32> -> vector<240x128xf32>
    %78 = vector.extract_strided_slice %1 {offsets = [5, 0], sizes = [1, 128], strides = [1, 1]} : vector<16x128xf32> to vector<1x128xf32>
    %79 = vector.broadcast %78 : vector<1x128xf32> to vector<240x128xf32>
    %80 = arith.addf %77, %79 : vector<240x128xf32>
    %81 = arith.truncf %80 : vector<240x128xf32> to vector<240x128xbf16>
    %cst_37 = arith.constant dense<0.000000e+00> : vector<128x128xf32>
    %82 = tpu.matmul %58, %81, %cst_37 {dimension_numbers = #tpu.dot_dimension_numbers<[1], [0], [0], [1], [0, 0, 1, 1], [], []>} : vector<128x240xbf16>, vector<240x128xbf16>, vector<128x128xf32> -> vector<128x128xf32>
    %c336 = arith.constant 336 : index
    %c0_38 = arith.constant 0 : index
    %83 = vector.load %arg5[%c336, %c0_38] : memref<752x128xbf16, #tpu.memory_space<vmem>>, vector<128x128xbf16>
    %84 = arith.truncf %32 : vector<128x128xf32> to vector<128x128xbf16>
    %cst_39 = arith.constant dense<0.000000e+00> : vector<128x128xf32>
    %85 = tpu.matmul %84, %83, %cst_39 {dimension_numbers = #tpu.dot_dimension_numbers<[1], [0], [0], [1], [0, 0, 1, 1], [], []>} : vector<128x128xbf16>, vector<128x128xbf16>, vector<128x128xf32> -> vector<128x128xf32>
    %c368 = arith.constant 368 : index
    %c0_40 = arith.constant 0 : index
    %86 = vector.load %arg5[%c368, %c0_40] : memref<752x128xbf16, #tpu.memory_space<vmem>>, vector<128x128xbf16>
    %87 = arith.truncf %82 : vector<128x128xf32> to vector<128x128xbf16>
    %cst_41 = arith.constant dense<0.000000e+00> : vector<128x128xf32>
    %88 = tpu.matmul %87, %86, %cst_41 {dimension_numbers = #tpu.dot_dimension_numbers<[1], [0], [0], [1], [0, 0, 1, 1], [], []>} : vector<128x128xbf16>, vector<128x128xbf16>, vector<128x128xf32> -> vector<128x128xf32>
    %89 = arith.addf %85, %88 : vector<128x128xf32>
    %90 = vector.extract_strided_slice %1 {offsets = [6, 0], sizes = [1, 128], strides = [1, 1]} : vector<16x128xf32> to vector<1x128xf32>
    %91 = vector.broadcast %90 : vector<1x128xf32> to vector<128x128xf32>
    %92 = arith.addf %89, %91 : vector<128x128xf32>
    %cst_42 = arith.constant 0.000000e+00 : f32
    %93 = vector.broadcast %cst_42 : f32 to vector<128x128xf32>
    %94 = arith.maximumf %92, %93 : vector<128x128xf32>
    %c400 = arith.constant 400 : index
    %c0_43 = arith.constant 0 : index
    %95 = vector.load %arg5[%c400, %c0_43] : memref<752x128xbf16, #tpu.memory_space<vmem>>, vector<128x128xbf16>
    %96 = arith.truncf %94 : vector<128x128xf32> to vector<128x128xbf16>
    %cst_44 = arith.constant dense<0.000000e+00> : vector<128x128xf32>
    %97 = tpu.matmul %96, %95, %cst_44 {dimension_numbers = #tpu.dot_dimension_numbers<[1], [0], [0], [1], [0, 0, 1, 1], [], []>} : vector<128x128xbf16>, vector<128x128xbf16>, vector<128x128xf32> -> vector<128x128xf32>
    %98 = vector.extract_strided_slice %1 {offsets = [7, 0], sizes = [1, 128], strides = [1, 1]} : vector<16x128xf32> to vector<1x128xf32>
    %99 = vector.broadcast %98 : vector<1x128xf32> to vector<128x128xf32>
    %100 = arith.addf %97, %99 : vector<128x128xf32>
    %101 = arith.addf %32, %100 : vector<128x128xf32>
    %c464 = arith.constant 464 : index
    %c0_45 = arith.constant 0 : index
    %102 = vector.load %arg5[%c464, %c0_45] : memref<752x128xbf16, #tpu.memory_space<vmem>>, vector<128x128xbf16>
    %103 = arith.truncf %101 : vector<128x128xf32> to vector<128x128xbf16>
    %cst_46 = arith.constant dense<0.000000e+00> : vector<128x128xf32>
    %104 = tpu.matmul %103, %102, %cst_46 {dimension_numbers = #tpu.dot_dimension_numbers<[1], [0], [0], [1], [0, 0, 1, 1], [], []>} : vector<128x128xbf16>, vector<128x128xbf16>, vector<128x128xf32> -> vector<128x128xf32>
    %105 = vector.extract_strided_slice %1 {offsets = [8, 0], sizes = [1, 128], strides = [1, 1]} : vector<16x128xf32> to vector<1x128xf32>
    %106 = vector.broadcast %105 : vector<1x128xf32> to vector<128x128xf32>
    %107 = arith.addf %104, %106 : vector<128x128xf32>
    %cst_47 = arith.constant 0.000000e+00 : f32
    %108 = vector.broadcast %cst_47 : f32 to vector<128x128xf32>
    %109 = arith.maximumf %107, %108 : vector<128x128xf32>
    %c496 = arith.constant 496 : index
    %c0_48 = arith.constant 0 : index
    %110 = vector.load %arg5[%c496, %c0_48] : memref<752x128xbf16, #tpu.memory_space<vmem>>, vector<128x128xbf16>
    %111 = arith.truncf %109 : vector<128x128xf32> to vector<128x128xbf16>
    %cst_49 = arith.constant dense<0.000000e+00> : vector<128x128xf32>
    %112 = tpu.matmul %111, %110, %cst_49 {dimension_numbers = #tpu.dot_dimension_numbers<[1], [0], [0], [1], [0, 0, 1, 1], [], []>} : vector<128x128xbf16>, vector<128x128xbf16>, vector<128x128xf32> -> vector<128x128xf32>
    %113 = vector.extract_strided_slice %1 {offsets = [9, 0], sizes = [1, 128], strides = [1, 1]} : vector<16x128xf32> to vector<1x128xf32>
    %114 = vector.broadcast %113 : vector<1x128xf32> to vector<128x128xf32>
    %115 = arith.addf %112, %114 : vector<128x128xf32>
    %cst_50 = arith.constant 0.000000e+00 : f32
    %116 = vector.broadcast %cst_50 : f32 to vector<128x128xf32>
    %117 = arith.maximumf %115, %116 : vector<128x128xf32>
    %c560 = arith.constant 560 : index
    %c0_51 = arith.constant 0 : index
    %118 = vector.load %arg5[%c560, %c0_51] : memref<752x128xbf16, #tpu.memory_space<vmem>>, vector<128x128xbf16>
    %119 = arith.truncf %117 : vector<128x128xf32> to vector<128x128xbf16>
    %cst_52 = arith.constant dense<0.000000e+00> : vector<128x128xf32>
    %120 = tpu.matmul %119, %118, %cst_52 {dimension_numbers = #tpu.dot_dimension_numbers<[1], [0], [0], [1], [0, 0, 1, 1], [], []>} : vector<128x128xbf16>, vector<128x128xbf16>, vector<128x128xf32> -> vector<128x128xf32>
    %121 = vector.extract_strided_slice %1 {offsets = [10, 0], sizes = [1, 128], strides = [1, 1]} : vector<16x128xf32> to vector<1x128xf32>
    %122 = vector.broadcast %121 : vector<1x128xf32> to vector<128x128xf32>
    %123 = arith.addf %120, %122 : vector<128x128xf32>
    %cst_53 = arith.constant 0.000000e+00 : f32
    %124 = vector.broadcast %cst_53 : f32 to vector<128x128xf32>
    %125 = arith.maximumf %123, %124 : vector<128x128xf32>
    %c624 = arith.constant 624 : index
    %c0_54 = arith.constant 0 : index
    %126 = vector.load %arg5[%c624, %c0_54] : memref<752x128xbf16, #tpu.memory_space<vmem>>, vector<128x128xbf16>
    %127 = arith.truncf %125 : vector<128x128xf32> to vector<128x128xbf16>
    %cst_55 = arith.constant dense<0.000000e+00> : vector<128x128xf32>
    %128 = tpu.matmul %127, %126, %cst_55 {dimension_numbers = #tpu.dot_dimension_numbers<[1], [0], [0], [1], [0, 0, 1, 1], [], []>} : vector<128x128xbf16>, vector<128x128xbf16>, vector<128x128xf32> -> vector<128x128xf32>
    %129 = vector.extract_strided_slice %1 {offsets = [11, 0], sizes = [1, 128], strides = [1, 1]} : vector<16x128xf32> to vector<1x128xf32>
    %130 = vector.broadcast %129 : vector<1x128xf32> to vector<128x128xf32>
    %131 = arith.addf %128, %130 : vector<128x128xf32>
    %c0_56 = arith.constant 0 : index
    %c0_57 = arith.constant 0 : index
    %132 = vector.load %arg6[%c0_56, %c0_57] : memref<128x128xf32, #tpu.memory_space<vmem>>, vector<128x128xf32>
    tpu.vector_store %arg6[%c0_56, %c0_57], %131 {strides = array<i32>} : memref<128x128xf32, #tpu.memory_space<vmem>>, vector<128x128xf32>,
    return
  }
  func.func @transform_0(%arg0: i32) -> (i32, i32) {
    %c0_i32 = arith.constant 0 : i32
    %c0_i32_0 = arith.constant 0 : i32
    return %arg0, %c0_i32 : i32, i32
  }
  func.func @transform_1(%arg0: i32) -> (i32, i32, i32) {
    %c0_i32 = arith.constant 0 : i32
    %c0_i32_0 = arith.constant 0 : i32
    %c0_i32_1 = arith.constant 0 : i32
    return %arg0, %c0_i32, %c0_i32_0 : i32, i32, i32
  }
  func.func @transform_2(%arg0: i32) -> (i32, i32, i32) {
    %c0_i32 = arith.constant 0 : i32
    %c0_i32_0 = arith.constant 0 : i32
    %c0_i32_1 = arith.constant 0 : i32
    return %arg0, %c0_i32, %c0_i32_0 : i32, i32, i32
  }
  func.func @transform_3(%arg0: i32) -> (i32, i32, i32) {
    %c0_i32 = arith.constant 0 : i32
    %c0_i32_0 = arith.constant 0 : i32
    %c0_i32_1 = arith.constant 0 : i32
    return %arg0, %c0_i32, %c0_i32_0 : i32, i32, i32
  }
  func.func @transform_4(%arg0: i32) -> (i32, i32) {
    %c0_i32 = arith.constant 0 : i32
    %c0_i32_0 = arith.constant 0 : i32
    %c0_i32_1 = arith.constant 0 : i32
    return %c0_i32, %c0_i32_0 : i32, i32
  }
  func.func @transform_5(%arg0: i32) -> (i32, i32) {
    %c0_i32 = arith.constant 0 : i32
    %c0_i32_0 = arith.constant 0 : i32
    return %arg0, %c0_i32 : i32, i32
  }
}

</mosaic_0001>

<llo_original>
// kernel: pose_graph_prediction_net.1
$region0: #{pose_graph_prediction_net.1}
  #allocation0 [shape = 'u32[]', space=smem, size = 0x4, offset = 0x4, fixed_abs, tag = 'smem constant byte address 0x4 - core index']
  #allocation1 [shape = 'u32[72,128]{1,0:T(1,128)}', space=vmem, size = 0x9000, scoped, tag = 'internal scratch']
  %s0 = inlined_call_operand.vmem [shape: f32[256,16], index: 0, kind: input, shape index: {}]
  %s1 = inlined_call_operand.vmem [shape: s32[2,240,1], index: 1, kind: input, shape index: {}]
  %s2 = inlined_call_operand.vmem [shape: s32[2,240,1], index: 2, kind: input, shape index: {}]
  %s3 = inlined_call_operand.vmem [shape: s32[2,1,240], index: 3, kind: input, shape index: {}]
  %s4 = inlined_call_operand.vmem [shape: bf16[752,128], index: 4, kind: input, shape index: {}]
  %s5 = inlined_call_operand.vmem [shape: f32[256,128], index: 5, kind: output, shape index: {}]
  %s6 = sld [smem:[#allocation0]]
  $region53: #{pose_graph_prediction_net.1} parent=0
    _
  %s8 = ssub.s32 1, %s6
  %s9 = scalar_select 0, %s8, %s6
  loop: start=0, step=1, limit=4
  $region2: #{pose_graph_prediction_net.1} parent=0 // loop_pre_header
    _
  $region3: #{pose_graph_prediction_net.1} parent=0 // loop_header
    %s11 = sphi 0, %s15
    %p12 = scmp.ge.s32.totalorder %s11, 4
    %s21 = sphi 0, %s23
    %s24 = sphi 0, %s21
    %s25 = sphi 0, %s24
    %s41 = sphi 0, %s25
    %s47 = sphi 0, %s49
    %s50 = sphi 0, %s47
    %s51 = sphi 0, %s50
    %s67 = sphi 0, %s51
    %s73 = sphi 0, %s75
    %s76 = sphi 0, %s73
    %s77 = sphi 0, %s76
    %s93 = sphi 0, %s77
    %s99 = sphi 0, %s101
    %s102 = sphi 0, %s99
    %s103 = sphi 0, %s102
    %s119 = sphi 0, %s103
    %s123 = sphi 0, %s123
    %s125 = sphi 0, %s123
    %s126 = sphi 0, %s125
    %s140 = sphi 0, %s126
    %s146 = sphi 0, %s148
    %s149 = sphi 0, %s146
    %s150 = sphi 0, %s149
    %s166 = sphi 0, %s150
  $region4: #{pose_graph_prediction_net.1} parent=0 // loop_header_branch
    %14 = sbr.rel (%p12) target = $region8
  $region5: #{pose_graph_prediction_net.1} parent=0 // loop_body
    %s16 = ssub.s32 %s11, 1
    %s17 = ssub.s32 %s11, 2
    %s18 = sadd.s32 %s11, 1
    %s19 = ssub.s32 %s11, %s18
    %p20 = scmp.eq.s32.totalorder %s19, 0
    %s22 = sadd.s32 %s21, 1
    %s23 = scalar_select %p20, %s21, %s22
    %p26 = pneg %p20
    %p27 = scmp.eq.s32.totalorder %s11, 1
    %p28 = por %p26, %p27
    %p29 = scmp.ne.s32.totalorder %s21, %s24
    %p30 = scmp.eq.s32.totalorder %s11, 0
    %p31 = por %p29, %p30
    %p32 = scmp.ne.s32.totalorder %s21, %s24
    %p33 = scmp.eq.s32.totalorder %s16, 1
    %p34 = por %p32, %p33
    %p35 = scmp.ne.s32.totalorder %s24, %s25
    %p36 = scmp.eq.s32.totalorder %s16, 0
    %p37 = por %p35, %p36
    %p38 = scmp.ne.s32.totalorder %s24, %s25
    %p39 = scmp.eq.s32.totalorder %s17, 1
    %p40 = por %p38, %p39
    %p42 = scmp.ne.s32.totalorder %s25, %s41
    %p43 = scmp.eq.s32.totalorder %s17, 0
    %p44 = por %p42, %p43
    %s45 = ssub.s32 %s11, %s18
    %p46 = scmp.eq.s32.totalorder %s45, 0
    %s48 = sadd.s32 %s47, 1
    %s49 = scalar_select %p46, %s47, %s48
    %p52 = pneg %p46
    %p53 = scmp.eq.s32.totalorder %s11, 1
    %p54 = por %p52, %p53
    %p55 = scmp.ne.s32.totalorder %s47, %s50
    %p56 = scmp.eq.s32.totalorder %s11, 0
    %p57 = por %p55, %p56
    %p58 = scmp.ne.s32.totalorder %s47, %s50
    %p59 = scmp.eq.s32.totalorder %s16, 1
    %p60 = por %p58, %p59
    %p61 = scmp.ne.s32.totalorder %s50, %s51
    %p62 = scmp.eq.s32.totalorder %s16, 0
    %p63 = por %p61, %p62
    %p64 = scmp.ne.s32.totalorder %s50, %s51
    %p65 = scmp.eq.s32.totalorder %s17, 1
    %p66 = por %p64, %p65
    %p68 = scmp.ne.s32.totalorder %s51, %s67
    %p69 = scmp.eq.s32.totalorder %s17, 0
    %p70 = por %p68, %p69
    %s71 = ssub.s32 %s11, %s18
    %p72 = scmp.eq.s32.totalorder %s71, 0
    %s74 = sadd.s32 %s73, 1
    %s75 = scalar_select %p72, %s73, %s74
    %p78 = pneg %p72
    %p79 = scmp.eq.s32.totalorder %s11, 1
    %p80 = por %p78, %p79
    %p81 = scmp.ne.s32.totalorder %s73, %s76
    %p82 = scmp.eq.s32.totalorder %s11, 0
    %p83 = por %p81, %p82
    %p84 = scmp.ne.s32.totalorder %s73, %s76
    %p85 = scmp.eq.s32.totalorder %s16, 1
    %p86 = por %p84, %p85
    %p87 = scmp.ne.s32.totalorder %s76, %s77
    %p88 = scmp.eq.s32.totalorder %s16, 0
    %p89 = por %p87, %p88
    %p90 = scmp.ne.s32.totalorder %s76, %s77
    %p91 = scmp.eq.s32.totalorder %s17, 1
    %p92 = por %p90, %p91
    %p94 = scmp.ne.s32.totalorder %s77, %s93
    %p95 = scmp.eq.s32.totalorder %s17, 0
    %p96 = por %p94, %p95
    %s97 = ssub.s32 %s11, %s18
    %p98 = scmp.eq.s32.totalorder %s97, 0
    %s100 = sadd.s32 %s99, 1
    %s101 = scalar_select %p98, %s99, %s100
    %p104 = pneg %p98
    %p105 = scmp.eq.s32.totalorder %s11, 1
    %p106 = por %p104, %p105
    %p107 = scmp.ne.s32.totalorder %s99, %s102
    %p108 = scmp.eq.s32.totalorder %s11, 0
    %p109 = por %p107, %p108
    %p110 = scmp.ne.s32.totalorder %s99, %s102
    %p111 = scmp.eq.s32.totalorder %s16, 1
    %p112 = por %p110, %p111
    %p113 = scmp.ne.s32.totalorder %s102, %s103
    %p114 = scmp.eq.s32.totalorder %s16, 0
    %p115 = por %p113, %p114
    %p116 = scmp.ne.s32.totalorder %s102, %s103
    %p117 = scmp.eq.s32.totalorder %s17, 1
    %p118 = por %p116, %p117
    %p120 = scmp.ne.s32.totalorder %s103, %s119
    %p121 = scmp.eq.s32.totalorder %s17, 0
    %p122 = por %p120, %p121
    %s124 = sadd.s32 %s123, 1
    %p127 = scmp.eq.s32.totalorder %s11, 1
    %p128 = scmp.ne.s32.totalorder %s123, %s125
    %p129 = scmp.eq.s32.totalorder %s11, 0
    %p130 = por %p128, %p129
    %p131 = scmp.ne.s32.totalorder %s123, %s125
    %p132 = scmp.eq.s32.totalorder %s16, 1
    %p133 = por %p131, %p132
    %p134 = scmp.ne.s32.totalorder %s125, %s126
    %p135 = scmp.eq.s32.totalorder %s16, 0
    %p136 = por %p134, %p135
    %p137 = scmp.ne.s32.totalorder %s125, %s126
    %p138 = scmp.eq.s32.totalorder %s17, 1
    %p139 = por %p137, %p138
    %p141 = scmp.ne.s32.totalorder %s126, %s140
    %p142 = scmp.eq.s32.totalorder %s17, 0
    %p143 = por %p141, %p142
    %s144 = ssub.s32 %s11, %s18
    %p145 = scmp.eq.s32.totalorder %s144, 0
    %s147 = sadd.s32 %s146, 1
    %s148 = scalar_select %p145, %s146, %s147
    %p151 = pneg %p145
    %p152 = scmp.eq.s32.totalorder %s11, 1
    %p153 = por %p151, %p152
    %p154 = scmp.ne.s32.totalorder %s146, %s149
    %p155 = scmp.eq.s32.totalorder %s11, 0
    %p156 = por %p154, %p155
    %p157 = scmp.ne.s32.totalorder %s146, %s149
    %p158 = scmp.eq.s32.totalorder %s16, 1
    %p159 = por %p157, %p158
    %p160 = scmp.ne.s32.totalorder %s149, %s150
    %p161 = scmp.eq.s32.totalorder %s16, 0
    %p162 = por %p160, %p161
    %p163 = scmp.ne.s32.totalorder %s149, %s150
    %p164 = scmp.eq.s32.totalorder %s17, 1
    %p165 = por %p163, %p164
    %p167 = scmp.ne.s32.totalorder %s150, %s166
    %p168 = scmp.eq.s32.totalorder %s17, 0
    %p169 = por %p167, %p168
    %p170 = scmp.le.s32.totalorder 1, %s11
    %p171 = scmp.lt.s32.totalorder %s11, 3
    %p172 = pnand %p170, %p171
    %p173 = pneg %p172
    // Predicated region
    $region9: #{pose_graph_prediction_net.1} parent=5 // pred_check
      _
    $region10: #{pose_graph_prediction_net.1} parent=5 // pred_check_branch
      %175 = sbr.rel (%p172) target = $region12
    $region11: #{pose_graph_prediction_net.1} parent=5 // pred_region
      %s176 = ssub.s32 %s11, 1
      // Predicated region
      $region13: #{pose_graph_prediction_net.1} parent=11 // pred_check
        %p177 = pneg %p136
      $region14: #{pose_graph_prediction_net.1} parent=11 // pred_check_branch
        %179 = sbr.rel (%p177) target = $region16
      $region15: #{pose_graph_prediction_net.1} parent=11 // pred_region
        _
      $region16: #{pose_graph_prediction_net.1} parent=11 // pred_fallthru
        _
    $region12: #{pose_graph_prediction_net.1} parent=5 // pred_fallthru
      _
    %p180 = scmp.lt.s32.totalorder %s11, 2
    // Predicated region
    $region17: #{pose_graph_prediction_net.1} parent=5 // pred_check
      %p181 = pneg %p180
    $region18: #{pose_graph_prediction_net.1} parent=5 // pred_check_branch
      %183 = sbr.rel (%p181) target = $region20
    $region19: #{pose_graph_prediction_net.1} parent=5 // pred_region
      // Predicated region
      $region21: #{pose_graph_prediction_net.1} parent=19 // pred_check
        %p184 = pneg %p31
      $region22: #{pose_graph_prediction_net.1} parent=19 // pred_check_branch
        %186 = sbr.rel (%p184) target = $region24
      $region23: #{pose_graph_prediction_net.1} parent=19 // pred_region
        %s187 = smul.u32 16, %s11
        %p188 = scmp.lt.s32.totalorder %s187, 31
        %s189 = scalar_select %p188, %s187, 31
        %s190 = smul.addr %s189, 8
        %s191 = scalar_lea.vmem %s0, %s190
        %s192 = smul.u32 16, %s11
      $region24: #{pose_graph_prediction_net.1} parent=19 // pred_fallthru
        _
      // Predicated region
      $region25: #{pose_graph_prediction_net.1} parent=19 // pred_check
        %p193 = pneg %p57
      $region26: #{pose_graph_prediction_net.1} parent=19 // pred_check_branch
        %195 = sbr.rel (%p193) target = $region28
      $region27: #{pose_graph_prediction_net.1} parent=19 // pred_region
        %p196 = scmp.lt.s32.totalorder %s11, 1
        %s197 = scalar_select %p196, %s11, 1
        %s198 = smul.addr %s197, 30
        %s199 = smul.addr %s198, 8
        %s200 = scalar_lea.vmem %s1, %s199
      $region28: #{pose_graph_prediction_net.1} parent=19 // pred_fallthru
        _
      // Predicated region
      $region29: #{pose_graph_prediction_net.1} parent=19 // pred_check
        %p201 = pneg %p83
      $region30: #{pose_graph_prediction_net.1} parent=19 // pred_check_branch
        %203 = sbr.rel (%p201) target = $region32
      $region31: #{pose_graph_prediction_net.1} parent=19 // pred_region
        %p204 = scmp.lt.s32.totalorder %s11, 1
        %s205 = scalar_select %p204, %s11, 1
        %s206 = smul.addr %s205, 30
        %s207 = smul.addr %s206, 8
        %s208 = scalar_lea.vmem %s2, %s207
      $region32: #{pose_graph_prediction_net.1} parent=19 // pred_fallthru
        _
      // Predicated region
      $region33: #{pose_graph_prediction_net.1} parent=19 // pred_check
        %p209 = pneg %p109
      $region34: #{pose_graph_prediction_net.1} parent=19 // pred_check_branch
        %211 = sbr.rel (%p209) target = $region36
      $region35: #{pose_graph_prediction_net.1} parent=19 // pred_region
        %p212 = scmp.lt.s32.totalorder %s11, 1
        %s213 = scalar_select %p212, %s11, 1
        %s214 = smul.addr %s213, 2
        %s215 = scalar_lea.vmem %s3, %s214
      $region36: #{pose_graph_prediction_net.1} parent=19 // pred_fallthru
        _
    $region20: #{pose_graph_prediction_net.1} parent=5 // pred_fallthru
      _
    %p216 = scmp.le.s32.totalorder 1, %s11
    %p217 = scmp.lt.s32.totalorder %s11, 3
    %p218 = pnand %p216, %p217
    %p219 = pneg %p218
    // Predicated region
    $region37: #{pose_graph_prediction_net.1} parent=5 // pred_check
      _
    $region38: #{pose_graph_prediction_net.1} parent=5 // pred_check_branch
      %221 = sbr.rel (%p218) target = $region40
    $region39: #{pose_graph_prediction_net.1} parent=5 // pred_region
      %s222 = ssub.s32 %s11, 1
      %s223 = smul.u32 16, %s16
      %p224 = scmp.lt.s32.totalorder %s223, 31
      %s225 = scalar_select %p224, %s223, 31
      %s226 = smul.addr %s225, 8
      %s227 = scalar_lea.vmem %s0, %s226
      %p228 = pneg %p37
      %p229 = pneg %p34
      %p230 = scmp.lt.s32.totalorder %s16, 1
      %s231 = scalar_select %p230, %s16, 1
      %s232 = smul.addr %s231, 30
      %s233 = smul.addr %s232, 8
      %s234 = scalar_lea.vmem %s1, %s233
      %p235 = pneg %p63
      %p236 = pneg %p60
      %p237 = scmp.lt.s32.totalorder %s16, 1
      %s238 = scalar_select %p237, %s16, 1
      %s239 = smul.addr %s238, 30
      %s240 = smul.addr %s239, 8
      %s241 = scalar_lea.vmem %s2, %s240
      %p242 = pneg %p89
      %p243 = pneg %p86
      %p244 = scmp.lt.s32.totalorder %s16, 1
      %s245 = scalar_select %p244, %s16, 1
      %s246 = smul.addr %s245, 2
      %s247 = scalar_lea.vmem %s3, %s246
      %p248 = pneg %p115
      %p249 = pneg %p112
      %p250 = pneg %p136
      %p251 = pneg %p133
      %p252 = pneg %p162
      %p253 = pneg %p159
      %s254 = smul.u32 16, %s16
      %p255 = scmp.lt.s32.totalorder %s254, 31
      %s256 = scalar_select %p255, %s254, 31
      %s257 = smul.addr %s256, 8
      %s258 = scalar_lea.vmem %s5, %s257
      %s259 = smul.u32 16, %s16
      %p260 = scmp.lt.s32.totalorder %s259, 31
      %s261 = scalar_select %p260, %s259, 31
      %s262 = smul.addr %s261, 8
      %s263 = scalar_lea.vmem %s0, %s262
      %s264 = smul.u32 16, %s16
      %p265 = scmp.lt.s32.totalorder %s16, 1
      %s266 = scalar_select %p265, %s16, 1
      %s267 = smul.addr %s266, 30
      %s268 = smul.addr %s267, 8
      %s269 = scalar_lea.vmem %s1, %s268
      %p270 = scmp.lt.s32.totalorder %s16, 1
      %s271 = scalar_select %p270, %s16, 1
      %s272 = smul.addr %s271, 30
      %s273 = smul.addr %s272, 8
      %s274 = scalar_lea.vmem %s2, %s273
      %p275 = scmp.lt.s32.totalorder %s16, 1
      %s276 = scalar_select %p275, %s16, 1
      %s277 = smul.addr %s276, 2
      %s278 = scalar_lea.vmem %s3, %s277
      %s279 = smul.u32 16, %s16
      %p280 = scmp.lt.s32.totalorder %s279, 31
      %s281 = scalar_select %p280, %s279, 31
      %s282 = smul.addr %s281, 8
      %s283 = scalar_lea.vmem %s5, %s282
      %s284 = smul.u32 16, %s16
      %v286 = vld [vmem:[%s4 + $0x158] sm:$0xf]
      %v287 = vld [vmem:[%s4 + $0x15c] sm:$0xf]
      %v288 = vunpack.c.l.bf16 %v286
      %v289 = vunpack.c.l.bf16 %v287
      %v290 = vld [vmem:[%s263] sm:$0xff]
      %v291 = vld [vmem:[%s263 + $0x8] sm:$0xff]
      %v292 = vld [vmem:[%s263 + $0x10] sm:$0xff]
      %v293 = vld [vmem:[%s263 + $0x18] sm:$0xff]
      %v294 = vld [vmem:[%s263 + $0x20] sm:$0xff]
      %v295 = vld [vmem:[%s263 + $0x28] sm:$0xff]
      %v296 = vld [vmem:[%s263 + $0x30] sm:$0xff]
      %v297 = vld [vmem:[%s263 + $0x38] sm:$0xff]
      %v298 = vld [vmem:[%s263 + $0x40] sm:$0xff]
      %v299 = vld [vmem:[%s263 + $0x48] sm:$0xff]
      %v300 = vld [vmem:[%s263 + $0x50] sm:$0xff]
      %v301 = vld [vmem:[%s263 + $0x58] sm:$0xff]
      %v302 = vld [vmem:[%s263 + $0x60] sm:$0xff]
      %v303 = vld [vmem:[%s263 + $0x68] sm:$0xff]
      %v304 = vld [vmem:[%s263 + $0x70] sm:$0xff]
      %v305 = vld [vmem:[%s263 + $0x78] sm:$0xff]
      %v306 = vld [vmem:[%s4] sm:$0xf]
      %v307 = vld [vmem:[%s4 + $0x4] sm:$0xf]
      %v308 = vpack.c.bf16 %v291, %v290
      %v309 = vpack.c.bf16 %v293, %v292
      %v310 = vpack.c.bf16 %v295, %v294
      %v311 = vpack.c.bf16 %v297, %v296
      %v312 = vpack.c.bf16 %v299, %v298
      %v313 = vpack.c.bf16 %v301, %v300
      %v314 = vpack.c.bf16 %v303, %v302
      %v315 = vpack.c.bf16 %v305, %v304
      %v316 = vperm.slane %v288, 0
      %v319 = vunpack.c.l.b16 %v306
      %v320 = vunpack.c.l.b16 %v307
      %v321 = vpack.c.b16 %v320, %v319
      %vm323 = vcmask 130048
      %v325 = vsel %vm323, %v308, 0
      %v328 = vsel %vm323, %v309, 0
      %v331 = vsel %vm323, %v310, 0
      %v334 = vsel %vm323, %v311, 0
      %v337 = vsel %vm323, %v312, 0
      %v340 = vsel %vm323, %v313, 0
      %v343 = vsel %vm323, %v314, 0
      %v346 = vsel %vm323, %v315, 0
      %348 = vmatpush.bf16.msra.mxu0 0
      %349 = vmatpush.bf16.msra.mxu0 0
      %350 = vmatpush.bf16.msra.mxu0 0
      %351 = vmatpush.bf16.msra.mxu0 0
      %352 = vmatpush.bf16.msra.mxu0 0
      %353 = vmatpush.bf16.msra.mxu0 0
      %354 = vmatpush.bf16.msra.mxu0 0
      %355 = vmatpush.bf16.msra.mxu0 %v321
      %356 = vmatmul.bf16.gmra.mxu0 %v325
      %v357 = vpop.f32.mrf.mxu0
      %v358 = vadd.f32 %v316, %v357
      %v359 = vpop.f32.mrf.mxu0
      %v360 = vadd.f32 %v316, %v359
      %361 = vmatmul.bf16.gmra.mxu0 %v328
      %v362 = vpop.f32.mrf.mxu0
      %v363 = vadd.f32 %v316, %v362
      %v364 = vpop.f32.mrf.mxu0
      %v365 = vadd.f32 %v316, %v364
      %366 = vmatmul.bf16.gmra.mxu0 %v331
      %v367 = vpop.f32.mrf.mxu0
      %v368 = vadd.f32 %v316, %v367
      %v369 = vpop.f32.mrf.mxu0
      %v370 = vadd.f32 %v316, %v369
      %371 = vmatmul.bf16.gmra.mxu0 %v334
      %v372 = vpop.f32.mrf.mxu0
      %v373 = vadd.f32 %v316, %v372
      %v374 = vpop.f32.mrf.mxu0
      %v375 = vadd.f32 %v316, %v374
      %376 = vmatmul.bf16.gmra.mxu0 %v337
      %v377 = vpop.f32.mrf.mxu0
      %v378 = vadd.f32 %v316, %v377
      %v379 = vpop.f32.mrf.mxu0
      %v380 = vadd.f32 %v316, %v379
      %381 = vmatmul.bf16.gmra.mxu0 %v340
      %v382 = vpop.f32.mrf.mxu0
      %v383 = vadd.f32 %v316, %v382
      %v384 = vpop.f32.mrf.mxu0
      %v385 = vadd.f32 %v316, %v384
      %386 = vmatmul.bf16.gmra.mxu0 %v343
      %v387 = vpop.f32.mrf.mxu0
      %v388 = vadd.f32 %v316, %v387
      %v389 = vpop.f32.mrf.mxu0
      %v390 = vadd.f32 %v316, %v389
      %391 = vmatmul.bf16.gmra.mxu0 %v346
      %v392 = vpop.f32.mrf.mxu0
      %v393 = vadd.f32 %v316, %v392
      %v394 = vpop.f32.mrf.mxu0
      %v395 = vadd.f32 %v316, %v394
      %396 = vdwg.mxu0
      %v397 = vmax.f32 %v358, 0.0
      %v398 = vmax.f32 %v360, 0.0
      %v399 = vmax.f32 %v363, 0.0
      %v400 = vmax.f32 %v365, 0.0
      %v401 = vmax.f32 %v368, 0.0
      %v402 = vmax.f32 %v370, 0.0
      %v403 = vmax.f32 %v373, 0.0
      %v404 = vmax.f32 %v375, 0.0
      %v405 = vmax.f32 %v378, 0.0
      %v406 = vmax.f32 %v380, 0.0
      %v407 = vmax.f32 %v383, 0.0
      %v408 = vmax.f32 %v385, 0.0
      %v409 = vmax.f32 %v388, 0.0
      %v410 = vmax.f32 %v390, 0.0
      %v411 = vmax.f32 %v393, 0.0
      %v412 = vmax.f32 %v395, 0.0
      %v413 = vld [vmem:[%s4 + $0x8] sm:$0xf]
      %v414 = vld [vmem:[%s4 + $0xc] sm:$0xf]
      %v415 = vld [vmem:[%s4 + $0x10] sm:$0xf]
      %v416 = vld [vmem:[%s4 + $0x14] sm:$0xf]
      %v417 = vld [vmem:[%s4 + $0x18] sm:$0xf]
      %v418 = vld [vmem:[%s4 + $0x1c] sm:$0xf]
      %v419 = vld [vmem:[%s4 + $0x20] sm:$0xf]
      %v420 = vld [vmem:[%s4 + $0x24] sm:$0xf]
      %v421 = vld [vmem:[%s4 + $0x28] sm:$0xf]
      %v422 = vld [vmem:[%s4 + $0x2c] sm:$0xf]
      %v423 = vld [vmem:[%s4 + $0x30] sm:$0xf]
      %v424 = vld [vmem:[%s4 + $0x34] sm:$0xf]
      %v425 = vld [vmem:[%s4 + $0x38] sm:$0xf]
      %v426 = vld [vmem:[%s4 + $0x3c] sm:$0xf]
      %v427 = vld [vmem:[%s4 + $0x40] sm:$0xf]
      %v428 = vld [vmem:[%s4 + $0x44] sm:$0xf]
      %v429 = vpack.c.bf16 %v398, %v397
      %v430 = vpack.c.bf16 %v400, %v399
      %v431 = vpack.c.bf16 %v402, %v401
      %v432 = vpack.c.bf16 %v404, %v403
      %v433 = vpack.c.bf16 %v406, %v405
      %v434 = vpack.c.bf16 %v408, %v407
      %v435 = vpack.c.bf16 %v410, %v409
      %v436 = vpack.c.bf16 %v412, %v411
      %v437 = vperm.slane %v288, 1
      %v454 = vunpack.c.l.b16 %v413
      %v455 = vunpack.c.l.b16 %v414
      %v456 = vunpack.c.l.b16 %v415
      %v457 = vunpack.c.l.b16 %v416
      %v458 = vunpack.c.l.b16 %v417
      %v459 = vunpack.c.l.b16 %v418
      %v460 = vunpack.c.l.b16 %v419
      %v461 = vunpack.c.l.b16 %v420
      %v462 = vunpack.c.l.b16 %v421
      %v463 = vunpack.c.l.b16 %v422
      %v464 = vunpack.c.l.b16 %v423
      %v465 = vunpack.c.l.b16 %v424
      %v466 = vunpack.c.l.b16 %v425
      %v467 = vunpack.c.l.b16 %v426
      %v468 = vunpack.c.l.b16 %v427
      %v469 = vunpack.c.l.b16 %v428
      %v470 = vpack.c.b16 %v455, %v454
      %v471 = vpack.c.b16 %v457, %v456
      %v472 = vpack.c.b16 %v459, %v458
      %v473 = vpack.c.b16 %v461, %v460
      %v474 = vpack.c.b16 %v463, %v462
      %v475 = vpack.c.b16 %v465, %v464
      %v476 = vpack.c.b16 %v467, %v466
      %v477 = vpack.c.b16 %v469, %v468
      %486 = vmatpush.bf16.msra.mxu0 %v477
      %487 = vmatpush.bf16.msra.mxu0 %v476
      %488 = vmatpush.bf16.msra.mxu0 %v475
      %489 = vmatpush.bf16.msra.mxu0 %v474
      %490 = vmatpush.bf16.msra.mxu0 %v473
      %491 = vmatpush.bf16.msra.mxu0 %v472
      %492 = vmatpush.bf16.msra.mxu0 %v471
      %493 = vmatpush.bf16.msra.mxu0 %v470
      %494 = vmatmul.bf16.gmra.mxu0 %v429
      %v495 = vpop.f32.mrf.mxu0
      %v496 = vadd.f32 %v437, %v495
      %v497 = vpop.f32.mrf.mxu0
      %v498 = vadd.f32 %v437, %v497
      %499 = vmatmul.bf16.gmra.mxu0 %v430
      %v500 = vpop.f32.mrf.mxu0
      %v501 = vadd.f32 %v437, %v500
      %v502 = vpop.f32.mrf.mxu0
      %v503 = vadd.f32 %v437, %v502
      %504 = vmatmul.bf16.gmra.mxu0 %v431
      %v505 = vpop.f32.mrf.mxu0
      %v506 = vadd.f32 %v437, %v505
      %v507 = vpop.f32.mrf.mxu0
      %v508 = vadd.f32 %v437, %v507
      %509 = vmatmul.bf16.gmra.mxu0 %v432
      %v510 = vpop.f32.mrf.mxu0
      %v511 = vadd.f32 %v437, %v510
      %v512 = vpop.f32.mrf.mxu0
      %v513 = vadd.f32 %v437, %v512
      %514 = vmatmul.bf16.gmra.mxu0 %v433
      %v515 = vpop.f32.mrf.mxu0
      %v516 = vadd.f32 %v437, %v515
      %v517 = vpop.f32.mrf.mxu0
      %v518 = vadd.f32 %v437, %v517
      %519 = vmatmul.bf16.gmra.mxu0 %v434
      %v520 = vpop.f32.mrf.mxu0
      %v521 = vadd.f32 %v437, %v520
      %v522 = vpop.f32.mrf.mxu0
      %v523 = vadd.f32 %v437, %v522
      %524 = vmatmul.bf16.gmra.mxu0 %v435
      %v525 = vpop.f32.mrf.mxu0
      %v526 = vadd.f32 %v437, %v525
      %v527 = vpop.f32.mrf.mxu0
      %v528 = vadd.f32 %v437, %v527
      %529 = vmatmul.bf16.gmra.mxu0 %v436
      %v530 = vpop.f32.mrf.mxu0
      %v531 = vadd.f32 %v437, %v530
      %v532 = vpop.f32.mrf.mxu0
      %v533 = vadd.f32 %v437, %v532
      %534 = vdwg.mxu0
      %v535 = vmax.f32 %v496, 0.0
      %v536 = vmax.f32 %v498, 0.0
      %v537 = vmax.f32 %v501, 0.0
      %v538 = vmax.f32 %v503, 0.0
      %v539 = vmax.f32 %v506, 0.0
      %v540 = vmax.f32 %v508, 0.0
      %v541 = vmax.f32 %v511, 0.0
      %v542 = vmax.f32 %v513, 0.0
      %v543 = vmax.f32 %v516, 0.0
      %v544 = vmax.f32 %v518, 0.0
      %v545 = vmax.f32 %v521, 0.0
      %v546 = vmax.f32 %v523, 0.0
      %v547 = vmax.f32 %v526, 0.0
      %v548 = vmax.f32 %v528, 0.0
      %v549 = vmax.f32 %v531, 0.0
      %v550 = vmax.f32 %v533, 0.0
      %v551 = vld [vmem:[%s4 + $0x28] sm:$0xf]
      %v552 = vld [vmem:[%s4 + $0x2c] sm:$0xf]
      %v553 = vld [vmem:[%s4 + $0x30] sm:$0xf]
      %v554 = vld [vmem:[%s4 + $0x34] sm:$0xf]
      %v555 = vld [vmem:[%s4 + $0x38] sm:$0xf]
      %v556 = vld [vmem:[%s4 + $0x3c] sm:$0xf]
      %v557 = vld [vmem:[%s4 + $0x40] sm:$0xf]
      %v558 = vld [vmem:[%s4 + $0x44] sm:$0xf]
      %v559 = vld [vmem:[%s4 + $0x48] sm:$0xf]
      %v560 = vld [vmem:[%s4 + $0x4c] sm:$0xf]
      %v561 = vld [vmem:[%s4 + $0x50] sm:$0xf]
      %v562 = vld [vmem:[%s4 + $0x54] sm:$0xf]
      %v563 = vld [vmem:[%s4 + $0x58] sm:$0xf]
      %v564 = vld [vmem:[%s4 + $0x5c] sm:$0xf]
      %v565 = vld [vmem:[%s4 + $0x60] sm:$0xf]
      %v566 = vld [vmem:[%s4 + $0x64] sm:$0xf]
      %v567 = vpack.c.bf16 %v536, %v535
      %v568 = vpack.c.bf16 %v538, %v537
      %v569 = vpack.c.bf16 %v540, %v539
      %v570 = vpack.c.bf16 %v542, %v541
      %v571 = vpack.c.bf16 %v544, %v543
      %v572 = vpack.c.bf16 %v546, %v545
      %v573 = vpack.c.bf16 %v548, %v547
      %v574 = vpack.c.bf16 %v550, %v549
      %v575 = vperm.slane %v288, 2
      %v592 = vunpack.c.l.b16 %v551
      %v593 = vunpack.c.l.b16 %v552
      %v594 = vunpack.c.l.b16 %v553
      %v595 = vunpack.c.l.b16 %v554
      %v596 = vunpack.c.l.b16 %v555
      %v597 = vunpack.c.l.b16 %v556
      %v598 = vunpack.c.l.b16 %v557
      %v599 = vunpack.c.l.b16 %v558
      %v600 = vunpack.c.l.b16 %v559
      %v601 = vunpack.c.l.b16 %v560
      %v602 = vunpack.c.l.b16 %v561
      %v603 = vunpack.c.l.b16 %v562
      %v604 = vunpack.c.l.b16 %v563
      %v605 = vunpack.c.l.b16 %v564
      %v606 = vunpack.c.l.b16 %v565
      %v607 = vunpack.c.l.b16 %v566
      %v608 = vpack.c.b16 %v593, %v592
      %v609 = vpack.c.b16 %v595, %v594
      %v610 = vpack.c.b16 %v597, %v596
      %v611 = vpack.c.b16 %v599, %v598
      %v612 = vpack.c.b16 %v601, %v600
      %v613 = vpack.c.b16 %v603, %v602
      %v614 = vpack.c.b16 %v605, %v604
      %v615 = vpack.c.b16 %v607, %v606
      %624 = vmatpush.bf16.msra.mxu0 %v615
      %625 = vmatpush.bf16.msra.mxu0 %v614
      %626 = vmatpush.bf16.msra.mxu0 %v613
      %627 = vmatpush.bf16.msra.mxu0 %v612
      %628 = vmatpush.bf16.msra.mxu0 %v611
      %629 = vmatpush.bf16.msra.mxu0 %v610
      %630 = vmatpush.bf16.msra.mxu0 %v609
      %631 = vmatpush.bf16.msra.mxu0 %v608
      %632 = vmatmul.bf16.gmra.mxu0 %v567
      %v633 = vpop.f32.mrf.mxu0
      %v634 = vadd.f32 %v575, %v633
      %v635 = vpop.f32.mrf.mxu0
      %v636 = vadd.f32 %v575, %v635
      %637 = vmatmul.bf16.gmra.mxu0 %v568
      %v638 = vpop.f32.mrf.mxu0
      %v639 = vadd.f32 %v575, %v638
      %v640 = vpop.f32.mrf.mxu0
      %v641 = vadd.f32 %v575, %v640
      %642 = vmatmul.bf16.gmra.mxu0 %v569
      %v643 = vpop.f32.mrf.mxu0
      %v644 = vadd.f32 %v575, %v643
      %v645 = vpop.f32.mrf.mxu0
      %v646 = vadd.f32 %v575, %v645
      %647 = vmatmul.bf16.gmra.mxu0 %v570
      %v648 = vpop.f32.mrf.mxu0
      %v649 = vadd.f32 %v575, %v648
      %v650 = vpop.f32.mrf.mxu0
      %v651 = vadd.f32 %v575, %v650
      %652 = vmatmul.bf16.gmra.mxu0 %v571
      %v653 = vpop.f32.mrf.mxu0
      %v654 = vadd.f32 %v575, %v653
      %v655 = vpop.f32.mrf.mxu0
      %v656 = vadd.f32 %v575, %v655
      %657 = vmatmul.bf16.gmra.mxu0 %v572
      %v658 = vpop.f32.mrf.mxu0
      %v659 = vadd.f32 %v575, %v658
      %v660 = vpop.f32.mrf.mxu0
      %v661 = vadd.f32 %v575, %v660
      %662 = vmatmul.bf16.gmra.mxu0 %v573
      %v663 = vpop.f32.mrf.mxu0
      %v664 = vadd.f32 %v575, %v663
      %v665 = vpop.f32.mrf.mxu0
      %v666 = vadd.f32 %v575, %v665
      %667 = vmatmul.bf16.gmra.mxu0 %v574
      %v668 = vpop.f32.mrf.mxu0
      %v669 = vadd.f32 %v575, %v668
      %v670 = vpop.f32.mrf.mxu0
      %v671 = vadd.f32 %v575, %v670
      %672 = vdwg.mxu0
      %v673 = vmax.f32 %v634, 0.0
      %v674 = vmax.f32 %v636, 0.0
      %v675 = vmax.f32 %v639, 0.0
      %v676 = vmax.f32 %v641, 0.0
      %v677 = vmax.f32 %v644, 0.0
      %v678 = vmax.f32 %v646, 0.0
      %v679 = vmax.f32 %v649, 0.0
      %v680 = vmax.f32 %v651, 0.0
      %v681 = vmax.f32 %v654, 0.0
      %v682 = vmax.f32 %v656, 0.0
      %v683 = vmax.f32 %v659, 0.0
      %v684 = vmax.f32 %v661, 0.0
      %v685 = vmax.f32 %v664, 0.0
      %v686 = vmax.f32 %v666, 0.0
      %v687 = vmax.f32 %v669, 0.0
      %v688 = vmax.f32 %v671, 0.0
      %v689 = vld [vmem:[%s4 + $0x48] sm:$0xf]
      %v690 = vld [vmem:[%s4 + $0x4c] sm:$0xf]
      %v691 = vld [vmem:[%s4 + $0x50] sm:$0xf]
      %v692 = vld [vmem:[%s4 + $0x54] sm:$0xf]
      %v693 = vld [vmem:[%s4 + $0x58] sm:$0xf]
      %v694 = vld [vmem:[%s4 + $0x5c] sm:$0xf]
      %v695 = vld [vmem:[%s4 + $0x60] sm:$0xf]
      %v696 = vld [vmem:[%s4 + $0x64] sm:$0xf]
      %v697 = vld [vmem:[%s4 + $0x68] sm:$0xf]
      %v698 = vld [vmem:[%s4 + $0x6c] sm:$0xf]
      %v699 = vld [vmem:[%s4 + $0x70] sm:$0xf]
      %v700 = vld [vmem:[%s4 + $0x74] sm:$0xf]
      %v701 = vld [vmem:[%s4 + $0x78] sm:$0xf]
      %v702 = vld [vmem:[%s4 + $0x7c] sm:$0xf]
      %v703 = vld [vmem:[%s4 + $0x80] sm:$0xf]
      %v704 = vld [vmem:[%s4 + $0x84] sm:$0xf]
      %v705 = vpack.c.bf16 %v674, %v673
      %v706 = vpack.c.bf16 %v676, %v675
      %v707 = vpack.c.bf16 %v678, %v677
      %v708 = vpack.c.bf16 %v680, %v679
      %v709 = vpack.c.bf16 %v682, %v681
      %v710 = vpack.c.bf16 %v684, %v683
      %v711 = vpack.c.bf16 %v686, %v685
      %v712 = vpack.c.bf16 %v688, %v687
      %v713 = vperm.slane %v288, 3
      %v730 = vunpack.c.l.b16 %v689
      %v731 = vunpack.c.l.b16 %v690
      %v732 = vunpack.c.l.b16 %v691
      %v733 = vunpack.c.l.b16 %v692
      %v734 = vunpack.c.l.b16 %v693
      %v735 = vunpack.c.l.b16 %v694
      %v736 = vunpack.c.l.b16 %v695
      %v737 = vunpack.c.l.b16 %v696
      %v738 = vunpack.c.l.b16 %v697
      %v739 = vunpack.c.l.b16 %v698
      %v740 = vunpack.c.l.b16 %v699
      %v741 = vunpack.c.l.b16 %v700
      %v742 = vunpack.c.l.b16 %v701
      %v743 = vunpack.c.l.b16 %v702
      %v744 = vunpack.c.l.b16 %v703
      %v745 = vunpack.c.l.b16 %v704
      %v746 = vpack.c.b16 %v731, %v730
      %v747 = vpack.c.b16 %v733, %v732
      %v748 = vpack.c.b16 %v735, %v734
      %v749 = vpack.c.b16 %v737, %v736
      %v750 = vpack.c.b16 %v739, %v738
      %v751 = vpack.c.b16 %v741, %v740
      %v752 = vpack.c.b16 %v743, %v742
      %v753 = vpack.c.b16 %v745, %v744
      %762 = vmatpush.bf16.msra.mxu0 %v753
      %763 = vmatpush.bf16.msra.mxu0 %v752
      %764 = vmatpush.bf16.msra.mxu0 %v751
      %765 = vmatpush.bf16.msra.mxu0 %v750
      %766 = vmatpush.bf16.msra.mxu0 %v749
      %767 = vmatpush.bf16.msra.mxu0 %v748
      %768 = vmatpush.bf16.msra.mxu0 %v747
      %769 = vmatpush.bf16.msra.mxu0 %v746
      %770 = vmatmul.bf16.gmra.mxu0 %v705
      %v771 = vpop.f32.mrf.mxu0
      %v772 = vadd.f32 %v713, %v771
      %v773 = vpop.f32.mrf.mxu0
      %v774 = vadd.f32 %v713, %v773
      %775 = vmatmul.bf16.gmra.mxu0 %v706
      %v776 = vpop.f32.mrf.mxu0
      %v777 = vadd.f32 %v713, %v776
      %v778 = vpop.f32.mrf.mxu0
      %v779 = vadd.f32 %v713, %v778
      %780 = vmatmul.bf16.gmra.mxu0 %v707
      %v781 = vpop.f32.mrf.mxu0
      %v782 = vadd.f32 %v713, %v781
      %v783 = vpop.f32.mrf.mxu0
      %v784 = vadd.f32 %v713, %v783
      %785 = vmatmul.bf16.gmra.mxu0 %v708
      %v786 = vpop.f32.mrf.mxu0
      %v787 = vadd.f32 %v713, %v786
      %v788 = vpop.f32.mrf.mxu0
      %v789 = vadd.f32 %v713, %v788
      %790 = vmatmul.bf16.gmra.mxu0 %v709
      %v791 = vpop.f32.mrf.mxu0
      %v792 = vadd.f32 %v713, %v791
      %v793 = vpop.f32.mrf.mxu0
      %v794 = vadd.f32 %v713, %v793
      %795 = vmatmul.bf16.gmra.mxu0 %v710
      %v796 = vpop.f32.mrf.mxu0
      %v797 = vadd.f32 %v713, %v796
      %v798 = vpop.f32.mrf.mxu0
      %v799 = vadd.f32 %v713, %v798
      %800 = vmatmul.bf16.gmra.mxu0 %v711
      %v801 = vpop.f32.mrf.mxu0
      %v802 = vadd.f32 %v713, %v801
      %v803 = vpop.f32.mrf.mxu0
      %v804 = vadd.f32 %v713, %v803
      %805 = vmatmul.bf16.gmra.mxu0 %v712
      %v806 = vpop.f32.mrf.mxu0
      %v807 = vadd.f32 %v713, %v806
      %v808 = vpop.f32.mrf.mxu0
      %v809 = vadd.f32 %v713, %v808
      %810 = vdwg.mxu0
      %v811 = vld [vmem:[%s269] sm:$0xff]
      %v812 = vld [vmem:[%s269 + $0x8] sm:$0xff]
      %v813 = vld [vmem:[%s269 + $0x10] sm:$0xff]
      %v814 = vld [vmem:[%s269 + $0x18] sm:$0xff]
      %v815 = vld [vmem:[%s269 + $0x20] sm:$0xff]
      %v816 = vld [vmem:[%s269 + $0x28] sm:$0xff]
      %v817 = vld [vmem:[%s269 + $0x30] sm:$0xff]
      %v818 = vld [vmem:[%s269 + $0x38] sm:$0xff]
      %v819 = vld [vmem:[%s269 + $0x40] sm:$0xff]
      %v820 = vld [vmem:[%s269 + $0x48] sm:$0xff]
      %v821 = vld [vmem:[%s269 + $0x50] sm:$0xff]
      %v822 = vld [vmem:[%s269 + $0x58] sm:$0xff]
      %v823 = vld [vmem:[%s269 + $0x60] sm:$0xff]
      %v824 = vld [vmem:[%s269 + $0x68] sm:$0xff]
      %v825 = vld [vmem:[%s269 + $0x70] sm:$0xff]
      %v826 = vld [vmem:[%s269 + $0x78] sm:$0xff]
      %v827 = vld [vmem:[%s269 + $0x80] sm:$0xff]
      %v828 = vld [vmem:[%s269 + $0x88] sm:$0xff]
      %v829 = vld [vmem:[%s269 + $0x90] sm:$0xff]
      %v830 = vld [vmem:[%s269 + $0x98] sm:$0xff]
      %v831 = vld [vmem:[%s269 + $0xa0] sm:$0xff]
      %v832 = vld [vmem:[%s269 + $0xa8] sm:$0xff]
      %v833 = vld [vmem:[%s269 + $0xb0] sm:$0xff]
      %v834 = vld [vmem:[%s269 + $0xb8] sm:$0xff]
      %v835 = vld [vmem:[%s269 + $0xc0] sm:$0xff]
      %v836 = vld [vmem:[%s269 + $0xc8] sm:$0xff]
      %v837 = vld [vmem:[%s269 + $0xd0] sm:$0xff]
      %v838 = vld [vmem:[%s269 + $0xd8] sm:$0xff]
      %v839 = vld [vmem:[%s269 + $0xe0] sm:$0xff]
      %v840 = vld [vmem:[%s269 + $0xe8] sm:$0xff]
      %v841 = vld [vmem:[%s274] sm:$0xff]
      %v842 = vld [vmem:[%s274 + $0x8] sm:$0xff]
      %v843 = vld [vmem:[%s274 + $0x10] sm:$0xff]
      %v844 = vld [vmem:[%s274 + $0x18] sm:$0xff]
      %v845 = vld [vmem:[%s274 + $0x20] sm:$0xff]
      %v846 = vld [vmem:[%s274 + $0x28] sm:$0xff]
      %v847 = vld [vmem:[%s274 + $0x30] sm:$0xff]
      %v848 = vld [vmem:[%s274 + $0x38] sm:$0xff]
      %v849 = vld [vmem:[%s274 + $0x40] sm:$0xff]
      %v850 = vld [vmem:[%s274 + $0x48] sm:$0xff]
      %v851 = vld [vmem:[%s274 + $0x50] sm:$0xff]
      %v852 = vld [vmem:[%s274 + $0x58] sm:$0xff]
      %v853 = vld [vmem:[%s274 + $0x60] sm:$0xff]
      %v854 = vld [vmem:[%s274 + $0x68] sm:$0xff]
      %v855 = vld [vmem:[%s274 + $0x70] sm:$0xff]
      %v856 = vld [vmem:[%s274 + $0x78] sm:$0xff]
      %v857 = vld [vmem:[%s274 + $0x80] sm:$0xff]
      %v858 = vld [vmem:[%s274 + $0x88] sm:$0xff]
      %v859 = vld [vmem:[%s274 + $0x90] sm:$0xff]
      %v860 = vld [vmem:[%s274 + $0x98] sm:$0xff]
      %v861 = vld [vmem:[%s274 + $0xa0] sm:$0xff]
      %v862 = vld [vmem:[%s274 + $0xa8] sm:$0xff]
      %v863 = vld [vmem:[%s274 + $0xb0] sm:$0xff]
      %v864 = vld [vmem:[%s274 + $0xb8] sm:$0xff]
      %v865 = vld [vmem:[%s274 + $0xc0] sm:$0xff]
      %v866 = vld [vmem:[%s274 + $0xc8] sm:$0xff]
      %v867 = vld [vmem:[%s274 + $0xd0] sm:$0xff]
      %v868 = vld [vmem:[%s274 + $0xd8] sm:$0xff]
      %v869 = vld [vmem:[%s274 + $0xe0] sm:$0xff]
      %v870 = vld [vmem:[%s274 + $0xe8] sm:$0xff]
      %v871 = vld [vmem:[%s278] sm:$0x3]
      %v872 = vlaneseq
      %v873 = vand.u32 %v872, 127
      %874 = vset.pattern.permute.xlu0 0
      %875 = vperm.xlu0 %874, %v811
      %v876 = vpop.permute.xlu0 %875
      %877 = vset.pattern.permute.xlu0 0
      %878 = vperm.xlu0 %877, %v812
      %v879 = vpop.permute.xlu0 %878
      %880 = vset.pattern.permute.xlu0 0
      %881 = vperm.xlu0 %880, %v813
      %v882 = vpop.permute.xlu0 %881
      %883 = vset.pattern.permute.xlu0 0
      %884 = vperm.xlu0 %883, %v814
      %v885 = vpop.permute.xlu0 %884
      %886 = vset.pattern.permute.xlu0 0
      %887 = vperm.xlu0 %886, %v815
      %v888 = vpop.permute.xlu0 %887
      %889 = vset.pattern.permute.xlu0 0
      %890 = vperm.xlu0 %889, %v816
      %v891 = vpop.permute.xlu0 %890
      %892 = vset.pattern.permute.xlu0 0
      %893 = vperm.xlu0 %892, %v817
      %v894 = vpop.permute.xlu0 %893
      %895 = vset.pattern.permute.xlu0 0
      %896 = vperm.xlu0 %895, %v818
      %v897 = vpop.permute.xlu0 %896
      %898 = vset.pattern.permute.xlu0 0
      %899 = vperm.xlu0 %898, %v819
      %v900 = vpop.permute.xlu0 %899
      %901 = vset.pattern.permute.xlu0 0
      %902 = vperm.xlu0 %901, %v820
      %v903 = vpop.permute.xlu0 %902
      %904 = vset.pattern.permute.xlu0 0
      %905 = vperm.xlu0 %904, %v821
      %v906 = vpop.permute.xlu0 %905
      %907 = vset.pattern.permute.xlu0 0
      %908 = vperm.xlu0 %907, %v822
      %v909 = vpop.permute.xlu0 %908
      %910 = vset.pattern.permute.xlu0 0
      %911 = vperm.xlu0 %910, %v823
      %v912 = vpop.permute.xlu0 %911
      %913 = vset.pattern.permute.xlu0 0
      %914 = vperm.xlu0 %913, %v824
      %v915 = vpop.permute.xlu0 %914
      %916 = vset.pattern.permute.xlu0 0
      %917 = vperm.xlu0 %916, %v825
      %v918 = vpop.permute.xlu0 %917
      %919 = vset.pattern.permute.xlu0 0
      %920 = vperm.xlu0 %919, %v826
      %v921 = vpop.permute.xlu0 %920
      %922 = vset.pattern.permute.xlu0 0
      %923 = vperm.xlu0 %922, %v827
      %v924 = vpop.permute.xlu0 %923
      %925 = vset.pattern.permute.xlu0 0
      %926 = vperm.xlu0 %925, %v828
      %v927 = vpop.permute.xlu0 %926
      %928 = vset.pattern.permute.xlu0 0
      %929 = vperm.xlu0 %928, %v829
      %v930 = vpop.permute.xlu0 %929
      %931 = vset.pattern.permute.xlu0 0
      %932 = vperm.xlu0 %931, %v830
      %v933 = vpop.permute.xlu0 %932
      %934 = vset.pattern.permute.xlu0 0
      %935 = vperm.xlu0 %934, %v831
      %v936 = vpop.permute.xlu0 %935
      %937 = vset.pattern.permute.xlu0 0
      %938 = vperm.xlu0 %937, %v832
      %v939 = vpop.permute.xlu0 %938
      %940 = vset.pattern.permute.xlu0 0
      %941 = vperm.xlu0 %940, %v833
      %v942 = vpop.permute.xlu0 %941
      %943 = vset.pattern.permute.xlu0 0
      %944 = vperm.xlu0 %943, %v834
      %v945 = vpop.permute.xlu0 %944
      %946 = vset.pattern.permute.xlu0 0
      %947 = vperm.xlu0 %946, %v835
      %v948 = vpop.permute.xlu0 %947
      %949 = vset.pattern.permute.xlu0 0
      %950 = vperm.xlu0 %949, %v836
      %v951 = vpop.permute.xlu0 %950
      %952 = vset.pattern.permute.xlu0 0
      %953 = vperm.xlu0 %952, %v837
      %v954 = vpop.permute.xlu0 %953
      %955 = vset.pattern.permute.xlu0 0
      %956 = vperm.xlu0 %955, %v838
      %v957 = vpop.permute.xlu0 %956
      %958 = vset.pattern.permute.xlu0 0
      %959 = vperm.xlu0 %958, %v839
      %v960 = vpop.permute.xlu0 %959
      %961 = vset.pattern.permute.xlu0 0
      %962 = vperm.xlu0 %961, %v840
      %v963 = vpop.permute.xlu0 %962
      %vm964 = vcmp.eq.s32.totalorder %v873, %v876
      %vm965 = vcmp.eq.s32.totalorder %v873, %v879
      %vm966 = vcmp.eq.s32.totalorder %v873, %v882
      %vm967 = vcmp.eq.s32.totalorder %v873, %v885
      %vm968 = vcmp.eq.s32.totalorder %v873, %v888
      %vm969 = vcmp.eq.s32.totalorder %v873, %v891
      %vm970 = vcmp.eq.s32.totalorder %v873, %v894
      %vm971 = vcmp.eq.s32.totalorder %v873, %v897
      %vm972 = vcmp.eq.s32.totalorder %v873, %v900
      %vm973 = vcmp.eq.s32.totalorder %v873, %v903
      %vm974 = vcmp.eq.s32.totalorder %v873, %v906
      %vm975 = vcmp.eq.s32.totalorder %v873, %v909
      %vm976 = vcmp.eq.s32.totalorder %v873, %v912
      %vm977 = vcmp.eq.s32.totalorder %v873, %v915
      %vm978 = vcmp.eq.s32.totalorder %v873, %v918
      %vm979 = vcmp.eq.s32.totalorder %v873, %v921
      %vm980 = vcmp.eq.s32.totalorder %v873, %v924
      %vm981 = vcmp.eq.s32.totalorder %v873, %v927
      %vm982 = vcmp.eq.s32.totalorder %v873, %v930
      %vm983 = vcmp.eq.s32.totalorder %v873, %v933
      %vm984 = vcmp.eq.s32.totalorder %v873, %v936
      %vm985 = vcmp.eq.s32.totalorder %v873, %v939
      %vm986 = vcmp.eq.s32.totalorder %v873, %v942
      %vm987 = vcmp.eq.s32.totalorder %v873, %v945
      %vm988 = vcmp.eq.s32.totalorder %v873, %v948
      %vm989 = vcmp.eq.s32.totalorder %v873, %v951
      %vm990 = vcmp.eq.s32.totalorder %v873, %v954
      %vm991 = vcmp.eq.s32.totalorder %v873, %v957
      %vm992 = vcmp.eq.s32.totalorder %v873, %v960
      %vm993 = vcmp.eq.s32.totalorder %v873, %v963
      %v994 = vsel %vm964, 1.0, 0.0
      %v995 = vsel %vm965, 1.0, 0.0
      %v996 = vsel %vm966, 1.0, 0.0
      %v997 = vsel %vm967, 1.0, 0.0
      %v998 = vsel %vm968, 1.0, 0.0
      %v999 = vsel %vm969, 1.0, 0.0
      %v1000 = vsel %vm970, 1.0, 0.0
      %v1001 = vsel %vm971, 1.0, 0.0
      %v1002 = vsel %vm972, 1.0, 0.0
      %v1003 = vsel %vm973, 1.0, 0.0
      %v1004 = vsel %vm974, 1.0, 0.0
      %v1005 = vsel %vm975, 1.0, 0.0
      %v1006 = vsel %vm976, 1.0, 0.0
      %v1007 = vsel %vm977, 1.0, 0.0
      %v1008 = vsel %vm978, 1.0, 0.0
      %v1009 = vsel %vm979, 1.0, 0.0
      %v1010 = vsel %vm980, 1.0, 0.0
      %v1011 = vsel %vm981, 1.0, 0.0
      %v1012 = vsel %vm982, 1.0, 0.0
      %v1013 = vsel %vm983, 1.0, 0.0
      %v1014 = vsel %vm984, 1.0, 0.0
      %v1015 = vsel %vm985, 1.0, 0.0
      %v1016 = vsel %vm986, 1.0, 0.0
      %v1017 = vsel %vm987, 1.0, 0.0
      %v1018 = vsel %vm988, 1.0, 0.0
      %v1019 = vsel %vm989, 1.0, 0.0
      %v1020 = vsel %vm990, 1.0, 0.0
      %v1021 = vsel %vm991, 1.0, 0.0
      %v1022 = vsel %vm992, 1.0, 0.0
      %v1023 = vsel %vm993, 1.0, 0.0
      %v1024 = vpack.c.bf16 %v995, %v994
      %v1025 = vpack.c.bf16 %v997, %v996
      %v1026 = vpack.c.bf16 %v999, %v998
      %v1027 = vpack.c.bf16 %v1001, %v1000
      %v1028 = vpack.c.bf16 %v1003, %v1002
      %v1029 = vpack.c.bf16 %v1005, %v1004
      %v1030 = vpack.c.bf16 %v1007, %v1006
      %v1031 = vpack.c.bf16 %v1009, %v1008
      %v1032 = vpack.c.bf16 %v1011, %v1010
      %v1033 = vpack.c.bf16 %v1013, %v1012
      %v1034 = vpack.c.bf16 %v1015, %v1014
      %v1035 = vpack.c.bf16 %v1017, %v1016
      %v1036 = vpack.c.bf16 %v1019, %v1018
      %v1037 = vpack.c.bf16 %v1021, %v1020
      %v1038 = vpack.c.bf16 %v1023, %v1022
      %1039 = vset.pattern.permute.xlu0 0
      %1040 = vperm.xlu0 %1039, %v841
      %v1041 = vpop.permute.xlu0 %1040
      %1042 = vset.pattern.permute.xlu0 0
      %1043 = vperm.xlu0 %1042, %v842
      %v1044 = vpop.permute.xlu0 %1043
      %1045 = vset.pattern.permute.xlu0 0
      %1046 = vperm.xlu0 %1045, %v843
      %v1047 = vpop.permute.xlu0 %1046
      %1048 = vset.pattern.permute.xlu0 0
      %1049 = vperm.xlu0 %1048, %v844
      %v1050 = vpop.permute.xlu0 %1049
      %1051 = vset.pattern.permute.xlu0 0
      %1052 = vperm.xlu0 %1051, %v845
      %v1053 = vpop.permute.xlu0 %1052
      %1054 = vset.pattern.permute.xlu0 0
      %1055 = vperm.xlu0 %1054, %v846
      %v1056 = vpop.permute.xlu0 %1055
      %1057 = vset.pattern.permute.xlu0 0
      %1058 = vperm.xlu0 %1057, %v847
      %v1059 = vpop.permute.xlu0 %1058
      %1060 = vset.pattern.permute.xlu0 0
      %1061 = vperm.xlu0 %1060, %v848
      %v1062 = vpop.permute.xlu0 %1061
      %1063 = vset.pattern.permute.xlu0 0
      %1064 = vperm.xlu0 %1063, %v849
      %v1065 = vpop.permute.xlu0 %1064
      %1066 = vset.pattern.permute.xlu0 0
      %1067 = vperm.xlu0 %1066, %v850
      %v1068 = vpop.permute.xlu0 %1067
      %1069 = vset.pattern.permute.xlu0 0
      %1070 = vperm.xlu0 %1069, %v851
      %v1071 = vpop.permute.xlu0 %1070
      %1072 = vset.pattern.permute.xlu0 0
      %1073 = vperm.xlu0 %1072, %v852
      %v1074 = vpop.permute.xlu0 %1073
      %1075 = vset.pattern.permute.xlu0 0
      %1076 = vperm.xlu0 %1075, %v853
      %v1077 = vpop.permute.xlu0 %1076
      %1078 = vset.pattern.permute.xlu0 0
      %1079 = vperm.xlu0 %1078, %v854
      %v1080 = vpop.permute.xlu0 %1079
      %1081 = vset.pattern.permute.xlu0 0
      %1082 = vperm.xlu0 %1081, %v855
      %v1083 = vpop.permute.xlu0 %1082
      %1084 = vset.pattern.permute.xlu0 0
      %1085 = vperm.xlu0 %1084, %v856
      %v1086 = vpop.permute.xlu0 %1085
      %1087 = vset.pattern.permute.xlu0 0
      %1088 = vperm.xlu0 %1087, %v857
      %v1089 = vpop.permute.xlu0 %1088
      %1090 = vset.pattern.permute.xlu0 0
      %1091 = vperm.xlu0 %1090, %v858
      %v1092 = vpop.permute.xlu0 %1091
      %1093 = vset.pattern.permute.xlu0 0
      %1094 = vperm.xlu0 %1093, %v859
      %v1095 = vpop.permute.xlu0 %1094
      %1096 = vset.pattern.permute.xlu0 0
      %1097 = vperm.xlu0 %1096, %v860
      %v1098 = vpop.permute.xlu0 %1097
      %1099 = vset.pattern.permute.xlu0 0
      %1100 = vperm.xlu0 %1099, %v861
      %v1101 = vpop.permute.xlu0 %1100
      %1102 = vset.pattern.permute.xlu0 0
      %1103 = vperm.xlu0 %1102, %v862
      %v1104 = vpop.permute.xlu0 %1103
      %1105 = vset.pattern.permute.xlu0 0
      %1106 = vperm.xlu0 %1105, %v863
      %v1107 = vpop.permute.xlu0 %1106
      %1108 = vset.pattern.permute.xlu0 0
      %1109 = vperm.xlu0 %1108, %v864
      %v1110 = vpop.permute.xlu0 %1109
      %1111 = vset.pattern.permute.xlu0 0
      %1112 = vperm.xlu0 %1111, %v865
      %v1113 = vpop.permute.xlu0 %1112
      %1114 = vset.pattern.permute.xlu0 0
      %1115 = vperm.xlu0 %1114, %v866
      %v1116 = vpop.permute.xlu0 %1115
      %1117 = vset.pattern.permute.xlu0 0
      %1118 = vperm.xlu0 %1117, %v867
      %v1119 = vpop.permute.xlu0 %1118
      %1120 = vset.pattern.permute.xlu0 0
      %1121 = vperm.xlu0 %1120, %v868
      %v1122 = vpop.permute.xlu0 %1121
      %1123 = vset.pattern.permute.xlu0 0
      %1124 = vperm.xlu0 %1123, %v869
      %v1125 = vpop.permute.xlu0 %1124
      %1126 = vset.pattern.permute.xlu0 0
      %1127 = vperm.xlu0 %1126, %v870
      %v1128 = vpop.permute.xlu0 %1127
      %vm1129 = vcmp.eq.s32.totalorder %v873, %v1041
      %vm1130 = vcmp.eq.s32.totalorder %v873, %v1044
      %vm1131 = vcmp.eq.s32.totalorder %v873, %v1047
      %vm1132 = vcmp.eq.s32.totalorder %v873, %v1050
      %vm1133 = vcmp.eq.s32.totalorder %v873, %v1053
      %vm1134 = vcmp.eq.s32.totalorder %v873, %v1056
      %vm1135 = vcmp.eq.s32.totalorder %v873, %v1059
      %vm1136 = vcmp.eq.s32.totalorder %v873, %v1062
      %vm1137 = vcmp.eq.s32.totalorder %v873, %v1065
      %vm1138 = vcmp.eq.s32.totalorder %v873, %v1068
      %vm1139 = vcmp.eq.s32.totalorder %v873, %v1071
      %vm1140 = vcmp.eq.s32.totalorder %v873, %v1074
      %vm1141 = vcmp.eq.s32.totalorder %v873, %v1077
      %vm1142 = vcmp.eq.s32.totalorder %v873, %v1080
      %vm1143 = vcmp.eq.s32.totalorder %v873, %v1083
      %vm1144 = vcmp.eq.s32.totalorder %v873, %v1086
      %vm1145 = vcmp.eq.s32.totalorder %v873, %v1089
      %vm1146 = vcmp.eq.s32.totalorder %v873, %v1092
      %vm1147 = vcmp.eq.s32.totalorder %v873, %v1095
      %vm1148 = vcmp.eq.s32.totalorder %v873, %v1098
      %vm1149 = vcmp.eq.s32.totalorder %v873, %v1101
      %vm1150 = vcmp.eq.s32.totalorder %v873, %v1104
      %vm1151 = vcmp.eq.s32.totalorder %v873, %v1107
      %vm1152 = vcmp.eq.s32.totalorder %v873, %v1110
      %vm1153 = vcmp.eq.s32.totalorder %v873, %v1113
      %vm1154 = vcmp.eq.s32.totalorder %v873, %v1116
      %vm1155 = vcmp.eq.s32.totalorder %v873, %v1119
      %vm1156 = vcmp.eq.s32.totalorder %v873, %v1122
      %vm1157 = vcmp.eq.s32.totalorder %v873, %v1125
      %vm1158 = vcmp.eq.s32.totalorder %v873, %v1128
      %v1159 = vsel %vm1129, 1.0, 0.0
      %v1160 = vsel %vm1130, 1.0, 0.0
      %v1161 = vsel %vm1131, 1.0, 0.0
      %v1162 = vsel %vm1132, 1.0, 0.0
      %v1163 = vsel %vm1133, 1.0, 0.0
      %v1164 = vsel %vm1134, 1.0, 0.0
      %v1165 = vsel %vm1135, 1.0, 0.0
      %v1166 = vsel %vm1136, 1.0, 0.0
      %v1167 = vsel %vm1137, 1.0, 0.0
      %v1168 = vsel %vm1138, 1.0, 0.0
      %v1169 = vsel %vm1139, 1.0, 0.0
      %v1170 = vsel %vm1140, 1.0, 0.0
      %v1171 = vsel %vm1141, 1.0, 0.0
      %v1172 = vsel %vm1142, 1.0, 0.0
      %v1173 = vsel %vm1143, 1.0, 0.0
      %v1174 = vsel %vm1144, 1.0, 0.0
      %v1175 = vsel %vm1145, 1.0, 0.0
      %v1176 = vsel %vm1146, 1.0, 0.0
      %v1177 = vsel %vm1147, 1.0, 0.0
      %v1178 = vsel %vm1148, 1.0, 0.0
      %v1179 = vsel %vm1149, 1.0, 0.0
      %v1180 = vsel %vm1150, 1.0, 0.0
      %v1181 = vsel %vm1151, 1.0, 0.0
      %v1182 = vsel %vm1152, 1.0, 0.0
      %v1183 = vsel %vm1153, 1.0, 0.0
      %v1184 = vsel %vm1154, 1.0, 0.0
      %v1185 = vsel %vm1155, 1.0, 0.0
      %v1186 = vsel %vm1156, 1.0, 0.0
      %v1187 = vsel %vm1157, 1.0, 0.0
      %v1188 = vsel %vm1158, 1.0, 0.0
      %v1189 = vpack.c.bf16 %v1160, %v1159
      %v1190 = vpack.c.bf16 %v1162, %v1161
      %v1191 = vpack.c.bf16 %v1164, %v1163
      %v1192 = vpack.c.bf16 %v1166, %v1165
      %v1193 = vpack.c.bf16 %v1168, %v1167
      %v1194 = vpack.c.bf16 %v1170, %v1169
      %v1195 = vpack.c.bf16 %v1172, %v1171
      %v1196 = vpack.c.bf16 %v1174, %v1173
      %v1197 = vpack.c.bf16 %v1176, %v1175
      %v1198 = vpack.c.bf16 %v1178, %v1177
      %v1199 = vpack.c.bf16 %v1180, %v1179
      %v1200 = vpack.c.bf16 %v1182, %v1181
      %v1201 = vpack.c.bf16 %v1184, %v1183
      %v1202 = vpack.c.bf16 %v1186, %v1185
      %v1203 = vpack.c.bf16 %v1188, %v1187
      %v1204 = vlaneseq
      %v1205 = vshrl.u32 %v1204, 7
      %v1206 = vadd.s32 %v1205, 8
      %v1207 = vadd.s32 %v1205, 16
      %v1208 = vadd.s32 %v1205, 24
      %v1209 = vadd.s32 %v1205, 32
      %v1210 = vadd.s32 %v1205, 40
      %v1211 = vadd.s32 %v1205, 48
      %v1212 = vadd.s32 %v1205, 56
      %v1213 = vadd.s32 %v1205, 64
      %v1214 = vadd.s32 %v1205, 72
      %v1215 = vadd.s32 %v1205, 80
      %v1216 = vadd.s32 %v1205, 88
      %v1217 = vadd.s32 %v1205, 96
      %v1218 = vadd.s32 %v1205, 104
      %v1219 = vadd.s32 %v1205, 112
      %v1220 = vadd.s32 %v1205, 120
      %v1221 = vperm.slane %v871, 0
      %v1222 = vperm.slane %v871, 1
      %vm1223 = vcmp.eq.s32.totalorder %v1205, %v1221
      %vm1224 = vcmp.eq.s32.totalorder %v1205, %v1222
      %vm1225 = vcmp.eq.s32.totalorder %v1206, %v1221
      %vm1226 = vcmp.eq.s32.totalorder %v1206, %v1222
      %vm1227 = vcmp.eq.s32.totalorder %v1207, %v1221
      %vm1228 = vcmp.eq.s32.totalorder %v1207, %v1222
      %vm1229 = vcmp.eq.s32.totalorder %v1208, %v1221
      %vm1230 = vcmp.eq.s32.totalorder %v1208, %v1222
      %vm1231 = vcmp.eq.s32.totalorder %v1209, %v1221
      %vm1232 = vcmp.eq.s32.totalorder %v1209, %v1222
      %vm1233 = vcmp.eq.s32.totalorder %v1210, %v1221
      %vm1234 = vcmp.eq.s32.totalorder %v1210, %v1222
      %vm1235 = vcmp.eq.s32.totalorder %v1211, %v1221
      %vm1236 = vcmp.eq.s32.totalorder %v1211, %v1222
      %vm1237 = vcmp.eq.s32.totalorder %v1212, %v1221
      %vm1238 = vcmp.eq.s32.totalorder %v1212, %v1222
      %vm1239 = vcmp.eq.s32.totalorder %v1213, %v1221
      %vm1240 = vcmp.eq.s32.totalorder %v1213, %v1222
      %vm1241 = vcmp.eq.s32.totalorder %v1214, %v1221
      %vm1242 = vcmp.eq.s32.totalorder %v1214, %v1222
      %vm1243 = vcmp.eq.s32.totalorder %v1215, %v1221
      %vm1244 = vcmp.eq.s32.totalorder %v1215, %v1222
      %vm1245 = vcmp.eq.s32.totalorder %v1216, %v1221
      %vm1246 = vcmp.eq.s32.totalorder %v1216, %v1222
      %vm1247 = vcmp.eq.s32.totalorder %v1217, %v1221
      %vm1248 = vcmp.eq.s32.totalorder %v1217, %v1222
      %vm1249 = vcmp.eq.s32.totalorder %v1218, %v1221
      %vm1250 = vcmp.eq.s32.totalorder %v1218, %v1222
      %vm1251 = vcmp.eq.s32.totalorder %v1219, %v1221
      %vm1252 = vcmp.eq.s32.totalorder %v1219, %v1222
      %vm1253 = vcmp.eq.s32.totalorder %v1220, %v1221
      %vm1254 = vcmp.eq.s32.totalorder %v1220, %v1222
      %v1255 = vsel %vm1223, 1.0, 0.0
      %v1256 = vsel %vm1224, 1.0, 0.0
      %v1257 = vsel %vm1225, 1.0, 0.0
      %v1258 = vsel %vm1226, 1.0, 0.0
      %v1259 = vsel %vm1227, 1.0, 0.0
      %v1260 = vsel %vm1228, 1.0, 0.0
      %v1261 = vsel %vm1229, 1.0, 0.0
      %v1262 = vsel %vm1230, 1.0, 0.0
      %v1263 = vsel %vm1231, 1.0, 0.0
      %v1264 = vsel %vm1232, 1.0, 0.0
      %v1265 = vsel %vm1233, 1.0, 0.0
      %v1266 = vsel %vm1234, 1.0, 0.0
      %v1267 = vsel %vm1235, 1.0, 0.0
      %v1268 = vsel %vm1236, 1.0, 0.0
      %v1269 = vsel %vm1237, 1.0, 0.0
      %v1270 = vsel %vm1238, 1.0, 0.0
      %v1271 = vsel %vm1239, 1.0, 0.0
      %v1272 = vsel %vm1240, 1.0, 0.0
      %v1273 = vsel %vm1241, 1.0, 0.0
      %v1274 = vsel %vm1242, 1.0, 0.0
      %v1275 = vsel %vm1243, 1.0, 0.0
      %v1276 = vsel %vm1244, 1.0, 0.0
      %v1277 = vsel %vm1245, 1.0, 0.0
      %v1278 = vsel %vm1246, 1.0, 0.0
      %v1279 = vsel %vm1247, 1.0, 0.0
      %v1280 = vsel %vm1248, 1.0, 0.0
      %v1281 = vsel %vm1249, 1.0, 0.0
      %v1282 = vsel %vm1250, 1.0, 0.0
      %v1283 = vsel %vm1251, 1.0, 0.0
      %v1284 = vsel %vm1252, 1.0, 0.0
      %v1285 = vsel %vm1253, 1.0, 0.0
      %v1286 = vsel %vm1254, 1.0, 0.0
      %v1287 = vpack.c.bf16 %v1257, %v1255
      %v1288 = vpack.c.bf16 %v1258, %v1256
      %v1289 = vpack.c.bf16 %v1261, %v1259
      %v1290 = vpack.c.bf16 %v1262, %v1260
      %v1291 = vpack.c.bf16 %v1265, %v1263
      %v1292 = vpack.c.bf16 %v1266, %v1264
      %v1293 = vpack.c.bf16 %v1269, %v1267
      %v1294 = vpack.c.bf16 %v1270, %v1268
      %v1295 = vpack.c.bf16 %v1273, %v1271
      %v1296 = vpack.c.bf16 %v1274, %v1272
      %v1297 = vpack.c.bf16 %v1277, %v1275
      %v1298 = vpack.c.bf16 %v1278, %v1276
      %v1299 = vpack.c.bf16 %v1281, %v1279
      %v1300 = vpack.c.bf16 %v1282, %v1280
      %v1301 = vpack.c.bf16 %v1285, %v1283
      %v1302 = vpack.c.bf16 %v1286, %v1284
      %v1303 = vpack.c.bf16 %v774, %v772
      %v1304 = vpack.c.bf16 %v779, %v777
      %v1305 = vpack.c.bf16 %v784, %v782
      %v1306 = vpack.c.bf16 %v789, %v787
      %v1307 = vpack.c.bf16 %v794, %v792
      %v1308 = vpack.c.bf16 %v799, %v797
      %v1309 = vpack.c.bf16 %v804, %v802
      %v1310 = vpack.c.bf16 %v809, %v807
      %1311 = vmatpush.bf16.msra.mxu0 %v1310
      %1312 = vmatpush.bf16.msra.mxu0 %v1309
      %1313 = vmatpush.bf16.msra.mxu0 %v1308
      %1314 = vmatpush.bf16.msra.mxu0 %v1307
      %1315 = vmatpush.bf16.msra.mxu0 %v1306
      %1316 = vmatpush.bf16.msra.mxu0 %v1305
      %1317 = vmatpush.bf16.msra.mxu0 %v1304
      %1318 = vmatpush.bf16.msra.mxu0 %v1303
      %1319 = vmatmul.bf16.gmra.mxu0 %v1024
      %v1320 = vpop.f32.mrf.mxu0
      %v1321 = vadd.f32 0.0, %v1320
      %v1322 = vpop.f32.mrf.mxu0
      %v1323 = vadd.f32 0.0, %v1322
      %1324 = vmatmul.bf16.gmra.mxu0 %v1025
      %v1325 = vpop.f32.mrf.mxu0
      %v1326 = vadd.f32 0.0, %v1325
      %v1327 = vpop.f32.mrf.mxu0
      %v1328 = vadd.f32 0.0, %v1327
      %1329 = vmatmul.bf16.gmra.mxu0 %v1026
      %v1330 = vpop.f32.mrf.mxu0
      %v1331 = vadd.f32 0.0, %v1330
      %v1332 = vpop.f32.mrf.mxu0
      %v1333 = vadd.f32 0.0, %v1332
      %1334 = vmatmul.bf16.gmra.mxu0 %v1027
      %v1335 = vpop.f32.mrf.mxu0
      %v1336 = vadd.f32 0.0, %v1335
      %v1337 = vpop.f32.mrf.mxu0
      %v1338 = vadd.f32 0.0, %v1337
      %1339 = vmatmul.bf16.gmra.mxu0 %v1028
      %v1340 = vpop.f32.mrf.mxu0
      %v1341 = vadd.f32 0.0, %v1340
      %v1342 = vpop.f32.mrf.mxu0
      %v1343 = vadd.f32 0.0, %v1342
      %1344 = vmatmul.bf16.gmra.mxu0 %v1029
      %v1345 = vpop.f32.mrf.mxu0
      %v1346 = vadd.f32 0.0, %v1345
      %v1347 = vpop.f32.mrf.mxu0
      %v1348 = vadd.f32 0.0, %v1347
      %1349 = vmatmul.bf16.gmra.mxu0 %v1030
      %v1350 = vpop.f32.mrf.mxu0
      %v1351 = vadd.f32 0.0, %v1350
      %v1352 = vpop.f32.mrf.mxu0
      %v1353 = vadd.f32 0.0, %v1352
      %1354 = vmatmul.bf16.gmra.mxu0 %v1031
      %v1355 = vpop.f32.mrf.mxu0
      %v1356 = vadd.f32 0.0, %v1355
      %v1357 = vpop.f32.mrf.mxu0
      %v1358 = vadd.f32 0.0, %v1357
      %1359 = vmatmul.bf16.gmra.mxu0 %v1032
      %v1360 = vpop.f32.mrf.mxu0
      %v1361 = vadd.f32 0.0, %v1360
      %v1362 = vpop.f32.mrf.mxu0
      %v1363 = vadd.f32 0.0, %v1362
      %1364 = vmatmul.bf16.gmra.mxu0 %v1033
      %v1365 = vpop.f32.mrf.mxu0
      %v1366 = vadd.f32 0.0, %v1365
      %v1367 = vpop.f32.mrf.mxu0
      %v1368 = vadd.f32 0.0, %v1367
      %1369 = vmatmul.bf16.gmra.mxu0 %v1034
      %v1370 = vpop.f32.mrf.mxu0
      %v1371 = vadd.f32 0.0, %v1370
      %v1372 = vpop.f32.mrf.mxu0
      %v1373 = vadd.f32 0.0, %v1372
      %1374 = vmatmul.bf16.gmra.mxu0 %v1035
      %v1375 = vpop.f32.mrf.mxu0
      %v1376 = vadd.f32 0.0, %v1375
      %v1377 = vpop.f32.mrf.mxu0
      %v1378 = vadd.f32 0.0, %v1377
      %1379 = vmatmul.bf16.gmra.mxu0 %v1036
      %v1380 = vpop.f32.mrf.mxu0
      %v1381 = vadd.f32 0.0, %v1380
      %v1382 = vpop.f32.mrf.mxu0
      %v1383 = vadd.f32 0.0, %v1382
      %1384 = vmatmul.bf16.gmra.mxu0 %v1037
      %v1385 = vpop.f32.mrf.mxu0
      %v1386 = vadd.f32 0.0, %v1385
      %v1387 = vpop.f32.mrf.mxu0
      %v1388 = vadd.f32 0.0, %v1387
      %1389 = vmatmul.bf16.gmra.mxu0 %v1038
      %v1390 = vpop.f32.mrf.mxu0
      %v1391 = vadd.f32 0.0, %v1390
      %v1392 = vpop.f32.mrf.mxu0
      %v1393 = vadd.f32 0.0, %v1392
      %1394 = vdwg.mxu0
      %1395 = vmatpush.bf16.msra.mxu0 %v1310
      %1396 = vmatpush.bf16.msra.mxu0 %v1309
      %1397 = vmatpush.bf16.msra.mxu0 %v1308
      %1398 = vmatpush.bf16.msra.mxu0 %v1307
      %1399 = vmatpush.bf16.msra.mxu0 %v1306
      %1400 = vmatpush.bf16.msra.mxu0 %v1305
      %1401 = vmatpush.bf16.msra.mxu0 %v1304
      %1402 = vmatpush.bf16.msra.mxu0 %v1303
      %1403 = vmatmul.bf16.gmra.mxu0 %v1189
      %v1404 = vpop.f32.mrf.mxu0
      %v1405 = vadd.f32 0.0, %v1404
      %v1406 = vpop.f32.mrf.mxu0
      %v1407 = vadd.f32 0.0, %v1406
      %1408 = vmatmul.bf16.gmra.mxu0 %v1190
      %v1409 = vpop.f32.mrf.mxu0
      %v1410 = vadd.f32 0.0, %v1409
      %v1411 = vpop.f32.mrf.mxu0
      %v1412 = vadd.f32 0.0, %v1411
      %1413 = vmatmul.bf16.gmra.mxu0 %v1191
      %v1414 = vpop.f32.mrf.mxu0
      %v1415 = vadd.f32 0.0, %v1414
      %v1416 = vpop.f32.mrf.mxu0
      %v1417 = vadd.f32 0.0, %v1416
      %1418 = vmatmul.bf16.gmra.mxu0 %v1192
      %v1419 = vpop.f32.mrf.mxu0
      %v1420 = vadd.f32 0.0, %v1419
      %v1421 = vpop.f32.mrf.mxu0
      %v1422 = vadd.f32 0.0, %v1421
      %1423 = vmatmul.bf16.gmra.mxu0 %v1193
      %v1424 = vpop.f32.mrf.mxu0
      %v1425 = vadd.f32 0.0, %v1424
      %v1426 = vpop.f32.mrf.mxu0
      %v1427 = vadd.f32 0.0, %v1426
      %1428 = vmatmul.bf16.gmra.mxu0 %v1194
      %v1429 = vpop.f32.mrf.mxu0
      %v1430 = vadd.f32 0.0, %v1429
      %v1431 = vpop.f32.mrf.mxu0
      %v1432 = vadd.f32 0.0, %v1431
      %1433 = vmatmul.bf16.gmra.mxu0 %v1195
      %v1434 = vpop.f32.mrf.mxu0
      %v1435 = vadd.f32 0.0, %v1434
      %v1436 = vpop.f32.mrf.mxu0
      %v1437 = vadd.f32 0.0, %v1436
      %1438 = vmatmul.bf16.gmra.mxu0 %v1196
      %v1439 = vpop.f32.mrf.mxu0
      %v1440 = vadd.f32 0.0, %v1439
      %v1441 = vpop.f32.mrf.mxu0
      %v1442 = vadd.f32 0.0, %v1441
      %1443 = vmatmul.bf16.gmra.mxu0 %v1197
      %v1444 = vpop.f32.mrf.mxu0
      %v1445 = vadd.f32 0.0, %v1444
      %v1446 = vpop.f32.mrf.mxu0
      %v1447 = vadd.f32 0.0, %v1446
      %1448 = vmatmul.bf16.gmra.mxu0 %v1198
      %v1449 = vpop.f32.mrf.mxu0
      %v1450 = vadd.f32 0.0, %v1449
      %v1451 = vpop.f32.mrf.mxu0
      %v1452 = vadd.f32 0.0, %v1451
      %1453 = vmatmul.bf16.gmra.mxu0 %v1199
      %v1454 = vpop.f32.mrf.mxu0
      %v1455 = vadd.f32 0.0, %v1454
      %v1456 = vpop.f32.mrf.mxu0
      %v1457 = vadd.f32 0.0, %v1456
      %1458 = vmatmul.bf16.gmra.mxu0 %v1200
      %v1459 = vpop.f32.mrf.mxu0
      %v1460 = vadd.f32 0.0, %v1459
      %v1461 = vpop.f32.mrf.mxu0
      %v1462 = vadd.f32 0.0, %v1461
      %1463 = vmatmul.bf16.gmra.mxu0 %v1201
      %v1464 = vpop.f32.mrf.mxu0
      %v1465 = vadd.f32 0.0, %v1464
      %v1466 = vpop.f32.mrf.mxu0
      %v1467 = vadd.f32 0.0, %v1466
      %1468 = vmatmul.bf16.gmra.mxu0 %v1202
      %v1469 = vpop.f32.mrf.mxu0
      %v1470 = vadd.f32 0.0, %v1469
      %v1471 = vpop.f32.mrf.mxu0
      %v1472 = vadd.f32 0.0, %v1471
      %1473 = vmatmul.bf16.gmra.mxu0 %v1203
      %v1474 = vpop.f32.mrf.mxu0
      %v1475 = vadd.f32 0.0, %v1474
      %v1476 = vpop.f32.mrf.mxu0
      %v1477 = vadd.f32 0.0, %v1476
      %1478 = vdwg.mxu0
      %v1479 = vld [vmem:[%s4 + $0x68] sm:$0xf]
      %v1480 = vld [vmem:[%s4 + $0x6c] sm:$0xf]
      %v1481 = vld [vmem:[%s4 + $0x70] sm:$0xf]
      %v1482 = vld [vmem:[%s4 + $0x74] sm:$0xf]
      %v1483 = vld [vmem:[%s4 + $0x78] sm:$0xf]
      %v1484 = vld [vmem:[%s4 + $0x7c] sm:$0xf]
      %v1485 = vld [vmem:[%s4 + $0x80] sm:$0xf]
      %v1486 = vld [vmem:[%s4 + $0x84] sm:$0xf]
      %v1487 = vld [vmem:[%s4 + $0x88] sm:$0xf]
      %v1488 = vld [vmem:[%s4 + $0x8c] sm:$0xf]
      %v1489 = vld [vmem:[%s4 + $0x90] sm:$0xf]
      %v1490 = vld [vmem:[%s4 + $0x94] sm:$0xf]
      %v1491 = vld [vmem:[%s4 + $0x98] sm:$0xf]
      %v1492 = vld [vmem:[%s4 + $0x9c] sm:$0xf]
      %v1493 = vld [vmem:[%s4 + $0xa0] sm:$0xf]
      %v1494 = vld [vmem:[%s4 + $0xa4] sm:$0xf]
      %v1495 = vpack.c.bf16 %v1323, %v1321
      %v1496 = vpack.c.bf16 %v1328, %v1326
      %v1497 = vpack.c.bf16 %v1333, %v1331
      %v1498 = vpack.c.bf16 %v1338, %v1336
      %v1499 = vpack.c.bf16 %v1343, %v1341
      %v1500 = vpack.c.bf16 %v1348, %v1346
      %v1501 = vpack.c.bf16 %v1353, %v1351
      %v1502 = vpack.c.bf16 %v1358, %v1356
      %v1503 = vpack.c.bf16 %v1363, %v1361
      %v1504 = vpack.c.bf16 %v1368, %v1366
      %v1505 = vpack.c.bf16 %v1373, %v1371
      %v1506 = vpack.c.bf16 %v1378, %v1376
      %v1507 = vpack.c.bf16 %v1383, %v1381
      %v1508 = vpack.c.bf16 %v1388, %v1386
      %v1509 = vpack.c.bf16 %v1393, %v1391
      %v1510 = vld [vmem:[%s4 + $0xa8] sm:$0xf]
      %v1511 = vld [vmem:[%s4 + $0xac] sm:$0xf]
      %v1512 = vld [vmem:[%s4 + $0xb0] sm:$0xf]
      %v1513 = vld [vmem:[%s4 + $0xb4] sm:$0xf]
      %v1514 = vpack.c.bf16 %v1407, %v1405
      %v1515 = vpack.c.bf16 %v1412, %v1410
      %v1516 = vpack.c.bf16 %v1417, %v1415
      %v1517 = vpack.c.bf16 %v1422, %v1420
      %v1518 = vpack.c.bf16 %v1427, %v1425
      %v1519 = vpack.c.bf16 %v1432, %v1430
      %v1520 = vpack.c.bf16 %v1437, %v1435
      %v1521 = vpack.c.bf16 %v1442, %v1440
      %v1522 = vpack.c.bf16 %v1447, %v1445
      %v1523 = vpack.c.bf16 %v1452, %v1450
      %v1524 = vpack.c.bf16 %v1457, %v1455
      %v1525 = vpack.c.bf16 %v1462, %v1460
      %v1526 = vpack.c.bf16 %v1467, %v1465
      %v1527 = vpack.c.bf16 %v1472, %v1470
      %v1528 = vpack.c.bf16 %v1477, %v1475
      %v1545 = vunpack.c.l.b16 %v1483
      %v1546 = vunpack.c.l.b16 %v1484
      %v1547 = vunpack.c.l.b16 %v1485
      %v1548 = vunpack.c.l.b16 %v1486
      %v1549 = vunpack.c.l.b16 %v1487
      %v1550 = vunpack.c.l.b16 %v1488
      %v1551 = vunpack.c.l.b16 %v1489
      %v1552 = vunpack.c.l.b16 %v1490
      %v1553 = vunpack.c.l.b16 %v1491
      %v1554 = vunpack.c.l.b16 %v1492
      %v1555 = vunpack.c.l.b16 %v1493
      %v1556 = vunpack.c.l.b16 %v1494
      %v1557 = vunpack.c.l.b16 %v1510
      %v1558 = vunpack.c.l.b16 %v1511
      %v1559 = vunpack.c.l.b16 %v1512
      %v1560 = vunpack.c.l.b16 %v1513
      %v1561 = vpack.c.b16 %v1546, %v1545
      %v1562 = vpack.c.b16 %v1548, %v1547
      %v1563 = vpack.c.b16 %v1550, %v1549
      %v1564 = vpack.c.b16 %v1552, %v1551
      %v1565 = vpack.c.b16 %v1554, %v1553
      %v1566 = vpack.c.b16 %v1556, %v1555
      %v1567 = vpack.c.b16 %v1558, %v1557
      %v1568 = vpack.c.b16 %v1560, %v1559
      %1577 = vmatpush.bf16.msra.mxu0 %v1568
      %1578 = vmatpush.bf16.msra.mxu0 %v1567
      %1579 = vmatpush.bf16.msra.mxu0 %v1566
      %1580 = vmatpush.bf16.msra.mxu0 %v1565
      %1581 = vmatpush.bf16.msra.mxu0 %v1564
      %1582 = vmatpush.bf16.msra.mxu0 %v1563
      %1583 = vmatpush.bf16.msra.mxu0 %v1562
      %1584 = vmatpush.bf16.msra.mxu0 %v1561
      %1585 = vmatmul.bf16.gmra.mxu0 %v1514
      %v1586 = vpop.f32.mrf.mxu0
      %v1587 = vadd.f32 0.0, %v1586
      %v1588 = vpop.f32.mrf.mxu0
      %v1589 = vadd.f32 0.0, %v1588
      %1590 = vmatmul.bf16.gmra.mxu0 %v1515
      %v1591 = vpop.f32.mrf.mxu0
      %v1592 = vadd.f32 0.0, %v1591
      %v1593 = vpop.f32.mrf.mxu0
      %v1594 = vadd.f32 0.0, %v1593
      %1595 = vmatmul.bf16.gmra.mxu0 %v1516
      %v1596 = vpop.f32.mrf.mxu0
      %v1597 = vadd.f32 0.0, %v1596
      %v1598 = vpop.f32.mrf.mxu0
      %v1599 = vadd.f32 0.0, %v1598
      %1600 = vmatmul.bf16.gmra.mxu0 %v1517
      %v1601 = vpop.f32.mrf.mxu0
      %v1602 = vadd.f32 0.0, %v1601
      %v1603 = vpop.f32.mrf.mxu0
      %v1604 = vadd.f32 0.0, %v1603
      %1605 = vmatmul.bf16.gmra.mxu0 %v1518
      %v1606 = vpop.f32.mrf.mxu0
      %v1607 = vadd.f32 0.0, %v1606
      %v1608 = vpop.f32.mrf.mxu0
      %v1609 = vadd.f32 0.0, %v1608
      %1610 = vmatmul.bf16.gmra.mxu0 %v1519
      %v1611 = vpop.f32.mrf.mxu0
      %v1612 = vadd.f32 0.0, %v1611
      %v1613 = vpop.f32.mrf.mxu0
      %v1614 = vadd.f32 0.0, %v1613
      %1615 = vmatmul.bf16.gmra.mxu0 %v1520
      %v1616 = vpop.f32.mrf.mxu0
      %v1617 = vadd.f32 0.0, %v1616
      %v1618 = vpop.f32.mrf.mxu0
      %v1619 = vadd.f32 0.0, %v1618
      %1620 = vmatmul.bf16.gmra.mxu0 %v1521
      %v1621 = vpop.f32.mrf.mxu0
      %v1622 = vadd.f32 0.0, %v1621
      %v1623 = vpop.f32.mrf.mxu0
      %v1624 = vadd.f32 0.0, %v1623
      %1625 = vmatmul.bf16.gmra.mxu0 %v1522
      %v1626 = vpop.f32.mrf.mxu0
      %v1627 = vadd.f32 0.0, %v1626
      %v1628 = vpop.f32.mrf.mxu0
      %v1629 = vadd.f32 0.0, %v1628
      %1630 = vmatmul.bf16.gmra.mxu0 %v1523
      %v1631 = vpop.f32.mrf.mxu0
      %v1632 = vadd.f32 0.0, %v1631
      %v1633 = vpop.f32.mrf.mxu0
      %v1634 = vadd.f32 0.0, %v1633
      %1635 = vmatmul.bf16.gmra.mxu0 %v1524
      %v1636 = vpop.f32.mrf.mxu0
      %v1637 = vadd.f32 0.0, %v1636
      %v1638 = vpop.f32.mrf.mxu0
      %v1639 = vadd.f32 0.0, %v1638
      %1640 = vmatmul.bf16.gmra.mxu0 %v1525
      %v1641 = vpop.f32.mrf.mxu0
      %v1642 = vadd.f32 0.0, %v1641
      %v1643 = vpop.f32.mrf.mxu0
      %v1644 = vadd.f32 0.0, %v1643
      %1645 = vmatmul.bf16.gmra.mxu0 %v1526
      %v1646 = vpop.f32.mrf.mxu0
      %v1647 = vadd.f32 0.0, %v1646
      %v1648 = vpop.f32.mrf.mxu0
      %v1649 = vadd.f32 0.0, %v1648
      %1650 = vmatmul.bf16.gmra.mxu0 %v1527
      %v1651 = vpop.f32.mrf.mxu0
      %v1652 = vadd.f32 0.0, %v1651
      %v1653 = vpop.f32.mrf.mxu0
      %v1654 = vadd.f32 0.0, %v1653
      %1655 = vmatmul.bf16.gmra.mxu0 %v1528
      %v1656 = vpop.f32.mrf.mxu0
      %v1657 = vadd.f32 0.0, %v1656
      %v1658 = vpop.f32.mrf.mxu0
      %v1659 = vadd.f32 0.0, %v1658
      %1660 = vdwg.mxu0
      %v1665 = vunpack.c.l.b16 %v1479
      %v1666 = vunpack.c.l.b16 %v1480
      %v1667 = vunpack.c.l.b16 %v1481
      %v1668 = vunpack.c.l.b16 %v1482
      %v1669 = vpack.c.b16 %v1666, %v1665
      %v1670 = vpack.c.b16 %v1668, %v1667
      %1673 = vmatpush.bf16.msra.mxu0 %v1566
      %1674 = vmatpush.bf16.msra.mxu0 %v1565
      %1675 = vmatpush.bf16.msra.mxu0 %v1564
      %1676 = vmatpush.bf16.msra.mxu0 %v1563
      %1677 = vmatpush.bf16.msra.mxu0 %v1562
      %1678 = vmatpush.bf16.msra.mxu0 %v1561
      %1679 = vmatpush.bf16.msra.mxu0 %v1670
      %1680 = vmatpush.bf16.msra.mxu0 %v1669
      %1681 = vmatmul.bf16.gmra.mxu0 %v1495
      %v1682 = vpop.f32.mrf.mxu0
      %v1683 = vadd.f32 %v1587, %v1682
      %v1684 = vpop.f32.mrf.mxu0
      %v1685 = vadd.f32 %v1589, %v1684
      %1686 = vmatmul.bf16.gmra.mxu0 %v1496
      %v1687 = vpop.f32.mrf.mxu0
      %v1688 = vadd.f32 %v1592, %v1687
      %v1689 = vpop.f32.mrf.mxu0
      %v1690 = vadd.f32 %v1594, %v1689
      %1691 = vmatmul.bf16.gmra.mxu0 %v1497
      %v1692 = vpop.f32.mrf.mxu0
      %v1693 = vadd.f32 %v1597, %v1692
      %v1694 = vpop.f32.mrf.mxu0
      %v1695 = vadd.f32 %v1599, %v1694
      %1696 = vmatmul.bf16.gmra.mxu0 %v1498
      %v1697 = vpop.f32.mrf.mxu0
      %v1698 = vadd.f32 %v1602, %v1697
      %v1699 = vpop.f32.mrf.mxu0
      %v1700 = vadd.f32 %v1604, %v1699
      %1701 = vmatmul.bf16.gmra.mxu0 %v1499
      %v1702 = vpop.f32.mrf.mxu0
      %v1703 = vadd.f32 %v1607, %v1702
      %v1704 = vpop.f32.mrf.mxu0
      %v1705 = vadd.f32 %v1609, %v1704
      %1706 = vmatmul.bf16.gmra.mxu0 %v1500
      %v1707 = vpop.f32.mrf.mxu0
      %v1708 = vadd.f32 %v1612, %v1707
      %v1709 = vpop.f32.mrf.mxu0
      %v1710 = vadd.f32 %v1614, %v1709
      %1711 = vmatmul.bf16.gmra.mxu0 %v1501
      %v1712 = vpop.f32.mrf.mxu0
      %v1713 = vadd.f32 %v1617, %v1712
      %v1714 = vpop.f32.mrf.mxu0
      %v1715 = vadd.f32 %v1619, %v1714
      %1716 = vmatmul.bf16.gmra.mxu0 %v1502
      %v1717 = vpop.f32.mrf.mxu0
      %v1718 = vadd.f32 %v1622, %v1717
      %v1719 = vpop.f32.mrf.mxu0
      %v1720 = vadd.f32 %v1624, %v1719
      %1721 = vmatmul.bf16.gmra.mxu0 %v1503
      %v1722 = vpop.f32.mrf.mxu0
      %v1723 = vadd.f32 %v1627, %v1722
      %v1724 = vpop.f32.mrf.mxu0
      %v1725 = vadd.f32 %v1629, %v1724
      %1726 = vmatmul.bf16.gmra.mxu0 %v1504
      %v1727 = vpop.f32.mrf.mxu0
      %v1728 = vadd.f32 %v1632, %v1727
      %v1729 = vpop.f32.mrf.mxu0
      %v1730 = vadd.f32 %v1634, %v1729
      %1731 = vmatmul.bf16.gmra.mxu0 %v1505
      %v1732 = vpop.f32.mrf.mxu0
      %v1733 = vadd.f32 %v1637, %v1732
      %v1734 = vpop.f32.mrf.mxu0
      %v1735 = vadd.f32 %v1639, %v1734
      %1736 = vmatmul.bf16.gmra.mxu0 %v1506
      %v1737 = vpop.f32.mrf.mxu0
      %v1738 = vadd.f32 %v1642, %v1737
      %v1739 = vpop.f32.mrf.mxu0
      %v1740 = vadd.f32 %v1644, %v1739
      %1741 = vmatmul.bf16.gmra.mxu0 %v1507
      %v1742 = vpop.f32.mrf.mxu0
      %v1743 = vadd.f32 %v1647, %v1742
      %v1744 = vpop.f32.mrf.mxu0
      %v1745 = vadd.f32 %v1649, %v1744
      %1746 = vmatmul.bf16.gmra.mxu0 %v1508
      %v1747 = vpop.f32.mrf.mxu0
      %v1748 = vadd.f32 %v1652, %v1747
      %v1749 = vpop.f32.mrf.mxu0
      %v1750 = vadd.f32 %v1654, %v1749
      %1751 = vmatmul.bf16.gmra.mxu0 %v1509
      %v1752 = vpop.f32.mrf.mxu0
      %v1753 = vadd.f32 %v1657, %v1752
      %v1754 = vpop.f32.mrf.mxu0
      %v1755 = vadd.f32 %v1659, %v1754
      %1756 = vdwg.mxu0
      %v1757 = vperm.slane %v288, 4
      %v1758 = vadd.f32 %v1683, %v1757
      %v1759 = vadd.f32 %v1685, %v1757
      %v1760 = vadd.f32 %v1688, %v1757
      %v1761 = vadd.f32 %v1690, %v1757
      %v1762 = vadd.f32 %v1693, %v1757
      %v1763 = vadd.f32 %v1695, %v1757
      %v1764 = vadd.f32 %v1698, %v1757
      %v1765 = vadd.f32 %v1700, %v1757
      %v1766 = vadd.f32 %v1703, %v1757
      %v1767 = vadd.f32 %v1705, %v1757
      %v1768 = vadd.f32 %v1708, %v1757
      %v1769 = vadd.f32 %v1710, %v1757
      %v1770 = vadd.f32 %v1713, %v1757
      %v1771 = vadd.f32 %v1715, %v1757
      %v1772 = vadd.f32 %v1718, %v1757
      %v1773 = vadd.f32 %v1720, %v1757
      %v1774 = vadd.f32 %v1723, %v1757
      %v1775 = vadd.f32 %v1725, %v1757
      %v1776 = vadd.f32 %v1728, %v1757
      %v1777 = vadd.f32 %v1730, %v1757
      %v1778 = vadd.f32 %v1733, %v1757
      %v1779 = vadd.f32 %v1735, %v1757
      %v1780 = vadd.f32 %v1738, %v1757
      %v1781 = vadd.f32 %v1740, %v1757
      %v1782 = vadd.f32 %v1743, %v1757
      %v1783 = vadd.f32 %v1745, %v1757
      %v1784 = vadd.f32 %v1748, %v1757
      %v1785 = vadd.f32 %v1750, %v1757
      %v1786 = vadd.f32 %v1753, %v1757
      %v1787 = vadd.f32 %v1755, %v1757
      %v1788 = vmax.f32 %v1758, 0.0
      %v1789 = vmax.f32 %v1759, 0.0
      %v1790 = vmax.f32 %v1760, 0.0
      %v1791 = vmax.f32 %v1761, 0.0
      %v1792 = vmax.f32 %v1762, 0.0
      %v1793 = vmax.f32 %v1763, 0.0
      %v1794 = vmax.f32 %v1764, 0.0
      %v1795 = vmax.f32 %v1765, 0.0
      %v1796 = vmax.f32 %v1766, 0.0
      %v1797 = vmax.f32 %v1767, 0.0
      %v1798 = vmax.f32 %v1768, 0.0
      %v1799 = vmax.f32 %v1769, 0.0
      %v1800 = vmax.f32 %v1770, 0.0
      %v1801 = vmax.f32 %v1771, 0.0
      %v1802 = vmax.f32 %v1772, 0.0
      %v1803 = vmax.f32 %v1773, 0.0
      %v1804 = vmax.f32 %v1774, 0.0
      %v1805 = vmax.f32 %v1775, 0.0
      %v1806 = vmax.f32 %v1776, 0.0
      %v1807 = vmax.f32 %v1777, 0.0
      %v1808 = vmax.f32 %v1778, 0.0
      %v1809 = vmax.f32 %v1779, 0.0
      %v1810 = vmax.f32 %v1780, 0.0
      %v1811 = vmax.f32 %v1781, 0.0
      %v1812 = vmax.f32 %v1782, 0.0
      %v1813 = vmax.f32 %v1783, 0.0
      %v1814 = vmax.f32 %v1784, 0.0
      %v1815 = vmax.f32 %v1785, 0.0
      %v1816 = vmax.f32 %v1786, 0.0
      %v1817 = vmax.f32 %v1787, 0.0
      %v1818 = vld [vmem:[%s4 + $0x88] sm:$0xf]
      %v1819 = vld [vmem:[%s4 + $0x8c] sm:$0xf]
      %v1820 = vld [vmem:[%s4 + $0x90] sm:$0xf]
      %v1821 = vld [vmem:[%s4 + $0x94] sm:$0xf]
      %v1822 = vld [vmem:[%s4 + $0x98] sm:$0xf]
      %v1823 = vld [vmem:[%s4 + $0x9c] sm:$0xf]
      %v1824 = vld [vmem:[%s4 + $0xa0] sm:$0xf]
      %v1825 = vld [vmem:[%s4 + $0xa4] sm:$0xf]
      %v1826 = vld [vmem:[%s4 + $0xa8] sm:$0xf]
      %v1827 = vld [vmem:[%s4 + $0xac] sm:$0xf]
      %v1828 = vld [vmem:[%s4 + $0xb0] sm:$0xf]
      %v1829 = vld [vmem:[%s4 + $0xb4] sm:$0xf]
      %v1830 = vld [vmem:[%s4 + $0xb8] sm:$0xf]
      %v1831 = vld [vmem:[%s4 + $0xbc] sm:$0xf]
      %v1832 = vld [vmem:[%s4 + $0xc0] sm:$0xf]
      %v1833 = vld [vmem:[%s4 + $0xc4] sm:$0xf]
      %v1834 = vpack.c.bf16 %v1789, %v1788
      %v1835 = vpack.c.bf16 %v1791, %v1790
      %v1836 = vpack.c.bf16 %v1793, %v1792
      %v1837 = vpack.c.bf16 %v1795, %v1794
      %v1838 = vpack.c.bf16 %v1797, %v1796
      %v1839 = vpack.c.bf16 %v1799, %v1798
      %v1840 = vpack.c.bf16 %v1801, %v1800
      %v1841 = vpack.c.bf16 %v1803, %v1802
      %v1842 = vpack.c.bf16 %v1805, %v1804
      %v1843 = vpack.c.bf16 %v1807, %v1806
      %v1844 = vpack.c.bf16 %v1809, %v1808
      %v1845 = vpack.c.bf16 %v1811, %v1810
      %v1846 = vpack.c.bf16 %v1813, %v1812
      %v1847 = vpack.c.bf16 %v1815, %v1814
      %v1848 = vpack.c.bf16 %v1817, %v1816
      %v1849 = vperm.slane %v288, 5
      %v1866 = vunpack.c.l.b16 %v1818
      %v1867 = vunpack.c.l.b16 %v1819
      %v1868 = vunpack.c.l.b16 %v1820
      %v1869 = vunpack.c.l.b16 %v1821
      %v1870 = vunpack.c.l.b16 %v1822
      %v1871 = vunpack.c.l.b16 %v1823
      %v1872 = vunpack.c.l.b16 %v1824
      %v1873 = vunpack.c.l.b16 %v1825
      %v1874 = vunpack.c.l.b16 %v1826
      %v1875 = vunpack.c.l.b16 %v1827
      %v1876 = vunpack.c.l.b16 %v1828
      %v1877 = vunpack.c.l.b16 %v1829
      %v1878 = vunpack.c.l.b16 %v1830
      %v1879 = vunpack.c.l.b16 %v1831
      %v1880 = vunpack.c.l.b16 %v1832
      %v1881 = vunpack.c.l.b16 %v1833
      %v1882 = vpack.c.b16 %v1867, %v1866
      %v1883 = vpack.c.b16 %v1869, %v1868
      %v1884 = vpack.c.b16 %v1871, %v1870
      %v1885 = vpack.c.b16 %v1873, %v1872
      %v1886 = vpack.c.b16 %v1875, %v1874
      %v1887 = vpack.c.b16 %v1877, %v1876
      %v1888 = vpack.c.b16 %v1879, %v1878
      %v1889 = vpack.c.b16 %v1881, %v1880
      %1898 = vmatpush.bf16.msra.mxu0 %v1889
      %1899 = vmatpush.bf16.msra.mxu0 %v1888
      %1900 = vmatpush.bf16.msra.mxu0 %v1887
      %1901 = vmatpush.bf16.msra.mxu0 %v1886
      %1902 = vmatpush.bf16.msra.mxu0 %v1885
      %1903 = vmatpush.bf16.msra.mxu0 %v1884
      %1904 = vmatpush.bf16.msra.mxu0 %v1883
      %1905 = vmatpush.bf16.msra.mxu0 %v1882
      %1906 = vmatmul.bf16.gmra.mxu0 %v1834
      %v1907 = vpop.f32.mrf.mxu0
      %v1908 = vadd.f32 %v1849, %v1907
      %v1909 = vpop.f32.mrf.mxu0
      %v1910 = vadd.f32 %v1849, %v1909
      %1911 = vmatmul.bf16.gmra.mxu0 %v1835
      %v1912 = vpop.f32.mrf.mxu0
      %v1913 = vadd.f32 %v1849, %v1912
      %v1914 = vpop.f32.mrf.mxu0
      %v1915 = vadd.f32 %v1849, %v1914
      %1916 = vmatmul.bf16.gmra.mxu0 %v1836
      %v1917 = vpop.f32.mrf.mxu0
      %v1918 = vadd.f32 %v1849, %v1917
      %v1919 = vpop.f32.mrf.mxu0
      %v1920 = vadd.f32 %v1849, %v1919
      %1921 = vmatmul.bf16.gmra.mxu0 %v1837
      %v1922 = vpop.f32.mrf.mxu0
      %v1923 = vadd.f32 %v1849, %v1922
      %v1924 = vpop.f32.mrf.mxu0
      %v1925 = vadd.f32 %v1849, %v1924
      %1926 = vmatmul.bf16.gmra.mxu0 %v1838
      %v1927 = vpop.f32.mrf.mxu0
      %v1928 = vadd.f32 %v1849, %v1927
      %v1929 = vpop.f32.mrf.mxu0
      %v1930 = vadd.f32 %v1849, %v1929
      %1931 = vmatmul.bf16.gmra.mxu0 %v1839
      %v1932 = vpop.f32.mrf.mxu0
      %v1933 = vadd.f32 %v1849, %v1932
      %v1934 = vpop.f32.mrf.mxu0
      %v1935 = vadd.f32 %v1849, %v1934
      %1936 = vmatmul.bf16.gmra.mxu0 %v1840
      %v1937 = vpop.f32.mrf.mxu0
      %v1938 = vadd.f32 %v1849, %v1937
      %v1939 = vpop.f32.mrf.mxu0
      %v1940 = vadd.f32 %v1849, %v1939
      %1941 = vmatmul.bf16.gmra.mxu0 %v1841
      %v1942 = vpop.f32.mrf.mxu0
      %v1943 = vadd.f32 %v1849, %v1942
      %v1944 = vpop.f32.mrf.mxu0
      %v1945 = vadd.f32 %v1849, %v1944
      %1946 = vmatmul.bf16.gmra.mxu0 %v1842
      %v1947 = vpop.f32.mrf.mxu0
      %v1948 = vadd.f32 %v1849, %v1947
      %v1949 = vpop.f32.mrf.mxu0
      %v1950 = vadd.f32 %v1849, %v1949
      %1951 = vmatmul.bf16.gmra.mxu0 %v1843
      %v1952 = vpop.f32.mrf.mxu0
      %v1953 = vadd.f32 %v1849, %v1952
      %v1954 = vpop.f32.mrf.mxu0
      %v1955 = vadd.f32 %v1849, %v1954
      %1956 = vmatmul.bf16.gmra.mxu0 %v1844
      %v1957 = vpop.f32.mrf.mxu0
      %v1958 = vadd.f32 %v1849, %v1957
      %v1959 = vpop.f32.mrf.mxu0
      %v1960 = vadd.f32 %v1849, %v1959
      %1961 = vmatmul.bf16.gmra.mxu0 %v1845
      %v1962 = vpop.f32.mrf.mxu0
      %v1963 = vadd.f32 %v1849, %v1962
      %v1964 = vpop.f32.mrf.mxu0
      %v1965 = vadd.f32 %v1849, %v1964
      %1966 = vmatmul.bf16.gmra.mxu0 %v1846
      %v1967 = vpop.f32.mrf.mxu0
      %v1968 = vadd.f32 %v1849, %v1967
      %v1969 = vpop.f32.mrf.mxu0
      %v1970 = vadd.f32 %v1849, %v1969
      %1971 = vmatmul.bf16.gmra.mxu0 %v1847
      %v1972 = vpop.f32.mrf.mxu0
      %v1973 = vadd.f32 %v1849, %v1972
      %v1974 = vpop.f32.mrf.mxu0
      %v1975 = vadd.f32 %v1849, %v1974
      %1976 = vmatmul.bf16.gmra.mxu0 %v1848
      %v1977 = vpop.f32.mrf.mxu0
      %v1978 = vadd.f32 %v1849, %v1977
      %v1979 = vpop.f32.mrf.mxu0
      %v1980 = vadd.f32 %v1849, %v1979
      %1981 = vdwg.mxu0
      %v1982 = vpack.c.bf16 %v1910, %v1908
      %v1983 = vpack.c.bf16 %v1915, %v1913
      %v1984 = vpack.c.bf16 %v1920, %v1918
      %v1985 = vpack.c.bf16 %v1925, %v1923
      %v1986 = vpack.c.bf16 %v1930, %v1928
      %v1987 = vpack.c.bf16 %v1935, %v1933
      %v1988 = vpack.c.bf16 %v1940, %v1938
      %v1989 = vpack.c.bf16 %v1945, %v1943
      %v1990 = vpack.c.bf16 %v1950, %v1948
      %v1991 = vpack.c.bf16 %v1955, %v1953
      %v1992 = vpack.c.bf16 %v1960, %v1958
      %v1993 = vpack.c.bf16 %v1965, %v1963
      %v1994 = vpack.c.bf16 %v1970, %v1968
      %v1995 = vpack.c.bf16 %v1975, %v1973
      %v1996 = vpack.c.bf16 %v1980, %v1978
      %vm1997 = vcmask 916480
      %v1999 = vsel %vm1997, %v1288, 0
      %v2002 = vsel %vm1997, %v1290, 0
      %v2005 = vsel %vm1997, %v1292, 0
      %v2008 = vsel %vm1997, %v1294, 0
      %v2011 = vsel %vm1997, %v1296, 0
      %v2014 = vsel %vm1997, %v1298, 0
      %v2017 = vsel %vm1997, %v1300, 0
      %v2020 = vsel %vm1997, %v1302, 0
      %2022 = vmatpush.bf16.msra.mxu0 %v1989
      %2023 = vmatpush.bf16.msra.mxu0 %v1988
      %2024 = vmatpush.bf16.msra.mxu0 %v1987
      %2025 = vmatpush.bf16.msra.mxu0 %v1986
      %2026 = vmatpush.bf16.msra.mxu0 %v1985
      %2027 = vmatpush.bf16.msra.mxu0 %v1984
      %2028 = vmatpush.bf16.msra.mxu0 %v1983
      %2029 = vmatpush.bf16.msra.mxu0 %v1982
      %2030 = vmatmul.bf16.gmra.mxu0 %v1287
      %v2031 = vpop.f32.mrf.mxu0
      %v2032 = vadd.f32 0.0, %v2031
      %v2033 = vpop.f32.mrf.mxu0
      %v2034 = vadd.f32 0.0, %v2033
      %2035 = vmatmul.bf16.gmra.mxu0 %v1289
      %v2036 = vpop.f32.mrf.mxu0
      %v2037 = vadd.f32 0.0, %v2036
      %v2038 = vpop.f32.mrf.mxu0
      %v2039 = vadd.f32 0.0, %v2038
      %2040 = vmatmul.bf16.gmra.mxu0 %v1291
      %v2041 = vpop.f32.mrf.mxu0
      %v2042 = vadd.f32 0.0, %v2041
      %v2043 = vpop.f32.mrf.mxu0
      %v2044 = vadd.f32 0.0, %v2043
      %2045 = vmatmul.bf16.gmra.mxu0 %v1293
      %v2046 = vpop.f32.mrf.mxu0
      %v2047 = vadd.f32 0.0, %v2046
      %v2048 = vpop.f32.mrf.mxu0
      %v2049 = vadd.f32 0.0, %v2048
      %2050 = vmatmul.bf16.gmra.mxu0 %v1295
      %v2051 = vpop.f32.mrf.mxu0
      %v2052 = vadd.f32 0.0, %v2051
      %v2053 = vpop.f32.mrf.mxu0
      %v2054 = vadd.f32 0.0, %v2053
      %2055 = vmatmul.bf16.gmra.mxu0 %v1297
      %v2056 = vpop.f32.mrf.mxu0
      %v2057 = vadd.f32 0.0, %v2056
      %v2058 = vpop.f32.mrf.mxu0
      %v2059 = vadd.f32 0.0, %v2058
      %2060 = vmatmul.bf16.gmra.mxu0 %v1299
      %v2061 = vpop.f32.mrf.mxu0
      %v2062 = vadd.f32 0.0, %v2061
      %v2063 = vpop.f32.mrf.mxu0
      %v2064 = vadd.f32 0.0, %v2063
      %2065 = vmatmul.bf16.gmra.mxu0 %v1301
      %v2066 = vpop.f32.mrf.mxu0
      %v2067 = vadd.f32 0.0, %v2066
      %v2068 = vpop.f32.mrf.mxu0
      %v2069 = vadd.f32 0.0, %v2068
      %2070 = vdwg.mxu0
      %2071 = vmatpush.bf16.msra.mxu0 0
      %2072 = vmatpush.bf16.msra.mxu0 %v1996
      %2073 = vmatpush.bf16.msra.mxu0 %v1995
      %2074 = vmatpush.bf16.msra.mxu0 %v1994
      %2075 = vmatpush.bf16.msra.mxu0 %v1993
      %2076 = vmatpush.bf16.msra.mxu0 %v1992
      %2077 = vmatpush.bf16.msra.mxu0 %v1991
      %2078 = vmatpush.bf16.msra.mxu0 %v1990
      %2079 = vmatmul.bf16.gmra.mxu0 %v1999
      %v2080 = vpop.f32.mrf.mxu0
      %v2081 = vadd.f32 %v2032, %v2080
      %v2082 = vpop.f32.mrf.mxu0
      %v2083 = vadd.f32 %v2034, %v2082
      %2084 = vmatmul.bf16.gmra.mxu0 %v2002
      %v2085 = vpop.f32.mrf.mxu0
      %v2086 = vadd.f32 %v2037, %v2085
      %v2087 = vpop.f32.mrf.mxu0
      %v2088 = vadd.f32 %v2039, %v2087
      %2089 = vmatmul.bf16.gmra.mxu0 %v2005
      %v2090 = vpop.f32.mrf.mxu0
      %v2091 = vadd.f32 %v2042, %v2090
      %v2092 = vpop.f32.mrf.mxu0
      %v2093 = vadd.f32 %v2044, %v2092
      %2094 = vmatmul.bf16.gmra.mxu0 %v2008
      %v2095 = vpop.f32.mrf.mxu0
      %v2096 = vadd.f32 %v2047, %v2095
      %v2097 = vpop.f32.mrf.mxu0
      %v2098 = vadd.f32 %v2049, %v2097
      %2099 = vmatmul.bf16.gmra.mxu0 %v2011
      %v2100 = vpop.f32.mrf.mxu0
      %v2101 = vadd.f32 %v2052, %v2100
      %v2102 = vpop.f32.mrf.mxu0
      %v2103 = vadd.f32 %v2054, %v2102
      %2104 = vmatmul.bf16.gmra.mxu0 %v2014
      %v2105 = vpop.f32.mrf.mxu0
      %v2106 = vadd.f32 %v2057, %v2105
      %v2107 = vpop.f32.mrf.mxu0
      %v2108 = vadd.f32 %v2059, %v2107
      %2109 = vmatmul.bf16.gmra.mxu0 %v2017
      %v2110 = vpop.f32.mrf.mxu0
      %v2111 = vadd.f32 %v2062, %v2110
      %v2112 = vpop.f32.mrf.mxu0
      %v2113 = vadd.f32 %v2064, %v2112
      %2114 = vmatmul.bf16.gmra.mxu0 %v2020
      %v2115 = vpop.f32.mrf.mxu0
      %v2116 = vadd.f32 %v2067, %v2115
      %v2117 = vpop.f32.mrf.mxu0
      %v2118 = vadd.f32 %v2069, %v2117
      %2119 = vdwg.mxu0
      %v2120 = vld [vmem:[%s4 + $0xa8] sm:$0xf]
      %v2121 = vld [vmem:[%s4 + $0xac] sm:$0xf]
      %v2122 = vld [vmem:[%s4 + $0xb0] sm:$0xf]
      %v2123 = vld [vmem:[%s4 + $0xb4] sm:$0xf]
      %v2124 = vld [vmem:[%s4 + $0xb8] sm:$0xf]
      %v2125 = vld [vmem:[%s4 + $0xbc] sm:$0xf]
      %v2126 = vld [vmem:[%s4 + $0xc0] sm:$0xf]
      %v2127 = vld [vmem:[%s4 + $0xc4] sm:$0xf]
      %v2128 = vld [vmem:[%s4 + $0xc8] sm:$0xf]
      %v2129 = vld [vmem:[%s4 + $0xcc] sm:$0xf]
      %v2130 = vld [vmem:[%s4 + $0xd0] sm:$0xf]
      %v2131 = vld [vmem:[%s4 + $0xd4] sm:$0xf]
      %v2132 = vld [vmem:[%s4 + $0xd8] sm:$0xf]
      %v2133 = vld [vmem:[%s4 + $0xdc] sm:$0xf]
      %v2134 = vld [vmem:[%s4 + $0xe0] sm:$0xf]
      %v2135 = vld [vmem:[%s4 + $0xe4] sm:$0xf]
      %v2136 = vld [vmem:[%s4 + $0xe8] sm:$0xf]
      %v2137 = vld [vmem:[%s4 + $0xec] sm:$0xf]
      %v2138 = vld [vmem:[%s4 + $0xf0] sm:$0xf]
      %v2139 = vld [vmem:[%s4 + $0xf4] sm:$0xf]
      %v2140 = vpack.c.bf16 %v2083, %v2081
      %v2141 = vpack.c.bf16 %v2088, %v2086
      %v2142 = vpack.c.bf16 %v2093, %v2091
      %v2143 = vpack.c.bf16 %v2098, %v2096
      %v2144 = vpack.c.bf16 %v2103, %v2101
      %v2145 = vpack.c.bf16 %v2108, %v2106
      %v2146 = vpack.c.bf16 %v2113, %v2111
      %v2147 = vpack.c.bf16 %v2118, %v2116
      %v2164 = vunpack.c.l.b16 %v2124
      %v2165 = vunpack.c.l.b16 %v2125
      %v2166 = vunpack.c.l.b16 %v2126
      %v2167 = vunpack.c.l.b16 %v2127
      %v2168 = vunpack.c.l.b16 %v2128
      %v2169 = vunpack.c.l.b16 %v2129
      %v2170 = vunpack.c.l.b16 %v2130
      %v2171 = vunpack.c.l.b16 %v2131
      %v2172 = vunpack.c.l.b16 %v2132
      %v2173 = vunpack.c.l.b16 %v2133
      %v2174 = vunpack.c.l.b16 %v2134
      %v2175 = vunpack.c.l.b16 %v2135
      %v2176 = vunpack.c.l.b16 %v2136
      %v2177 = vunpack.c.l.b16 %v2137
      %v2178 = vunpack.c.l.b16 %v2138
      %v2179 = vunpack.c.l.b16 %v2139
      %v2180 = vpack.c.b16 %v2165, %v2164
      %v2181 = vpack.c.b16 %v2167, %v2166
      %v2182 = vpack.c.b16 %v2169, %v2168
      %v2183 = vpack.c.b16 %v2171, %v2170
      %v2184 = vpack.c.b16 %v2173, %v2172
      %v2185 = vpack.c.b16 %v2175, %v2174
      %v2186 = vpack.c.b16 %v2177, %v2176
      %v2187 = vpack.c.b16 %v2179, %v2178
      %2196 = vmatpush.bf16.msra.mxu0 %v2187
      %2197 = vmatpush.bf16.msra.mxu0 %v2186
      %2198 = vmatpush.bf16.msra.mxu0 %v2185
      %2199 = vmatpush.bf16.msra.mxu0 %v2184
      %2200 = vmatpush.bf16.msra.mxu0 %v2183
      %2201 = vmatpush.bf16.msra.mxu0 %v2182
      %2202 = vmatpush.bf16.msra.mxu0 %v2181
      %2203 = vmatpush.bf16.msra.mxu0 %v2180
      %2204 = vmatmul.bf16.gmra.mxu0 %v2140
      %v2205 = vpop.f32.mrf.mxu0
      %v2206 = vadd.f32 0.0, %v2205
      %v2207 = vpop.f32.mrf.mxu0
      %v2208 = vadd.f32 0.0, %v2207
      %2209 = vmatmul.bf16.gmra.mxu0 %v2141
      %v2210 = vpop.f32.mrf.mxu0
      %v2211 = vadd.f32 0.0, %v2210
      %v2212 = vpop.f32.mrf.mxu0
      %v2213 = vadd.f32 0.0, %v2212
      %2214 = vmatmul.bf16.gmra.mxu0 %v2142
      %v2215 = vpop.f32.mrf.mxu0
      %v2216 = vadd.f32 0.0, %v2215
      %v2217 = vpop.f32.mrf.mxu0
      %v2218 = vadd.f32 0.0, %v2217
      %2219 = vmatmul.bf16.gmra.mxu0 %v2143
      %v2220 = vpop.f32.mrf.mxu0
      %v2221 = vadd.f32 0.0, %v2220
      %v2222 = vpop.f32.mrf.mxu0
      %v2223 = vadd.f32 0.0, %v2222
      %2224 = vmatmul.bf16.gmra.mxu0 %v2144
      %v2225 = vpop.f32.mrf.mxu0
      %v2226 = vadd.f32 0.0, %v2225
      %v2227 = vpop.f32.mrf.mxu0
      %v2228 = vadd.f32 0.0, %v2227
      %2229 = vmatmul.bf16.gmra.mxu0 %v2145
      %v2230 = vpop.f32.mrf.mxu0
      %v2231 = vadd.f32 0.0, %v2230
      %v2232 = vpop.f32.mrf.mxu0
      %v2233 = vadd.f32 0.0, %v2232
      %2234 = vmatmul.bf16.gmra.mxu0 %v2146
      %v2235 = vpop.f32.mrf.mxu0
      %v2236 = vadd.f32 0.0, %v2235
      %v2237 = vpop.f32.mrf.mxu0
      %v2238 = vadd.f32 0.0, %v2237
      %2239 = vmatmul.bf16.gmra.mxu0 %v2147
      %v2240 = vpop.f32.mrf.mxu0
      %v2241 = vadd.f32 0.0, %v2240
      %v2242 = vpop.f32.mrf.mxu0
      %v2243 = vadd.f32 0.0, %v2242
      %2244 = vdwg.mxu0
      %v2249 = vunpack.c.l.b16 %v2120
      %v2250 = vunpack.c.l.b16 %v2121
      %v2251 = vunpack.c.l.b16 %v2122
      %v2252 = vunpack.c.l.b16 %v2123
      %v2253 = vpack.c.b16 %v2250, %v2249
      %v2254 = vpack.c.b16 %v2252, %v2251
      %2257 = vmatpush.bf16.msra.mxu0 %v2185
      %2258 = vmatpush.bf16.msra.mxu0 %v2184
      %2259 = vmatpush.bf16.msra.mxu0 %v2183
      %2260 = vmatpush.bf16.msra.mxu0 %v2182
      %2261 = vmatpush.bf16.msra.mxu0 %v2181
      %2262 = vmatpush.bf16.msra.mxu0 %v2180
      %2263 = vmatpush.bf16.msra.mxu0 %v2254
      %2264 = vmatpush.bf16.msra.mxu0 %v2253
      %2265 = vmatmul.bf16.gmra.mxu0 %v1303
      %v2266 = vpop.f32.mrf.mxu0
      %v2267 = vadd.f32 %v2206, %v2266
      %v2268 = vpop.f32.mrf.mxu0
      %v2269 = vadd.f32 %v2208, %v2268
      %2270 = vmatmul.bf16.gmra.mxu0 %v1304
      %v2271 = vpop.f32.mrf.mxu0
      %v2272 = vadd.f32 %v2211, %v2271
      %v2273 = vpop.f32.mrf.mxu0
      %v2274 = vadd.f32 %v2213, %v2273
      %2275 = vmatmul.bf16.gmra.mxu0 %v1305
      %v2276 = vpop.f32.mrf.mxu0
      %v2277 = vadd.f32 %v2216, %v2276
      %v2278 = vpop.f32.mrf.mxu0
      %v2279 = vadd.f32 %v2218, %v2278
      %2280 = vmatmul.bf16.gmra.mxu0 %v1306
      %v2281 = vpop.f32.mrf.mxu0
      %v2282 = vadd.f32 %v2221, %v2281
      %v2283 = vpop.f32.mrf.mxu0
      %v2284 = vadd.f32 %v2223, %v2283
      %2285 = vmatmul.bf16.gmra.mxu0 %v1307
      %v2286 = vpop.f32.mrf.mxu0
      %v2287 = vadd.f32 %v2226, %v2286
      %v2288 = vpop.f32.mrf.mxu0
      %v2289 = vadd.f32 %v2228, %v2288
      %2290 = vmatmul.bf16.gmra.mxu0 %v1308
      %v2291 = vpop.f32.mrf.mxu0
      %v2292 = vadd.f32 %v2231, %v2291
      %v2293 = vpop.f32.mrf.mxu0
      %v2294 = vadd.f32 %v2233, %v2293
      %2295 = vmatmul.bf16.gmra.mxu0 %v1309
      %v2296 = vpop.f32.mrf.mxu0
      %v2297 = vadd.f32 %v2236, %v2296
      %v2298 = vpop.f32.mrf.mxu0
      %v2299 = vadd.f32 %v2238, %v2298
      %2300 = vmatmul.bf16.gmra.mxu0 %v1310
      %v2301 = vpop.f32.mrf.mxu0
      %v2302 = vadd.f32 %v2241, %v2301
      %v2303 = vpop.f32.mrf.mxu0
      %v2304 = vadd.f32 %v2243, %v2303
      %2305 = vdwg.mxu0
      %v2306 = vperm.slane %v288, 6
      %v2307 = vadd.f32 %v2267, %v2306
      %v2308 = vadd.f32 %v2269, %v2306
      %v2309 = vadd.f32 %v2272, %v2306
      %v2310 = vadd.f32 %v2274, %v2306
      %v2311 = vadd.f32 %v2277, %v2306
      %v2312 = vadd.f32 %v2279, %v2306
      %v2313 = vadd.f32 %v2282, %v2306
      %v2314 = vadd.f32 %v2284, %v2306
      %v2315 = vadd.f32 %v2287, %v2306
      %v2316 = vadd.f32 %v2289, %v2306
      %v2317 = vadd.f32 %v2292, %v2306
      %v2318 = vadd.f32 %v2294, %v2306
      %v2319 = vadd.f32 %v2297, %v2306
      %v2320 = vadd.f32 %v2299, %v2306
      %v2321 = vadd.f32 %v2302, %v2306
      %v2322 = vadd.f32 %v2304, %v2306
      %v2323 = vmax.f32 %v2307, 0.0
      %v2324 = vmax.f32 %v2308, 0.0
      %v2325 = vmax.f32 %v2309, 0.0
      %v2326 = vmax.f32 %v2310, 0.0
      %v2327 = vmax.f32 %v2311, 0.0
      %v2328 = vmax.f32 %v2312, 0.0
      %v2329 = vmax.f32 %v2313, 0.0
      %v2330 = vmax.f32 %v2314, 0.0
      %v2331 = vmax.f32 %v2315, 0.0
      %v2332 = vmax.f32 %v2316, 0.0
      %v2333 = vmax.f32 %v2317, 0.0
      %v2334 = vmax.f32 %v2318, 0.0
      %v2335 = vmax.f32 %v2319, 0.0
      %v2336 = vmax.f32 %v2320, 0.0
      %v2337 = vmax.f32 %v2321, 0.0
      %v2338 = vmax.f32 %v2322, 0.0
      %v2339 = vld [vmem:[%s4 + $0xc8] sm:$0xf]
      %v2340 = vld [vmem:[%s4 + $0xcc] sm:$0xf]
      %v2341 = vld [vmem:[%s4 + $0xd0] sm:$0xf]
      %v2342 = vld [vmem:[%s4 + $0xd4] sm:$0xf]
      %v2343 = vld [vmem:[%s4 + $0xd8] sm:$0xf]
      %v2344 = vld [vmem:[%s4 + $0xdc] sm:$0xf]
      %v2345 = vld [vmem:[%s4 + $0xe0] sm:$0xf]
      %v2346 = vld [vmem:[%s4 + $0xe4] sm:$0xf]
      %v2347 = vld [vmem:[%s4 + $0xe8] sm:$0xf]
      %v2348 = vld [vmem:[%s4 + $0xec] sm:$0xf]
      %v2349 = vld [vmem:[%s4 + $0xf0] sm:$0xf]
      %v2350 = vld [vmem:[%s4 + $0xf4] sm:$0xf]
      %v2351 = vld [vmem:[%s4 + $0xf8] sm:$0xf]
      %v2352 = vld [vmem:[%s4 + $0xfc] sm:$0xf]
      %v2353 = vld [vmem:[%s4 + $0x100] sm:$0xf]
      %v2354 = vld [vmem:[%s4 + $0x104] sm:$0xf]
      %v2355 = vpack.c.bf16 %v2324, %v2323
      %v2356 = vpack.c.bf16 %v2326, %v2325
      %v2357 = vpack.c.bf16 %v2328, %v2327
      %v2358 = vpack.c.bf16 %v2330, %v2329
      %v2359 = vpack.c.bf16 %v2332, %v2331
      %v2360 = vpack.c.bf16 %v2334, %v2333
      %v2361 = vpack.c.bf16 %v2336, %v2335
      %v2362 = vpack.c.bf16 %v2338, %v2337
      %v2363 = vperm.slane %v288, 7
      %v2380 = vunpack.c.l.b16 %v2339
      %v2381 = vunpack.c.l.b16 %v2340
      %v2382 = vunpack.c.l.b16 %v2341
      %v2383 = vunpack.c.l.b16 %v2342
      %v2384 = vunpack.c.l.b16 %v2343
      %v2385 = vunpack.c.l.b16 %v2344
      %v2386 = vunpack.c.l.b16 %v2345
      %v2387 = vunpack.c.l.b16 %v2346
      %v2388 = vunpack.c.l.b16 %v2347
      %v2389 = vunpack.c.l.b16 %v2348
      %v2390 = vunpack.c.l.b16 %v2349
      %v2391 = vunpack.c.l.b16 %v2350
      %v2392 = vunpack.c.l.b16 %v2351
      %v2393 = vunpack.c.l.b16 %v2352
      %v2394 = vunpack.c.l.b16 %v2353
      %v2395 = vunpack.c.l.b16 %v2354
      %v2396 = vpack.c.b16 %v2381, %v2380
      %v2397 = vpack.c.b16 %v2383, %v2382
      %v2398 = vpack.c.b16 %v2385, %v2384
      %v2399 = vpack.c.b16 %v2387, %v2386
      %v2400 = vpack.c.b16 %v2389, %v2388
      %v2401 = vpack.c.b16 %v2391, %v2390
      %v2402 = vpack.c.b16 %v2393, %v2392
      %v2403 = vpack.c.b16 %v2395, %v2394
      %2412 = vmatpush.bf16.msra.mxu0 %v2403
      %2413 = vmatpush.bf16.msra.mxu0 %v2402
      %2414 = vmatpush.bf16.msra.mxu0 %v2401
      %2415 = vmatpush.bf16.msra.mxu0 %v2400
      %2416 = vmatpush.bf16.msra.mxu0 %v2399
      %2417 = vmatpush.bf16.msra.mxu0 %v2398
      %2418 = vmatpush.bf16.msra.mxu0 %v2397
      %2419 = vmatpush.bf16.msra.mxu0 %v2396
      %2420 = vmatmul.bf16.gmra.mxu0 %v2355
      %v2421 = vpop.f32.mrf.mxu0
      %v2422 = vadd.f32 %v2363, %v2421
      %v2423 = vpop.f32.mrf.mxu0
      %v2424 = vadd.f32 %v2363, %v2423
      %2425 = vmatmul.bf16.gmra.mxu0 %v2356
      %v2426 = vpop.f32.mrf.mxu0
      %v2427 = vadd.f32 %v2363, %v2426
      %v2428 = vpop.f32.mrf.mxu0
      %v2429 = vadd.f32 %v2363, %v2428
      %2430 = vmatmul.bf16.gmra.mxu0 %v2357
      %v2431 = vpop.f32.mrf.mxu0
      %v2432 = vadd.f32 %v2363, %v2431
      %v2433 = vpop.f32.mrf.mxu0
      %v2434 = vadd.f32 %v2363, %v2433
      %2435 = vmatmul.bf16.gmra.mxu0 %v2358
      %v2436 = vpop.f32.mrf.mxu0
      %v2437 = vadd.f32 %v2363, %v2436
      %v2438 = vpop.f32.mrf.mxu0
      %v2439 = vadd.f32 %v2363, %v2438
      %2440 = vmatmul.bf16.gmra.mxu0 %v2359
      %v2441 = vpop.f32.mrf.mxu0
      %v2442 = vadd.f32 %v2363, %v2441
      %v2443 = vpop.f32.mrf.mxu0
      %v2444 = vadd.f32 %v2363, %v2443
      %2445 = vmatmul.bf16.gmra.mxu0 %v2360
      %v2446 = vpop.f32.mrf.mxu0
      %v2447 = vadd.f32 %v2363, %v2446
      %v2448 = vpop.f32.mrf.mxu0
      %v2449 = vadd.f32 %v2363, %v2448
      %2450 = vmatmul.bf16.gmra.mxu0 %v2361
      %v2451 = vpop.f32.mrf.mxu0
      %v2452 = vadd.f32 %v2363, %v2451
      %v2453 = vpop.f32.mrf.mxu0
      %v2454 = vadd.f32 %v2363, %v2453
      %2455 = vmatmul.bf16.gmra.mxu0 %v2362
      %v2456 = vpop.f32.mrf.mxu0
      %v2457 = vadd.f32 %v2363, %v2456
      %v2458 = vpop.f32.mrf.mxu0
      %v2459 = vadd.f32 %v2363, %v2458
      %2460 = vdwg.mxu0
      %v2461 = vadd.f32 %v772, %v2422
      %v2462 = vadd.f32 %v774, %v2424
      %v2463 = vadd.f32 %v777, %v2427
      %v2464 = vadd.f32 %v779, %v2429
      %v2465 = vadd.f32 %v782, %v2432
      %v2466 = vadd.f32 %v784, %v2434
      %v2467 = vadd.f32 %v787, %v2437
      %v2468 = vadd.f32 %v789, %v2439
      %v2469 = vadd.f32 %v792, %v2442
      %v2470 = vadd.f32 %v794, %v2444
      %v2471 = vadd.f32 %v797, %v2447
      %v2472 = vadd.f32 %v799, %v2449
      %v2473 = vadd.f32 %v802, %v2452
      %v2474 = vadd.f32 %v804, %v2454
      %v2475 = vadd.f32 %v807, %v2457
      %v2476 = vadd.f32 %v809, %v2459
      %v2477 = vld [vmem:[%s4 + $0xe8] sm:$0xf]
      %v2478 = vld [vmem:[%s4 + $0xec] sm:$0xf]
      %v2479 = vld [vmem:[%s4 + $0xf0] sm:$0xf]
      %v2480 = vld [vmem:[%s4 + $0xf4] sm:$0xf]
      %v2481 = vld [vmem:[%s4 + $0xf8] sm:$0xf]
      %v2482 = vld [vmem:[%s4 + $0xfc] sm:$0xf]
      %v2483 = vld [vmem:[%s4 + $0x100] sm:$0xf]
      %v2484 = vld [vmem:[%s4 + $0x104] sm:$0xf]
      %v2485 = vld [vmem:[%s4 + $0x108] sm:$0xf]
      %v2486 = vld [vmem:[%s4 + $0x10c] sm:$0xf]
      %v2487 = vld [vmem:[%s4 + $0x110] sm:$0xf]
      %v2488 = vld [vmem:[%s4 + $0x114] sm:$0xf]
      %v2489 = vld [vmem:[%s4 + $0x118] sm:$0xf]
      %v2490 = vld [vmem:[%s4 + $0x11c] sm:$0xf]
      %v2491 = vld [vmem:[%s4 + $0x120] sm:$0xf]
      %v2492 = vld [vmem:[%s4 + $0x124] sm:$0xf]
      %v2493 = vpack.c.bf16 %v2462, %v2461
      %v2494 = vpack.c.bf16 %v2464, %v2463
      %v2495 = vpack.c.bf16 %v2466, %v2465
      %v2496 = vpack.c.bf16 %v2468, %v2467
      %v2497 = vpack.c.bf16 %v2470, %v2469
      %v2498 = vpack.c.bf16 %v2472, %v2471
      %v2499 = vpack.c.bf16 %v2474, %v2473
      %v2500 = vpack.c.bf16 %v2476, %v2475
      %v2501 = vperm.slane %v289, 0
      %v2518 = vunpack.c.l.b16 %v2477
      %v2519 = vunpack.c.l.b16 %v2478
      %v2520 = vunpack.c.l.b16 %v2479
      %v2521 = vunpack.c.l.b16 %v2480
      %v2522 = vunpack.c.l.b16 %v2481
      %v2523 = vunpack.c.l.b16 %v2482
      %v2524 = vunpack.c.l.b16 %v2483
      %v2525 = vunpack.c.l.b16 %v2484
      %v2526 = vunpack.c.l.b16 %v2485
      %v2527 = vunpack.c.l.b16 %v2486
      %v2528 = vunpack.c.l.b16 %v2487
      %v2529 = vunpack.c.l.b16 %v2488
      %v2530 = vunpack.c.l.b16 %v2489
      %v2531 = vunpack.c.l.b16 %v2490
      %v2532 = vunpack.c.l.b16 %v2491
      %v2533 = vunpack.c.l.b16 %v2492
      %v2534 = vpack.c.b16 %v2519, %v2518
      %v2535 = vpack.c.b16 %v2521, %v2520
      %v2536 = vpack.c.b16 %v2523, %v2522
      %v2537 = vpack.c.b16 %v2525, %v2524
      %v2538 = vpack.c.b16 %v2527, %v2526
      %v2539 = vpack.c.b16 %v2529, %v2528
      %v2540 = vpack.c.b16 %v2531, %v2530
      %v2541 = vpack.c.b16 %v2533, %v2532
      %2550 = vmatpush.bf16.msra.mxu0 %v2541
      %2551 = vmatpush.bf16.msra.mxu0 %v2540
      %2552 = vmatpush.bf16.msra.mxu0 %v2539
      %2553 = vmatpush.bf16.msra.mxu0 %v2538
      %2554 = vmatpush.bf16.msra.mxu0 %v2537
      %2555 = vmatpush.bf16.msra.mxu0 %v2536
      %2556 = vmatpush.bf16.msra.mxu0 %v2535
      %2557 = vmatpush.bf16.msra.mxu0 %v2534
      %2558 = vmatmul.bf16.gmra.mxu0 %v2493
      %v2559 = vpop.f32.mrf.mxu0
      %v2560 = vadd.f32 %v2501, %v2559
      %v2561 = vpop.f32.mrf.mxu0
      %v2562 = vadd.f32 %v2501, %v2561
      %2563 = vmatmul.bf16.gmra.mxu0 %v2494
      %v2564 = vpop.f32.mrf.mxu0
      %v2565 = vadd.f32 %v2501, %v2564
      %v2566 = vpop.f32.mrf.mxu0
      %v2567 = vadd.f32 %v2501, %v2566
      %2568 = vmatmul.bf16.gmra.mxu0 %v2495
      %v2569 = vpop.f32.mrf.mxu0
      %v2570 = vadd.f32 %v2501, %v2569
      %v2571 = vpop.f32.mrf.mxu0
      %v2572 = vadd.f32 %v2501, %v2571
      %2573 = vmatmul.bf16.gmra.mxu0 %v2496
      %v2574 = vpop.f32.mrf.mxu0
      %v2575 = vadd.f32 %v2501, %v2574
      %v2576 = vpop.f32.mrf.mxu0
      %v2577 = vadd.f32 %v2501, %v2576
      %2578 = vmatmul.bf16.gmra.mxu0 %v2497
      %v2579 = vpop.f32.mrf.mxu0
      %v2580 = vadd.f32 %v2501, %v2579
      %v2581 = vpop.f32.mrf.mxu0
      %v2582 = vadd.f32 %v2501, %v2581
      %2583 = vmatmul.bf16.gmra.mxu0 %v2498
      %v2584 = vpop.f32.mrf.mxu0
      %v2585 = vadd.f32 %v2501, %v2584
      %v2586 = vpop.f32.mrf.mxu0
      %v2587 = vadd.f32 %v2501, %v2586
      %2588 = vmatmul.bf16.gmra.mxu0 %v2499
      %v2589 = vpop.f32.mrf.mxu0
      %v2590 = vadd.f32 %v2501, %v2589
      %v2591 = vpop.f32.mrf.mxu0
      %v2592 = vadd.f32 %v2501, %v2591
      %2593 = vmatmul.bf16.gmra.mxu0 %v2500
      %v2594 = vpop.f32.mrf.mxu0
      %v2595 = vadd.f32 %v2501, %v2594
      %v2596 = vpop.f32.mrf.mxu0
      %v2597 = vadd.f32 %v2501, %v2596
      %2598 = vdwg.mxu0
      %v2599 = vmax.f32 %v2560, 0.0
      %v2600 = vmax.f32 %v2562, 0.0
      %v2601 = vmax.f32 %v2565, 0.0
      %v2602 = vmax.f32 %v2567, 0.0
      %v2603 = vmax.f32 %v2570, 0.0
      %v2604 = vmax.f32 %v2572, 0.0
      %v2605 = vmax.f32 %v2575, 0.0
      %v2606 = vmax.f32 %v2577, 0.0
      %v2607 = vmax.f32 %v2580, 0.0
      %v2608 = vmax.f32 %v2582, 0.0
      %v2609 = vmax.f32 %v2585, 0.0
      %v2610 = vmax.f32 %v2587, 0.0
      %v2611 = vmax.f32 %v2590, 0.0
      %v2612 = vmax.f32 %v2592, 0.0
      %v2613 = vmax.f32 %v2595, 0.0
      %v2614 = vmax.f32 %v2597, 0.0
      %v2615 = vld [vmem:[%s4 + $0xf8] sm:$0xf]
      %v2616 = vld [vmem:[%s4 + $0xfc] sm:$0xf]
      %v2617 = vld [vmem:[%s4 + $0x100] sm:$0xf]
      %v2618 = vld [vmem:[%s4 + $0x104] sm:$0xf]
      %v2619 = vld [vmem:[%s4 + $0x108] sm:$0xf]
      %v2620 = vld [vmem:[%s4 + $0x10c] sm:$0xf]
      %v2621 = vld [vmem:[%s4 + $0x110] sm:$0xf]
      %v2622 = vld [vmem:[%s4 + $0x114] sm:$0xf]
      %v2623 = vld [vmem:[%s4 + $0x118] sm:$0xf]
      %v2624 = vld [vmem:[%s4 + $0x11c] sm:$0xf]
      %v2625 = vld [vmem:[%s4 + $0x120] sm:$0xf]
      %v2626 = vld [vmem:[%s4 + $0x124] sm:$0xf]
      %v2627 = vld [vmem:[%s4 + $0x128] sm:$0xf]
      %v2628 = vld [vmem:[%s4 + $0x12c] sm:$0xf]
      %v2629 = vld [vmem:[%s4 + $0x130] sm:$0xf]
      %v2630 = vld [vmem:[%s4 + $0x134] sm:$0xf]
      %v2631 = vpack.c.bf16 %v2600, %v2599
      %v2632 = vpack.c.bf16 %v2602, %v2601
      %v2633 = vpack.c.bf16 %v2604, %v2603
      %v2634 = vpack.c.bf16 %v2606, %v2605
      %v2635 = vpack.c.bf16 %v2608, %v2607
      %v2636 = vpack.c.bf16 %v2610, %v2609
      %v2637 = vpack.c.bf16 %v2612, %v2611
      %v2638 = vpack.c.bf16 %v2614, %v2613
      %v2639 = vperm.slane %v289, 1
      %v2656 = vunpack.c.l.b16 %v2615
      %v2657 = vunpack.c.l.b16 %v2616
      %v2658 = vunpack.c.l.b16 %v2617
      %v2659 = vunpack.c.l.b16 %v2618
      %v2660 = vunpack.c.l.b16 %v2619
      %v2661 = vunpack.c.l.b16 %v2620
      %v2662 = vunpack.c.l.b16 %v2621
      %v2663 = vunpack.c.l.b16 %v2622
      %v2664 = vunpack.c.l.b16 %v2623
      %v2665 = vunpack.c.l.b16 %v2624
      %v2666 = vunpack.c.l.b16 %v2625
      %v2667 = vunpack.c.l.b16 %v2626
      %v2668 = vunpack.c.l.b16 %v2627
      %v2669 = vunpack.c.l.b16 %v2628
      %v2670 = vunpack.c.l.b16 %v2629
      %v2671 = vunpack.c.l.b16 %v2630
      %v2672 = vpack.c.b16 %v2657, %v2656
      %v2673 = vpack.c.b16 %v2659, %v2658
      %v2674 = vpack.c.b16 %v2661, %v2660
      %v2675 = vpack.c.b16 %v2663, %v2662
      %v2676 = vpack.c.b16 %v2665, %v2664
      %v2677 = vpack.c.b16 %v2667, %v2666
      %v2678 = vpack.c.b16 %v2669, %v2668
      %v2679 = vpack.c.b16 %v2671, %v2670
      %2688 = vmatpush.bf16.msra.mxu0 %v2679
      %2689 = vmatpush.bf16.msra.mxu0 %v2678
      %2690 = vmatpush.bf16.msra.mxu0 %v2677
      %2691 = vmatpush.bf16.msra.mxu0 %v2676
      %2692 = vmatpush.bf16.msra.mxu0 %v2675
      %2693 = vmatpush.bf16.msra.mxu0 %v2674
      %2694 = vmatpush.bf16.msra.mxu0 %v2673
      %2695 = vmatpush.bf16.msra.mxu0 %v2672
      %2696 = vmatmul.bf16.gmra.mxu0 %v2631
      %v2697 = vpop.f32.mrf.mxu0
      %v2698 = vadd.f32 %v2639, %v2697
      %v2699 = vpop.f32.mrf.mxu0
      %v2700 = vadd.f32 %v2639, %v2699
      %2701 = vmatmul.bf16.gmra.mxu0 %v2632
      %v2702 = vpop.f32.mrf.mxu0
      %v2703 = vadd.f32 %v2639, %v2702
      %v2704 = vpop.f32.mrf.mxu0
      %v2705 = vadd.f32 %v2639, %v2704
      %2706 = vmatmul.bf16.gmra.mxu0 %v2633
      %v2707 = vpop.f32.mrf.mxu0
      %v2708 = vadd.f32 %v2639, %v2707
      %v2709 = vpop.f32.mrf.mxu0
      %v2710 = vadd.f32 %v2639, %v2709
      %2711 = vmatmul.bf16.gmra.mxu0 %v2634
      %v2712 = vpop.f32.mrf.mxu0
      %v2713 = vadd.f32 %v2639, %v2712
      %v2714 = vpop.f32.mrf.mxu0
      %v2715 = vadd.f32 %v2639, %v2714
      %2716 = vmatmul.bf16.gmra.mxu0 %v2635
      %v2717 = vpop.f32.mrf.mxu0
      %v2718 = vadd.f32 %v2639, %v2717
      %v2719 = vpop.f32.mrf.mxu0
      %v2720 = vadd.f32 %v2639, %v2719
      %2721 = vmatmul.bf16.gmra.mxu0 %v2636
      %v2722 = vpop.f32.mrf.mxu0
      %v2723 = vadd.f32 %v2639, %v2722
      %v2724 = vpop.f32.mrf.mxu0
      %v2725 = vadd.f32 %v2639, %v2724
      %2726 = vmatmul.bf16.gmra.mxu0 %v2637
      %v2727 = vpop.f32.mrf.mxu0
      %v2728 = vadd.f32 %v2639, %v2727
      %v2729 = vpop.f32.mrf.mxu0
      %v2730 = vadd.f32 %v2639, %v2729
      %2731 = vmatmul.bf16.gmra.mxu0 %v2638
      %v2732 = vpop.f32.mrf.mxu0
      %v2733 = vadd.f32 %v2639, %v2732
      %v2734 = vpop.f32.mrf.mxu0
      %v2735 = vadd.f32 %v2639, %v2734
      %2736 = vdwg.mxu0
      %v2737 = vmax.f32 %v2698, 0.0
      %v2738 = vmax.f32 %v2700, 0.0
      %v2739 = vmax.f32 %v2703, 0.0
      %v2740 = vmax.f32 %v2705, 0.0
      %v2741 = vmax.f32 %v2708, 0.0
      %v2742 = vmax.f32 %v2710, 0.0
      %v2743 = vmax.f32 %v2713, 0.0
      %v2744 = vmax.f32 %v2715, 0.0
      %v2745 = vmax.f32 %v2718, 0.0
      %v2746 = vmax.f32 %v2720, 0.0
      %v2747 = vmax.f32 %v2723, 0.0
      %v2748 = vmax.f32 %v2725, 0.0
      %v2749 = vmax.f32 %v2728, 0.0
      %v2750 = vmax.f32 %v2730, 0.0
      %v2751 = vmax.f32 %v2733, 0.0
      %v2752 = vmax.f32 %v2735, 0.0
      %v2753 = vld [vmem:[%s4 + $0x118] sm:$0xf]
      %v2754 = vld [vmem:[%s4 + $0x11c] sm:$0xf]
      %v2755 = vld [vmem:[%s4 + $0x120] sm:$0xf]
      %v2756 = vld [vmem:[%s4 + $0x124] sm:$0xf]
      %v2757 = vld [vmem:[%s4 + $0x128] sm:$0xf]
      %v2758 = vld [vmem:[%s4 + $0x12c] sm:$0xf]
      %v2759 = vld [vmem:[%s4 + $0x130] sm:$0xf]
      %v2760 = vld [vmem:[%s4 + $0x134] sm:$0xf]
      %v2761 = vld [vmem:[%s4 + $0x138] sm:$0xf]
      %v2762 = vld [vmem:[%s4 + $0x13c] sm:$0xf]
      %v2763 = vld [vmem:[%s4 + $0x140] sm:$0xf]
      %v2764 = vld [vmem:[%s4 + $0x144] sm:$0xf]
      %v2765 = vld [vmem:[%s4 + $0x148] sm:$0xf]
      %v2766 = vld [vmem:[%s4 + $0x14c] sm:$0xf]
      %v2767 = vld [vmem:[%s4 + $0x150] sm:$0xf]
      %v2768 = vld [vmem:[%s4 + $0x154] sm:$0xf]
      %v2769 = vpack.c.bf16 %v2738, %v2737
      %v2770 = vpack.c.bf16 %v2740, %v2739
      %v2771 = vpack.c.bf16 %v2742, %v2741
      %v2772 = vpack.c.bf16 %v2744, %v2743
      %v2773 = vpack.c.bf16 %v2746, %v2745
      %v2774 = vpack.c.bf16 %v2748, %v2747
      %v2775 = vpack.c.bf16 %v2750, %v2749
      %v2776 = vpack.c.bf16 %v2752, %v2751
      %v2777 = vperm.slane %v289, 2
      %v2794 = vunpack.c.l.b16 %v2753
      %v2795 = vunpack.c.l.b16 %v2754
      %v2796 = vunpack.c.l.b16 %v2755
      %v2797 = vunpack.c.l.b16 %v2756
      %v2798 = vunpack.c.l.b16 %v2757
      %v2799 = vunpack.c.l.b16 %v2758
      %v2800 = vunpack.c.l.b16 %v2759
      %v2801 = vunpack.c.l.b16 %v2760
      %v2802 = vunpack.c.l.b16 %v2761
      %v2803 = vunpack.c.l.b16 %v2762
      %v2804 = vunpack.c.l.b16 %v2763
      %v2805 = vunpack.c.l.b16 %v2764
      %v2806 = vunpack.c.l.b16 %v2765
      %v2807 = vunpack.c.l.b16 %v2766
      %v2808 = vunpack.c.l.b16 %v2767
      %v2809 = vunpack.c.l.b16 %v2768
      %v2810 = vpack.c.b16 %v2795, %v2794
      %v2811 = vpack.c.b16 %v2797, %v2796
      %v2812 = vpack.c.b16 %v2799, %v2798
      %v2813 = vpack.c.b16 %v2801, %v2800
      %v2814 = vpack.c.b16 %v2803, %v2802
      %v2815 = vpack.c.b16 %v2805, %v2804
      %v2816 = vpack.c.b16 %v2807, %v2806
      %v2817 = vpack.c.b16 %v2809, %v2808
      %2826 = vmatpush.bf16.msra.mxu0 %v2817
      %2827 = vmatpush.bf16.msra.mxu0 %v2816
      %2828 = vmatpush.bf16.msra.mxu0 %v2815
      %2829 = vmatpush.bf16.msra.mxu0 %v2814
      %2830 = vmatpush.bf16.msra.mxu0 %v2813
      %2831 = vmatpush.bf16.msra.mxu0 %v2812
      %2832 = vmatpush.bf16.msra.mxu0 %v2811
      %2833 = vmatpush.bf16.msra.mxu0 %v2810
      %2834 = vmatmul.bf16.gmra.mxu0 %v2769
      %v2835 = vpop.f32.mrf.mxu0
      %v2836 = vadd.f32 %v2777, %v2835
      %v2837 = vpop.f32.mrf.mxu0
      %v2838 = vadd.f32 %v2777, %v2837
      %2839 = vmatmul.bf16.gmra.mxu0 %v2770
      %v2840 = vpop.f32.mrf.mxu0
      %v2841 = vadd.f32 %v2777, %v2840
      %v2842 = vpop.f32.mrf.mxu0
      %v2843 = vadd.f32 %v2777, %v2842
      %2844 = vmatmul.bf16.gmra.mxu0 %v2771
      %v2845 = vpop.f32.mrf.mxu0
      %v2846 = vadd.f32 %v2777, %v2845
      %v2847 = vpop.f32.mrf.mxu0
      %v2848 = vadd.f32 %v2777, %v2847
      %2849 = vmatmul.bf16.gmra.mxu0 %v2772
      %v2850 = vpop.f32.mrf.mxu0
      %v2851 = vadd.f32 %v2777, %v2850
      %v2852 = vpop.f32.mrf.mxu0
      %v2853 = vadd.f32 %v2777, %v2852
      %2854 = vmatmul.bf16.gmra.mxu0 %v2773
      %v2855 = vpop.f32.mrf.mxu0
      %v2856 = vadd.f32 %v2777, %v2855
      %v2857 = vpop.f32.mrf.mxu0
      %v2858 = vadd.f32 %v2777, %v2857
      %2859 = vmatmul.bf16.gmra.mxu0 %v2774
      %v2860 = vpop.f32.mrf.mxu0
      %v2861 = vadd.f32 %v2777, %v2860
      %v2862 = vpop.f32.mrf.mxu0
      %v2863 = vadd.f32 %v2777, %v2862
      %2864 = vmatmul.bf16.gmra.mxu0 %v2775
      %v2865 = vpop.f32.mrf.mxu0
      %v2866 = vadd.f32 %v2777, %v2865
      %v2867 = vpop.f32.mrf.mxu0
      %v2868 = vadd.f32 %v2777, %v2867
      %2869 = vmatmul.bf16.gmra.mxu0 %v2776
      %v2870 = vpop.f32.mrf.mxu0
      %v2871 = vadd.f32 %v2777, %v2870
      %v2872 = vpop.f32.mrf.mxu0
      %v2873 = vadd.f32 %v2777, %v2872
      %2874 = vdwg.mxu0
      %v2875 = vmax.f32 %v2836, 0.0
      %v2876 = vmax.f32 %v2838, 0.0
      %v2877 = vmax.f32 %v2841, 0.0
      %v2878 = vmax.f32 %v2843, 0.0
      %v2879 = vmax.f32 %v2846, 0.0
      %v2880 = vmax.f32 %v2848, 0.0
      %v2881 = vmax.f32 %v2851, 0.0
      %v2882 = vmax.f32 %v2853, 0.0
      %v2883 = vmax.f32 %v2856, 0.0
      %v2884 = vmax.f32 %v2858, 0.0
      %v2885 = vmax.f32 %v2861, 0.0
      %v2886 = vmax.f32 %v2863, 0.0
      %v2887 = vmax.f32 %v2866, 0.0
      %v2888 = vmax.f32 %v2868, 0.0
      %v2889 = vmax.f32 %v2871, 0.0
      %v2890 = vmax.f32 %v2873, 0.0
      %v2891 = vld [vmem:[%s4 + $0x138] sm:$0xf]
      %v2892 = vld [vmem:[%s4 + $0x13c] sm:$0xf]
      %v2893 = vld [vmem:[%s4 + $0x140] sm:$0xf]
      %v2894 = vld [vmem:[%s4 + $0x144] sm:$0xf]
      %v2895 = vld [vmem:[%s4 + $0x148] sm:$0xf]
      %v2896 = vld [vmem:[%s4 + $0x14c] sm:$0xf]
      %v2897 = vld [vmem:[%s4 + $0x150] sm:$0xf]
      %v2898 = vld [vmem:[%s4 + $0x154] sm:$0xf]
      %v2899 = vld [vmem:[%s4 + $0x158] sm:$0xf]
      %v2900 = vld [vmem:[%s4 + $0x15c] sm:$0xf]
      %v2901 = vld [vmem:[%s4 + $0x160] sm:$0xf]
      %v2902 = vld [vmem:[%s4 + $0x164] sm:$0xf]
      %v2903 = vld [vmem:[%s4 + $0x168] sm:$0xf]
      %v2904 = vld [vmem:[%s4 + $0x16c] sm:$0xf]
      %v2905 = vld [vmem:[%s4 + $0x170] sm:$0xf]
      %v2906 = vld [vmem:[%s4 + $0x174] sm:$0xf]
      %v2907 = vpack.c.bf16 %v2876, %v2875
      %v2908 = vpack.c.bf16 %v2878, %v2877
      %v2909 = vpack.c.bf16 %v2880, %v2879
      %v2910 = vpack.c.bf16 %v2882, %v2881
      %v2911 = vpack.c.bf16 %v2884, %v2883
      %v2912 = vpack.c.bf16 %v2886, %v2885
      %v2913 = vpack.c.bf16 %v2888, %v2887
      %v2914 = vpack.c.bf16 %v2890, %v2889
      %v2915 = vperm.slane %v289, 3
      %v2932 = vunpack.c.l.b16 %v2891
      %v2933 = vunpack.c.l.b16 %v2892
      %v2934 = vunpack.c.l.b16 %v2893
      %v2935 = vunpack.c.l.b16 %v2894
      %v2936 = vunpack.c.l.b16 %v2895
      %v2937 = vunpack.c.l.b16 %v2896
      %v2938 = vunpack.c.l.b16 %v2897
      %v2939 = vunpack.c.l.b16 %v2898
      %v2940 = vunpack.c.l.b16 %v2899
      %v2941 = vunpack.c.l.b16 %v2900
      %v2942 = vunpack.c.l.b16 %v2901
      %v2943 = vunpack.c.l.b16 %v2902
      %v2944 = vunpack.c.l.b16 %v2903
      %v2945 = vunpack.c.l.b16 %v2904
      %v2946 = vunpack.c.l.b16 %v2905
      %v2947 = vunpack.c.l.b16 %v2906
      %v2948 = vpack.c.b16 %v2933, %v2932
      %v2949 = vpack.c.b16 %v2935, %v2934
      %v2950 = vpack.c.b16 %v2937, %v2936
      %v2951 = vpack.c.b16 %v2939, %v2938
      %v2952 = vpack.c.b16 %v2941, %v2940
      %v2953 = vpack.c.b16 %v2943, %v2942
      %v2954 = vpack.c.b16 %v2945, %v2944
      %v2955 = vpack.c.b16 %v2947, %v2946
      %2964 = vmatpush.bf16.msra.mxu0 %v2955
      %2965 = vmatpush.bf16.msra.mxu0 %v2954
      %2966 = vmatpush.bf16.msra.mxu0 %v2953
      %2967 = vmatpush.bf16.msra.mxu0 %v2952
      %2968 = vmatpush.bf16.msra.mxu0 %v2951
      %2969 = vmatpush.bf16.msra.mxu0 %v2950
      %2970 = vmatpush.bf16.msra.mxu0 %v2949
      %2971 = vmatpush.bf16.msra.mxu0 %v2948
      %2972 = vmatmul.bf16.gmra.mxu0 %v2907
      %v2973 = vpop.f32.mrf.mxu0
      %v2974 = vadd.f32 %v2915, %v2973
      %v2975 = vpop.f32.mrf.mxu0
      %v2976 = vadd.f32 %v2915, %v2975
      %2977 = vmatmul.bf16.gmra.mxu0 %v2908
      %v2978 = vpop.f32.mrf.mxu0
      %v2979 = vadd.f32 %v2915, %v2978
      %v2980 = vpop.f32.mrf.mxu0
      %v2981 = vadd.f32 %v2915, %v2980
      %2982 = vmatmul.bf16.gmra.mxu0 %v2909
      %v2983 = vpop.f32.mrf.mxu0
      %v2984 = vadd.f32 %v2915, %v2983
      %v2985 = vpop.f32.mrf.mxu0
      %v2986 = vadd.f32 %v2915, %v2985
      %2987 = vmatmul.bf16.gmra.mxu0 %v2910
      %v2988 = vpop.f32.mrf.mxu0
      %v2989 = vadd.f32 %v2915, %v2988
      %v2990 = vpop.f32.mrf.mxu0
      %v2991 = vadd.f32 %v2915, %v2990
      %2992 = vmatmul.bf16.gmra.mxu0 %v2911
      %v2993 = vpop.f32.mrf.mxu0
      %v2994 = vadd.f32 %v2915, %v2993
      %v2995 = vpop.f32.mrf.mxu0
      %v2996 = vadd.f32 %v2915, %v2995
      %2997 = vmatmul.bf16.gmra.mxu0 %v2912
      %v2998 = vpop.f32.mrf.mxu0
      %v2999 = vadd.f32 %v2915, %v2998
      %v3000 = vpop.f32.mrf.mxu0
      %v3001 = vadd.f32 %v2915, %v3000
      %3002 = vmatmul.bf16.gmra.mxu0 %v2913
      %v3003 = vpop.f32.mrf.mxu0
      %v3004 = vadd.f32 %v2915, %v3003
      %v3005 = vpop.f32.mrf.mxu0
      %v3006 = vadd.f32 %v2915, %v3005
      %3007 = vmatmul.bf16.gmra.mxu0 %v2914
      %v3008 = vpop.f32.mrf.mxu0
      %v3009 = vadd.f32 %v2915, %v3008
      %v3010 = vpop.f32.mrf.mxu0
      %v3011 = vadd.f32 %v2915, %v3010
      %3012 = vdwg.mxu0
      %3013 = vst [vmem:[%s283] sm:$0xff] %v2974
      %3014 = vst [vmem:[%s283 + $0x8] sm:$0xff] %v2976
      %3015 = vst [vmem:[%s283 + $0x10] sm:$0xff] %v2979
      %3016 = vst [vmem:[%s283 + $0x18] sm:$0xff] %v2981
      %3017 = vst [vmem:[%s283 + $0x20] sm:$0xff] %v2984
      %3018 = vst [vmem:[%s283 + $0x28] sm:$0xff] %v2986
      %3019 = vst [vmem:[%s283 + $0x30] sm:$0xff] %v2989
      %3020 = vst [vmem:[%s283 + $0x38] sm:$0xff] %v2991
      %3021 = vst [vmem:[%s283 + $0x40] sm:$0xff] %v2994
      %3022 = vst [vmem:[%s283 + $0x48] sm:$0xff] %v2996
      %3023 = vst [vmem:[%s283 + $0x50] sm:$0xff] %v2999
      %3024 = vst [vmem:[%s283 + $0x58] sm:$0xff] %v3001
      %3025 = vst [vmem:[%s283 + $0x60] sm:$0xff] %v3004
      %3026 = vst [vmem:[%s283 + $0x68] sm:$0xff] %v3006
      %3027 = vst [vmem:[%s283 + $0x70] sm:$0xff] %v3009
      %3028 = vst [vmem:[%s283 + $0x78] sm:$0xff] %v3011
      %s3029 = smul.u32 16, %s16
      %p3030 = scmp.lt.s32.totalorder %s3029, 31
      %s3031 = scalar_select %p3030, %s3029, 31
      %s3032 = smul.addr %s3031, 8
      %s3033 = scalar_lea.vmem %s5, %s3032
      // Predicated region
      $region41: #{pose_graph_prediction_net.1} parent=39 // pred_check
        %p3034 = pneg %p159
      $region42: #{pose_graph_prediction_net.1} parent=39 // pred_check_branch
        %3036 = sbr.rel (%p3034) target = $region44
      $region43: #{pose_graph_prediction_net.1} parent=39 // pred_region
        %s3037 = smul.u32 16, %s16
      $region44: #{pose_graph_prediction_net.1} parent=39 // pred_fallthru
        _
    $region40: #{pose_graph_prediction_net.1} parent=5 // pred_fallthru
      _
    %p3038 = scmp.le.s32.totalorder 2, %s11
    // Predicated region
    $region45: #{pose_graph_prediction_net.1} parent=5 // pred_check
      %p3039 = pneg %p3038
    $region46: #{pose_graph_prediction_net.1} parent=5 // pred_check_branch
      %3041 = sbr.rel (%p3039) target = $region48
    $region47: #{pose_graph_prediction_net.1} parent=5 // pred_region
      %s3042 = ssub.s32 %s11, 2
      // Predicated region
      $region49: #{pose_graph_prediction_net.1} parent=47 // pred_check
        %p3043 = pneg %p165
      $region50: #{pose_graph_prediction_net.1} parent=47 // pred_check_branch
        %3045 = sbr.rel (%p3043) target = $region52
      $region51: #{pose_graph_prediction_net.1} parent=47 // pred_region
        %s3046 = smul.u32 16, %s17
        %p3047 = scmp.lt.s32.totalorder %s3046, 31
        %s3048 = scalar_select %p3047, %s3046, 31
        %s3049 = smul.addr %s3048, 8
        %s3050 = scalar_lea.vmem %s5, %s3049
      $region52: #{pose_graph_prediction_net.1} parent=47 // pred_fallthru
        _
    $region48: #{pose_graph_prediction_net.1} parent=5 // pred_fallthru
      _
  $region6: #{pose_graph_prediction_net.1} parent=0 // loop_footer
    %s15 = sadd.s32 1, %s11
  $region7: #{pose_graph_prediction_net.1} parent=0 // loop_footer_branch
    %10 = sbr.rel target = $region3
  $region8: #{pose_graph_prediction_net.1} parent=0 // loop_exit
    _

</llo_original>
